<compile_context>
chip_gen: v5e
topology: v5e:2x2
jax: 0.10.0
libtpu: 0.0.40
codegen_flags: <defaults>
</compile_context>

<pallas_src>
import functools

import jax
import jax.numpy as jnp
from jax import lax
from jax.experimental import pallas as pl
from jax.experimental.pallas import tpu as pltpu

# PGA blade ordering: [1, e0, e1, e2, e3, e01, e02, e03, e12, e13, e23,
#                      e012, e013, e023, e123, e0123]
IPA_BLADES = (0, 2, 3, 4, 8, 9, 10, 14)   # blades without e0 (invariant inner product)
PNT_BLADES = (11, 12, 13)                 # trivector "point" components (e012, e013, e023)
EPS = 1e-6
VMEM_LIMIT = 48 * 1024 * 1024             # safe on v5e/v6e (128 MiB) and v7x (64 MiB/TC)


# ---------------------------------------------------------------------------
# helpers (wrapper-side, tiny one-shot XLA ops)
# ---------------------------------------------------------------------------
def _blade_expand(w):
    """(Cout, Cin) channel mixer -> (Cin*16, Cout*16) blade-diagonal matrix."""
    cout, cin = w.shape
    eye16 = jnp.eye(16, dtype=w.dtype)
    big = jnp.einsum("oc,kl->ckol", w, eye16)          # (Cin, 16, Cout, 16)
    return big.reshape(cin * 16, cout * 16)


def _scalar_blade_bias(bvec):
    """(Cout,) -> (1, Cout*16) bias applied to the scalar blade only."""
    cout = bvec.shape[0]
    return jnp.zeros((cout, 16), bvec.dtype).at[:, 0].set(bvec).reshape(1, cout * 16)


def _pick_tile(n, cap):
    """Largest divisor of n that is <= cap and a multiple of 8 (fallback: full dim)."""
    cap = max(8, min(cap, n))
    for tile in range(cap - cap % 8, 7, -8):
        if n % tile == 0:
            return tile
    return n


def _row_cap(resident_bytes, per_row_bytes, budget_bytes):
    """How many rows fit in VMEM given a resident footprint and per-row (x2 buffered) cost."""
    avail = budget_bytes - resident_bytes
    if avail <= 0:
        return 8
    return max(8, avail // per_row_bytes)


# ---------------------------------------------------------------------------
# Kernel 1: EquiRMSNorm + QKV EquiLinear + scalar-blade bias (fused)
#           output laid out (3*heads, rows, d) bf16 for contiguous per-head K/V DMA.
# ---------------------------------------------------------------------------
def _norm_qkv_kernel(x_ref, nmask_ref, w_ref, b_ref, o_ref, *, n_groups, d):
    x = x_ref[...]                                             # (tr, Cin*16) f32
    # nmask already contains the invariant-blade mask * (1/c); ln_w is folded into w.
    ms = jnp.sum(x * x * nmask_ref[...], axis=-1, keepdims=True)
    xn = (x * lax.rsqrt(ms + EPS)).astype(jnp.bfloat16)
    res = jnp.dot(xn, w_ref[...], preferred_element_type=jnp.float32) + b_ref[...]
    for j in range(n_groups):                                  # static 128-aligned lane slices
        o_ref[j] = res[:, j * d:(j + 1) * d].astype(o_ref.dtype)


# ---------------------------------------------------------------------------
# Kernel 2: geometric attention (IPA + DAA), flash-style online softmax
# ---------------------------------------------------------------------------
def _attn_kernel(q_ref, k_ref, v_ref, scl_ref, pnt_ref, o_ref,
                 qs_scr, qn_scr, m_scr, l_scr, acc_scr):
    ki = pl.program_id(3)
    pnt = pnt_ref[...]                                         # (1, D): 1/sqrt(d_pts) on point blades

    @pl.when(ki == 0)
    def _():
        # q-only work hoisted out of the KV loop
        q = q_ref[0, 0].astype(jnp.float32)                    # (tq, D)
        qp = q * pnt
        qn_scr[...] = jnp.sum(qp * qp, axis=-1, keepdims=True)  # |q_pts|^2 / d_pts
        qs_scr[...] = (q * scl_ref[...]).astype(jnp.bfloat16)   # scaled query for MXU
        m_scr[...] = jnp.full(m_scr.shape, -jnp.inf, m_scr.dtype)
        l_scr[...] = jnp.zeros(l_scr.shape, l_scr.dtype)
        acc_scr[...] = jnp.zeros(acc_scr.shape, acc_scr.dtype)

    k = k_ref[0, 0]                                            # (tkv, D) bf16
    v = v_ref[0, 0]                                            # (tkv, D) bf16

    # key point-norm in f32 on the VPU/XLU (once per KV tile)
    kp = k.astype(jnp.float32) * pnt
    kn = jnp.sum(kp * kp, axis=-1, keepdims=True)              # (tkv, 1) = |k_pts|^2 / d_pts

    # s = IPA/sqrt(d_ipa) + 2<q_pts,k_pts>/d_pts - |q_pts|^2/d_pts - |k_pts|^2/d_pts
    s = lax.dot_general(qs_scr[...], k, (((1,), (1,)), ((), ())),
                        preferred_element_type=jnp.float32)     # (tq, tkv)
    s = s - jnp.transpose(kn) - qn_scr[...]

    # online softmax (flash pattern)
    m_prev = m_scr[...]
    m_new = jnp.maximum(m_prev, jnp.max(s, axis=-1, keepdims=True))
    alpha = jnp.exp(m_prev - m_new)
    p = jnp.exp(s - m_new)
    l_scr[...] = alpha * l_scr[...] + jnp.sum(p, axis=-1, keepdims=True)
    acc_scr[...] = alpha * acc_scr[...] + jnp.dot(
        p.astype(jnp.bfloat16), v, preferred_element_type=jnp.float32)
    m_scr[...] = m_new

    @pl.when(ki == pl.num_programs(3) - 1)
    def _():
        o_ref[0] = (acc_scr[...] * pl.reciprocal(l_scr[...], approx=False)
                    ).astype(o_ref.dtype)


# ---------------------------------------------------------------------------
# Kernel 3: output EquiLinear + scalar-blade bias + residual add (fused)
# ---------------------------------------------------------------------------
def _out_proj_kernel(a_ref, r_ref, w_ref, b_ref, o_ref):
    o_ref[...] = (
        jnp.dot(a_ref[...], w_ref[...], preferred_element_type=jnp.float32)
        + b_ref[...] + r_ref[...]
    )


# ---------------------------------------------------------------------------
# Full forward pass of GeneratorSelfAttention
# ---------------------------------------------------------------------------
def generator_self_attention(hidden, params, num_heads):
    b, t, c, kb = hidden.shape
    assert kb == 16, "multivectors must have 16 blade components"
    assert c % 8 == 0, "gnrt_dim_hidden must be a multiple of 8 for lane-dense tiling"
    nh = num_heads
    d = c * 16                       # lanes per (qkv, head) group (multiple of 128)
    n_qkv = 3 * nh * d
    n_att = nh * d
    bt = b * t
    f32 = jnp.float32
    bf16 = jnp.bfloat16

    xf = hidden.reshape(bt, d).astype(f32)

    # ---- constants / parameter prep (one-shot XLA) ----
    ipa = jnp.zeros((16,), f32).at[jnp.array(IPA_BLADES)].set(1.0)
    pnt = jnp.zeros((16,), f32).at[jnp.array(PNT_BLADES)].set(1.0)
    d_ipa = c * len(IPA_BLADES)
    d_pts = c * len(PNT_BLADES)

    norm_mask = (jnp.tile(ipa, c) * (1.0 / c)).reshape(1, d)       # mask * 1/c fused
    qk_scale = jnp.tile(ipa * (d_ipa ** -0.5) + pnt * (2.0 / d_pts), c).reshape(1, d)
    pnt_scale = jnp.tile(pnt * (d_pts ** -0.5), c).reshape(1, d)

    ln_w = jnp.repeat(params["ln_w"].astype(f32), 16)              # (d,), folded into w_attn
    w_attn = (_blade_expand(params["w_attn"].astype(f32)) * ln_w[:, None]).astype(bf16)
    b_attn = _scalar_blade_bias(params["b_attn"].astype(f32))      # (1, n_qkv) f32
    w_next = _blade_expand(params["w_next"].astype(f32)).astype(bf16)  # (n_att, d)
    b_next = _scalar_blade_bias(params["b_next"].astype(f32))      # (1, d) f32

    vmem_budget = (3 * VMEM_LIMIT) // 4   # headroom for scratch / compiler slack

    # ---- kernel 1: RMSNorm + QKV projection + bias -> (3*nh, bt, d) bf16 ----
    resident1 = d * n_qkv * 2 + n_qkv * 4 + d * 4
    per_row1 = 2 * (d * 4) + 2 * (n_qkv * 2)
    tr1 = _pick_tile(bt, min(512, max(8, bt // 2), _row_cap(resident1, per_row1, vmem_budget)))
    proj = pl.pallas_call(
        functools.partial(_norm_qkv_kernel, n_groups=3 * nh, d=d),
        out_shape=jax.ShapeDtypeStruct((3 * nh, bt, d), bf16),
        grid=(bt // tr1,),
        in_specs=[
            pl.BlockSpec((tr1, d), lambda i: (i, 0)),
            pl.BlockSpec((1, d), lambda i: (0, 0)),
            pl.BlockSpec((d, n_qkv), lambda i: (0, 0)),
            pl.BlockSpec((1, n_qkv), lambda i: (0, 0)),
        ],
        out_specs=pl.BlockSpec((3 * nh, tr1, d), lambda i: (0, i, 0)),
        compiler_params=pltpu.CompilerParams(
            dimension_semantics=("parallel",), vmem_limit_bytes=VMEM_LIMIT),
    )(xf, norm_mask, w_attn, b_attn)

    proj4 = proj.reshape(3 * nh, b, t, d)     # free view; per-head rows are contiguous

    # ---- kernel 2: fused geometric attention (flash online softmax) ----
    tq = _pick_tile(t, min(512, t))
    tkv = _pick_tile(t, min(512, t))
    grid = (b, nh, t // tq, t // tkv)

    q_spec = pl.BlockSpec((1, 1, tq, d), lambda bi, hi, qi, ki: (hi, bi, qi, 0))
    k_spec = pl.BlockSpec((1, 1, tkv, d), lambda bi, hi, qi, ki: (nh + hi, bi, ki, 0))
    v_spec = pl.BlockSpec((1, 1, tkv, d), lambda bi, hi, qi, ki: (2 * nh + hi, bi, ki, 0))
    vec_spec = pl.BlockSpec((1, d), lambda bi, hi, qi, ki: (0, 0))

    attn = pl.pallas_call(
        _attn_kernel,
        out_shape=jax.ShapeDtypeStruct((b, t, n_att), bf16),   # already 'b t (h c) k' layout
        grid=grid,
        in_specs=[q_spec, k_spec, v_spec, vec_spec, vec_spec],
        out_specs=pl.BlockSpec((1, tq, d), lambda bi, hi, qi, ki: (bi, qi, hi)),
        scratch_shapes=[
            pltpu.VMEM((tq, d), bf16),   # hoisted scaled query (bf16, MXU-ready)
            pltpu.VMEM((tq, 1), f32),    # hoisted |q_pts|^2 / d_pts
            pltpu.VMEM((tq, 1), f32),    # running max
            pltpu.VMEM((tq, 1), f32),    # running denom
            pltpu.VMEM((tq, d), f32),    # running numerator
        ],
        compiler_params=pltpu.CompilerParams(
            dimension_semantics=("parallel", "parallel", "parallel", "arbitrary"),
            vmem_limit_bytes=VMEM_LIMIT),
    )(proj4, proj4, proj4, qk_scale, pnt_scale)

    # ---- kernel 3: output projection + bias + residual ----
    attn_flat = attn.reshape(bt, n_att)
    resident3 = n_att * d * 2 + d * 4
    per_row3 = 2 * (n_att * 2 + d * 4) + 2 * (d * 4)
    tr3 = _pick_tile(bt, min(512, max(8, bt // 2), _row_cap(resident3, per_row3, vmem_budget)))
    out = pl.pallas_call(
        _out_proj_kernel,
        out_shape=jax.ShapeDtypeStruct((bt, d), f32),
        grid=(bt // tr3,),
        in_specs=[
            pl.BlockSpec((tr3, n_att), lambda i: (i, 0)),
            pl.BlockSpec((tr3, d), lambda i: (i, 0)),
            pl.BlockSpec((n_att, d), lambda i: (0, 0)),
            pl.BlockSpec((1, d), lambda i: (0, 0)),
        ],
        out_specs=pl.BlockSpec((tr3, d), lambda i: (i, 0)),
        compiler_params=pltpu.CompilerParams(
            dimension_semantics=("parallel",), vmem_limit_bytes=VMEM_LIMIT),
    )(attn_flat, xf, w_next, b_next)

    return out.reshape(b, t, c, kb)


if __name__ == "__main__":
    # Small synthetic config: batch=2, tokens=128, gnrt_dim_hidden=8, heads=2, blades=16
    B, T, C, H, K = 2, 128, 8, 2, 16

    key = jax.random.PRNGKey(0)
    ks = jax.random.split(key, 6)
    hidden = jax.random.normal(ks[0], (B, T, C, K), jnp.float32)
    params = dict(
        ln_w=jnp.ones((C,), jnp.float32) + 0.01 * jax.random.normal(ks[1], (C,), jnp.float32),
        w_attn=0.1 * jax.random.normal(ks[2], (3 * H * C, C), jnp.float32),
        b_attn=0.01 * jax.random.normal(ks[3], (3 * H * C,), jnp.float32),
        w_next=0.1 * jax.random.normal(ks[4], (C, H * C), jnp.float32),
        b_next=0.01 * jax.random.normal(ks[5], (C,), jnp.float32),
    )

    fwd = jax.jit(functools.partial(generator_self_attention, num_heads=H))
    out = fwd(hidden, params)
    jax.block_until_ready(out)
    assert out.shape == hidden.shape and out.dtype == jnp.float32
    assert bool(jnp.all(jnp.isfinite(out)))
    print("KERNEL_OK")
</pallas_src>

<mosaic_0001>
module attributes {stable_mosaic.version = 11 : i64} {
  func.func @_norm_qkv_kernel(%arg0: i32, %arg1: memref<128x128xf32, #tpu.memory_space<vmem>>, %arg2: memref<1x128xf32, #tpu.memory_space<vmem>>, %arg3: memref<128x768xbf16, #tpu.memory_space<vmem>>, %arg4: memref<1x768xf32, #tpu.memory_space<vmem>>, %arg5: memref<6x128x128xbf16, #tpu.memory_space<vmem>>) attributes {dimension_semantics = [#tpu.dimension_semantics<parallel>], iteration_bounds = array<i64: 2>, scalar_prefetch = 0 : i64, scratch_operands = 0 : i64, tpu.core_type = #tpu.core_type<tc>, window_params = [{transform_indices = @transform_0, window_bounds = array<i64: 128, 128>}, {pipeline_mode = #tpu.pipeline_mode<synchronous>, transform_indices = @transform_1, window_bounds = array<i64: 1, 128>}, {pipeline_mode = #tpu.pipeline_mode<synchronous>, transform_indices = @transform_2, window_bounds = array<i64: 128, 768>}, {pipeline_mode = #tpu.pipeline_mode<synchronous>, transform_indices = @transform_3, window_bounds = array<i64: 1, 768>}, {transform_indices = @transform_4, window_bounds = array<i64: 6, 128, 128>}]} {
    %c0 = arith.constant 0 : index
    %c0_0 = arith.constant 0 : index
    %0 = vector.load %arg1[%c0, %c0_0] : memref<128x128xf32, #tpu.memory_space<vmem>>, vector<128x128xf32>
    %1 = arith.mulf %0, %0 : vector<128x128xf32>
    %c0_1 = arith.constant 0 : index
    %c0_2 = arith.constant 0 : index
    %2 = vector.load %arg2[%c0_1, %c0_2] : memref<1x128xf32, #tpu.memory_space<vmem>>, vector<1x128xf32>
    %3 = vector.broadcast %2 : vector<1x128xf32> to vector<128x128xf32>
    %4 = arith.mulf %1, %3 : vector<128x128xf32>
    %cst = arith.constant dense<0.000000e+00> : vector<128xf32>
    %5 = vector.multi_reduction <add>, %4, %cst [1] : vector<128x128xf32> to vector<128xf32>
    %6 = vector.shape_cast %5 : vector<128xf32> to vector<128x1xf32>
    %cst_3 = arith.constant 9.99999997E-7 : f32
    %7 = vector.broadcast %cst_3 : f32 to vector<128x1xf32>
    %8 = arith.addf %6, %7 : vector<128x1xf32>
    %9 = math.rsqrt %8 : vector<128x1xf32>
    %10 = vector.broadcast %9 : vector<128x1xf32> to vector<128x128xf32>
    %11 = arith.mulf %0, %10 : vector<128x128xf32>
    %12 = arith.truncf %11 : vector<128x128xf32> to vector<128x128xbf16>
    %c0_4 = arith.constant 0 : index
    %c0_5 = arith.constant 0 : index
    %13 = vector.load %arg3[%c0_4, %c0_5] : memref<128x768xbf16, #tpu.memory_space<vmem>>, vector<128x768xbf16>
    %cst_6 = arith.constant dense<0.000000e+00> : vector<128x768xf32>
    %14 = tpu.matmul %12, %13, %cst_6 {dimension_numbers = #tpu.dot_dimension_numbers<[1], [0], [0], [1], [0, 0, 1, 1], [], []>} : vector<128x128xbf16>, vector<128x768xbf16>, vector<128x768xf32> -> vector<128x768xf32>
    %c0_7 = arith.constant 0 : index
    %c0_8 = arith.constant 0 : index
    %15 = vector.load %arg4[%c0_7, %c0_8] : memref<1x768xf32, #tpu.memory_space<vmem>>, vector<1x768xf32>
    %16 = vector.broadcast %15 : vector<1x768xf32> to vector<128x768xf32>
    %17 = arith.addf %14, %16 : vector<128x768xf32>
    %18 = vector.extract_strided_slice %17 {offsets = [0, 0], sizes = [128, 128], strides = [1, 1]} : vector<128x768xf32> to vector<128x128xf32>
    %19 = arith.truncf %18 : vector<128x128xf32> to vector<128x128xbf16>
    %c0_9 = arith.constant 0 : index
    %c0_10 = arith.constant 0 : index
    %c0_11 = arith.constant 0 : index
    %20 = vector.load %arg5[%c0_9, %c0_10, %c0_11] : memref<6x128x128xbf16, #tpu.memory_space<vmem>>, vector<1x128x128xbf16>
    %21 = vector.shape_cast %20 : vector<1x128x128xbf16> to vector<128x128xbf16>
    %22 = vector.shape_cast %19 : vector<128x128xbf16> to vector<1x128x128xbf16>
    tpu.vector_store %arg5[%c0_9, %c0_10, %c0_11], %22 {strides = array<i32>} : memref<6x128x128xbf16, #tpu.memory_space<vmem>>, vector<1x128x128xbf16>,
    %23 = vector.extract_strided_slice %17 {offsets = [0, 128], sizes = [128, 128], strides = [1, 1]} : vector<128x768xf32> to vector<128x128xf32>
    %24 = arith.truncf %23 : vector<128x128xf32> to vector<128x128xbf16>
    %c1 = arith.constant 1 : index
    %c0_12 = arith.constant 0 : index
    %c0_13 = arith.constant 0 : index
    %25 = vector.load %arg5[%c1, %c0_12, %c0_13] : memref<6x128x128xbf16, #tpu.memory_space<vmem>>, vector<1x128x128xbf16>
    %26 = vector.shape_cast %25 : vector<1x128x128xbf16> to vector<128x128xbf16>
    %27 = vector.shape_cast %24 : vector<128x128xbf16> to vector<1x128x128xbf16>
    tpu.vector_store %arg5[%c1, %c0_12, %c0_13], %27 {strides = array<i32>} : memref<6x128x128xbf16, #tpu.memory_space<vmem>>, vector<1x128x128xbf16>,
    %28 = vector.extract_strided_slice %17 {offsets = [0, 256], sizes = [128, 128], strides = [1, 1]} : vector<128x768xf32> to vector<128x128xf32>
    %29 = arith.truncf %28 : vector<128x128xf32> to vector<128x128xbf16>
    %c2 = arith.constant 2 : index
    %c0_14 = arith.constant 0 : index
    %c0_15 = arith.constant 0 : index
    %30 = vector.load %arg5[%c2, %c0_14, %c0_15] : memref<6x128x128xbf16, #tpu.memory_space<vmem>>, vector<1x128x128xbf16>
    %31 = vector.shape_cast %30 : vector<1x128x128xbf16> to vector<128x128xbf16>
    %32 = vector.shape_cast %29 : vector<128x128xbf16> to vector<1x128x128xbf16>
    tpu.vector_store %arg5[%c2, %c0_14, %c0_15], %32 {strides = array<i32>} : memref<6x128x128xbf16, #tpu.memory_space<vmem>>, vector<1x128x128xbf16>,
    %33 = vector.extract_strided_slice %17 {offsets = [0, 384], sizes = [128, 128], strides = [1, 1]} : vector<128x768xf32> to vector<128x128xf32>
    %34 = arith.truncf %33 : vector<128x128xf32> to vector<128x128xbf16>
    %c3 = arith.constant 3 : index
    %c0_16 = arith.constant 0 : index
    %c0_17 = arith.constant 0 : index
    %35 = vector.load %arg5[%c3, %c0_16, %c0_17] : memref<6x128x128xbf16, #tpu.memory_space<vmem>>, vector<1x128x128xbf16>
    %36 = vector.shape_cast %35 : vector<1x128x128xbf16> to vector<128x128xbf16>
    %37 = vector.shape_cast %34 : vector<128x128xbf16> to vector<1x128x128xbf16>
    tpu.vector_store %arg5[%c3, %c0_16, %c0_17], %37 {strides = array<i32>} : memref<6x128x128xbf16, #tpu.memory_space<vmem>>, vector<1x128x128xbf16>,
    %38 = vector.extract_strided_slice %17 {offsets = [0, 512], sizes = [128, 128], strides = [1, 1]} : vector<128x768xf32> to vector<128x128xf32>
    %39 = arith.truncf %38 : vector<128x128xf32> to vector<128x128xbf16>
    %c4 = arith.constant 4 : index
    %c0_18 = arith.constant 0 : index
    %c0_19 = arith.constant 0 : index
    %40 = vector.load %arg5[%c4, %c0_18, %c0_19] : memref<6x128x128xbf16, #tpu.memory_space<vmem>>, vector<1x128x128xbf16>
    %41 = vector.shape_cast %40 : vector<1x128x128xbf16> to vector<128x128xbf16>
    %42 = vector.shape_cast %39 : vector<128x128xbf16> to vector<1x128x128xbf16>
    tpu.vector_store %arg5[%c4, %c0_18, %c0_19], %42 {strides = array<i32>} : memref<6x128x128xbf16, #tpu.memory_space<vmem>>, vector<1x128x128xbf16>,
    %43 = vector.extract_strided_slice %17 {offsets = [0, 640], sizes = [128, 128], strides = [1, 1]} : vector<128x768xf32> to vector<128x128xf32>
    %44 = arith.truncf %43 : vector<128x128xf32> to vector<128x128xbf16>
    %c5 = arith.constant 5 : index
    %c0_20 = arith.constant 0 : index
    %c0_21 = arith.constant 0 : index
    %45 = vector.load %arg5[%c5, %c0_20, %c0_21] : memref<6x128x128xbf16, #tpu.memory_space<vmem>>, vector<1x128x128xbf16>
    %46 = vector.shape_cast %45 : vector<1x128x128xbf16> to vector<128x128xbf16>
    %47 = vector.shape_cast %44 : vector<128x128xbf16> to vector<1x128x128xbf16>
    tpu.vector_store %arg5[%c5, %c0_20, %c0_21], %47 {strides = array<i32>} : memref<6x128x128xbf16, #tpu.memory_space<vmem>>, vector<1x128x128xbf16>,
    return
  }
  func.func @transform_0(%arg0: i32) -> (i32, i32) {
    %c0_i32 = arith.constant 0 : i32
    %c0_i32_0 = arith.constant 0 : i32
    return %arg0, %c0_i32 : i32, i32
  }
  func.func @transform_1(%arg0: i32) -> (i32, i32) {
    %c0_i32 = arith.constant 0 : i32
    %c0_i32_0 = arith.constant 0 : i32
    %c0_i32_1 = arith.constant 0 : i32
    return %c0_i32, %c0_i32_0 : i32, i32
  }
  func.func @transform_2(%arg0: i32) -> (i32, i32) {
    %c0_i32 = arith.constant 0 : i32
    %c0_i32_0 = arith.constant 0 : i32
    %c0_i32_1 = arith.constant 0 : i32
    return %c0_i32, %c0_i32_0 : i32, i32
  }
  func.func @transform_3(%arg0: i32) -> (i32, i32) {
    %c0_i32 = arith.constant 0 : i32
    %c0_i32_0 = arith.constant 0 : i32
    %c0_i32_1 = arith.constant 0 : i32
    return %c0_i32, %c0_i32_0 : i32, i32
  }
  func.func @transform_4(%arg0: i32) -> (i32, i32, i32) {
    %c0_i32 = arith.constant 0 : i32
    %c0_i32_0 = arith.constant 0 : i32
    %c0_i32_1 = arith.constant 0 : i32
    return %c0_i32, %arg0, %c0_i32_0 : i32, i32, i32
  }
}

module attributes {stable_mosaic.version = 11 : i64} {
  func.func @_attn_kernel(%arg0: i32, %arg1: i32, %arg2: i32, %arg3: i32, %arg4: memref<1x1x128x128xbf16, #tpu.memory_space<vmem>>, %arg5: memref<1x1x128x128xbf16, #tpu.memory_space<vmem>>, %arg6: memref<1x1x128x128xbf16, #tpu.memory_space<vmem>>, %arg7: memref<1x128xf32, #tpu.memory_space<vmem>>, %arg8: memref<1x128xf32, #tpu.memory_space<vmem>>, %arg9: memref<1x128x128xbf16, #tpu.memory_space<vmem>>, %arg10: memref<128x128xbf16, #tpu.memory_space<vmem>>, %arg11: memref<128x1xf32, #tpu.memory_space<vmem>>, %arg12: memref<128x1xf32, #tpu.memory_space<vmem>>, %arg13: memref<128x1xf32, #tpu.memory_space<vmem>>, %arg14: memref<128x128xf32, #tpu.memory_space<vmem>>) attributes {dimension_semantics = [#tpu.dimension_semantics<parallel>, #tpu.dimension_semantics<parallel>, #tpu.dimension_semantics<parallel>, #tpu.dimension_semantics<arbitrary>], iteration_bounds = array<i64: 2, 2, 1, 1>, scalar_prefetch = 0 : i64, scratch_operands = 5 : i64, tpu.core_type = #tpu.core_type<tc>, window_params = [{transform_indices = @transform_0, window_bounds = array<i64: 1, 1, 128, 128>}, {transform_indices = @transform_1, window_bounds = array<i64: 1, 1, 128, 128>}, {transform_indices = @transform_2, window_bounds = array<i64: 1, 1, 128, 128>}, {pipeline_mode = #tpu.pipeline_mode<synchronous>, transform_indices = @transform_3, window_bounds = array<i64: 1, 128>}, {pipeline_mode = #tpu.pipeline_mode<synchronous>, transform_indices = @transform_4, window_bounds = array<i64: 1, 128>}, {transform_indices = @transform_5, window_bounds = array<i64: 1, 128, 128>}]} {
    %c0 = arith.constant 0 : index
    %c0_0 = arith.constant 0 : index
    %0 = vector.load %arg8[%c0, %c0_0] : memref<1x128xf32, #tpu.memory_space<vmem>>, vector<1x128xf32>
    %c0_i32 = arith.constant 0 : i32
    %1 = arith.cmpi eq, %arg3, %c0_i32 : i32
    %2 = arith.extui %1 : i1 to i32
    %c0_i32_1 = arith.constant 0 : i32
    %3 = arith.cmpi ne, %2, %c0_i32_1 : i32
    scf.if %3 {
      %c0_32 = arith.constant 0 : index
      %c0_33 = arith.constant 0 : index
      %c0_34 = arith.constant 0 : index
      %c0_35 = arith.constant 0 : index
      %48 = vector.load %arg4[%c0_32, %c0_33, %c0_34, %c0_35] : memref<1x1x128x128xbf16, #tpu.memory_space<vmem>>, vector<1x1x128x128xbf16>
      %49 = vector.shape_cast %48 : vector<1x1x128x128xbf16> to vector<128x128xbf16>
      %50 = arith.extf %49 : vector<128x128xbf16> to vector<128x128xf32>
      %51 = vector.broadcast %0 : vector<1x128xf32> to vector<128x128xf32>
      %52 = arith.mulf %50, %51 : vector<128x128xf32>
      %53 = arith.mulf %52, %52 : vector<128x128xf32>
      %cst_36 = arith.constant dense<0.000000e+00> : vector<128xf32>
      %54 = vector.multi_reduction <add>, %53, %cst_36 [1] : vector<128x128xf32> to vector<128xf32>
      %55 = vector.shape_cast %54 : vector<128xf32> to vector<128x1xf32>
      %c0_37 = arith.constant 0 : index
      %c0_38 = arith.constant 0 : index
      %56 = vector.load %arg11[%c0_37, %c0_38] : memref<128x1xf32, #tpu.memory_space<vmem>>, vector<128x1xf32>
      tpu.vector_store %arg11[%c0_37, %c0_38], %55 {strides = array<i32>} : memref<128x1xf32, #tpu.memory_space<vmem>>, vector<128x1xf32>,
      %c0_39 = arith.constant 0 : index
      %c0_40 = arith.constant 0 : index
      %57 = vector.load %arg7[%c0_39, %c0_40] : memref<1x128xf32, #tpu.memory_space<vmem>>, vector<1x128xf32>
      %58 = vector.broadcast %57 : vector<1x128xf32> to vector<128x128xf32>
      %59 = arith.mulf %50, %58 : vector<128x128xf32>
      %60 = arith.truncf %59 : vector<128x128xf32> to vector<128x128xbf16>
      %c0_41 = arith.constant 0 : index
      %c0_42 = arith.constant 0 : index
      %61 = vector.load %arg10[%c0_41, %c0_42] : memref<128x128xbf16, #tpu.memory_space<vmem>>, vector<128x128xbf16>
      tpu.vector_store %arg10[%c0_41, %c0_42], %60 {strides = array<i32>} : memref<128x128xbf16, #tpu.memory_space<vmem>>, vector<128x128xbf16>,
      %cst_43 = arith.constant 0xFF800000 : f32
      %62 = vector.broadcast %cst_43 : f32 to vector<128x1xf32>
      %c0_44 = arith.constant 0 : index
      %c0_45 = arith.constant 0 : index
      %63 = vector.load %arg12[%c0_44, %c0_45] : memref<128x1xf32, #tpu.memory_space<vmem>>, vector<128x1xf32>
      tpu.vector_store %arg12[%c0_44, %c0_45], %62 {strides = array<i32>} : memref<128x1xf32, #tpu.memory_space<vmem>>, vector<128x1xf32>,
      %cst_46 = arith.constant 0.000000e+00 : f32
      %64 = vector.broadcast %cst_46 : f32 to vector<128x1xf32>
      %c0_47 = arith.constant 0 : index
      %c0_48 = arith.constant 0 : index
      %65 = vector.load %arg13[%c0_47, %c0_48] : memref<128x1xf32, #tpu.memory_space<vmem>>, vector<128x1xf32>
      tpu.vector_store %arg13[%c0_47, %c0_48], %64 {strides = array<i32>} : memref<128x1xf32, #tpu.memory_space<vmem>>, vector<128x1xf32>,
      %cst_49 = arith.constant 0.000000e+00 : f32
      %66 = vector.broadcast %cst_49 : f32 to vector<128x128xf32>
      %c0_50 = arith.constant 0 : index
      %c0_51 = arith.constant 0 : index
      %67 = vector.load %arg14[%c0_50, %c0_51] : memref<128x128xf32, #tpu.memory_space<vmem>>, vector<128x128xf32>
      tpu.vector_store %arg14[%c0_50, %c0_51], %66 {strides = array<i32>} : memref<128x128xf32, #tpu.memory_space<vmem>>, vector<128x128xf32>,
    } else {
    }
    %c0_2 = arith.constant 0 : index
    %c0_3 = arith.constant 0 : index
    %c0_4 = arith.constant 0 : index
    %c0_5 = arith.constant 0 : index
    %4 = vector.load %arg5[%c0_2, %c0_3, %c0_4, %c0_5] : memref<1x1x128x128xbf16, #tpu.memory_space<vmem>>, vector<1x1x128x128xbf16>
    %5 = vector.shape_cast %4 : vector<1x1x128x128xbf16> to vector<128x128xbf16>
    %c0_6 = arith.constant 0 : index
    %c0_7 = arith.constant 0 : index
    %c0_8 = arith.constant 0 : index
    %c0_9 = arith.constant 0 : index
    %6 = vector.load %arg6[%c0_6, %c0_7, %c0_8, %c0_9] : memref<1x1x128x128xbf16, #tpu.memory_space<vmem>>, vector<1x1x128x128xbf16>
    %7 = vector.shape_cast %6 : vector<1x1x128x128xbf16> to vector<128x128xbf16>
    %8 = arith.extf %5 : vector<128x128xbf16> to vector<128x128xf32>
    %9 = vector.broadcast %0 : vector<1x128xf32> to vector<128x128xf32>
    %10 = arith.mulf %8, %9 : vector<128x128xf32>
    %11 = arith.mulf %10, %10 : vector<128x128xf32>
    %cst = arith.constant dense<0.000000e+00> : vector<128xf32>
    %12 = vector.multi_reduction <add>, %11, %cst [1] : vector<128x128xf32> to vector<128xf32>
    %13 = vector.shape_cast %12 : vector<128xf32> to vector<128x1xf32>
    %c0_10 = arith.constant 0 : index
    %c0_11 = arith.constant 0 : index
    %14 = vector.load %arg10[%c0_10, %c0_11] : memref<128x128xbf16, #tpu.memory_space<vmem>>, vector<128x128xbf16>
    %cst_12 = arith.constant dense<0.000000e+00> : vector<128x128xf32>
    %15 = tpu.matmul %14, %5, %cst_12 {dimension_numbers = #tpu.dot_dimension_numbers<[1], [1], [0], [0], [0, 0, 1, 0], [], []>} : vector<128x128xbf16>, vector<128x128xbf16>, vector<128x128xf32> -> vector<128x128xf32>
    %16 = tpu.transpose %13, [1, 0] : vector<128x1xf32> -> vector<1x128xf32>
    %17 = vector.broadcast %16 : vector<1x128xf32> to vector<128x128xf32>
    %18 = arith.subf %15, %17 : vector<128x128xf32>
    %c0_13 = arith.constant 0 : index
    %c0_14 = arith.constant 0 : index
    %19 = vector.load %arg11[%c0_13, %c0_14] : memref<128x1xf32, #tpu.memory_space<vmem>>, vector<128x1xf32>
    %20 = vector.broadcast %19 : vector<128x1xf32> to vector<128x128xf32>
    %21 = arith.subf %18, %20 : vector<128x128xf32>
    %c0_15 = arith.constant 0 : index
    %c0_16 = arith.constant 0 : index
    %22 = vector.load %arg12[%c0_15, %c0_16] : memref<128x1xf32, #tpu.memory_space<vmem>>, vector<128x1xf32>
    %cst_17 = arith.constant dense<0xFF800000> : vector<128xf32>
    %23 = vector.multi_reduction <maximumf>, %21, %cst_17 [1] : vector<128x128xf32> to vector<128xf32>
    %24 = vector.shape_cast %23 : vector<128xf32> to vector<128x1xf32>
    %25 = arith.maximumf %22, %24 : vector<128x1xf32>
    %26 = arith.subf %22, %25 : vector<128x1xf32>
    %27 = math.exp %26 : vector<128x1xf32>
    %28 = vector.broadcast %25 : vector<128x1xf32> to vector<128x128xf32>
    %29 = arith.subf %21, %28 : vector<128x128xf32>
    %30 = math.exp %29 : vector<128x128xf32>
    %c0_18 = arith.constant 0 : index
    %c0_19 = arith.constant 0 : index
    %31 = vector.load %arg13[%c0_18, %c0_19] : memref<128x1xf32, #tpu.memory_space<vmem>>, vector<128x1xf32>
    %32 = arith.mulf %27, %31 : vector<128x1xf32>
    %cst_20 = arith.constant dense<0.000000e+00> : vector<128xf32>
    %33 = vector.multi_reduction <add>, %30, %cst_20 [1] : vector<128x128xf32> to vector<128xf32>
    %34 = vector.shape_cast %33 : vector<128xf32> to vector<128x1xf32>
    %35 = arith.addf %32, %34 : vector<128x1xf32>
    %c0_21 = arith.constant 0 : index
    %c0_22 = arith.constant 0 : index
    %36 = vector.load %arg13[%c0_21, %c0_22] : memref<128x1xf32, #tpu.memory_space<vmem>>, vector<128x1xf32>
    tpu.vector_store %arg13[%c0_21, %c0_22], %35 {strides = array<i32>} : memref<128x1xf32, #tpu.memory_space<vmem>>, vector<128x1xf32>,
    %c0_23 = arith.constant 0 : index
    %c0_24 = arith.constant 0 : index
    %37 = vector.load %arg14[%c0_23, %c0_24] : memref<128x128xf32, #tpu.memory_space<vmem>>, vector<128x128xf32>
    %38 = vector.broadcast %27 : vector<128x1xf32> to vector<128x128xf32>
    %39 = arith.mulf %38, %37 : vector<128x128xf32>
    %40 = arith.truncf %30 : vector<128x128xf32> to vector<128x128xbf16>
    %cst_25 = arith.constant dense<0.000000e+00> : vector<128x128xf32>
    %41 = tpu.matmul %40, %7, %cst_25 {dimension_numbers = #tpu.dot_dimension_numbers<[1], [0], [0], [1], [0, 0, 1, 1], [], []>} : vector<128x128xbf16>, vector<128x128xbf16>, vector<128x128xf32> -> vector<128x128xf32>
    %42 = arith.addf %39, %41 : vector<128x128xf32>
    %c0_26 = arith.constant 0 : index
    %c0_27 = arith.constant 0 : index
    %43 = vector.load %arg14[%c0_26, %c0_27] : memref<128x128xf32, #tpu.memory_space<vmem>>, vector<128x128xf32>
    tpu.vector_store %arg14[%c0_26, %c0_27], %42 {strides = array<i32>} : memref<128x128xf32, #tpu.memory_space<vmem>>, vector<128x128xf32>,
    %c0_28 = arith.constant 0 : index
    %c0_29 = arith.constant 0 : index
    %44 = vector.load %arg12[%c0_28, %c0_29] : memref<128x1xf32, #tpu.memory_space<vmem>>, vector<128x1xf32>
    tpu.vector_store %arg12[%c0_28, %c0_29], %25 {strides = array<i32>} : memref<128x1xf32, #tpu.memory_space<vmem>>, vector<128x1xf32>,
    %c0_i32_30 = arith.constant 0 : i32
    %45 = arith.cmpi eq, %arg3, %c0_i32_30 : i32
    %46 = arith.extui %45 : i1 to i32
    %c0_i32_31 = arith.constant 0 : i32
    %47 = arith.cmpi ne, %46, %c0_i32_31 : i32
    scf.if %47 {
      %c0_32 = arith.constant 0 : index
      %c0_33 = arith.constant 0 : index
      %48 = vector.load %arg14[%c0_32, %c0_33] : memref<128x128xf32, #tpu.memory_space<vmem>>, vector<128x128xf32>
      %c0_34 = arith.constant 0 : index
      %c0_35 = arith.constant 0 : index
      %49 = vector.load %arg13[%c0_34, %c0_35] : memref<128x1xf32, #tpu.memory_space<vmem>>, vector<128x1xf32>
      %50 = tpu.reciprocal %49 : vector<128x1xf32> -> vector<128x1xf32>
      %51 = vector.broadcast %50 : vector<128x1xf32> to vector<128x128xf32>
      %52 = arith.mulf %48, %51 : vector<128x128xf32>
      %53 = arith.truncf %52 : vector<128x128xf32> to vector<128x128xbf16>
      %c0_36 = arith.constant 0 : index
      %c0_37 = arith.constant 0 : index
      %c0_38 = arith.constant 0 : index
      %54 = vector.load %arg9[%c0_36, %c0_37, %c0_38] : memref<1x128x128xbf16, #tpu.memory_space<vmem>>, vector<1x128x128xbf16>
      %55 = vector.shape_cast %54 : vector<1x128x128xbf16> to vector<128x128xbf16>
      %56 = vector.shape_cast %53 : vector<128x128xbf16> to vector<1x128x128xbf16>
      tpu.vector_store %arg9[%c0_36, %c0_37, %c0_38], %56 {strides = array<i32>} : memref<1x128x128xbf16, #tpu.memory_space<vmem>>, vector<1x128x128xbf16>,
    } else {
    }
    return
  }
  func.func @transform_0(%arg0: i32, %arg1: i32, %arg2: i32, %arg3: i32) -> (i32, i32, i32, i32) {
    %c0_i32 = arith.constant 0 : i32
    %c0_i32_0 = arith.constant 0 : i32
    return %arg1, %arg0, %arg2, %c0_i32 : i32, i32, i32, i32
  }
  func.func @transform_1(%arg0: i32, %arg1: i32, %arg2: i32, %arg3: i32) -> (i32, i32, i32, i32) {
    %c2_i32 = arith.constant 2 : i32
    %0 = arith.addi %c2_i32, %arg1 : i32
    %c0_i32 = arith.constant 0 : i32
    %c0_i32_0 = arith.constant 0 : i32
    return %0, %arg0, %arg3, %c0_i32 : i32, i32, i32, i32
  }
  func.func @transform_2(%arg0: i32, %arg1: i32, %arg2: i32, %arg3: i32) -> (i32, i32, i32, i32) {
    %c4_i32 = arith.constant 4 : i32
    %0 = arith.addi %c4_i32, %arg1 : i32
    %c0_i32 = arith.constant 0 : i32
    %c0_i32_0 = arith.constant 0 : i32
    return %0, %arg0, %arg3, %c0_i32 : i32, i32, i32, i32
  }
  func.func @transform_3(%arg0: i32, %arg1: i32, %arg2: i32, %arg3: i32) -> (i32, i32) {
    %c0_i32 = arith.constant 0 : i32
    %c0_i32_0 = arith.constant 0 : i32
    %c0_i32_1 = arith.constant 0 : i32
    return %c0_i32, %c0_i32_0 : i32, i32
  }
  func.func @transform_4(%arg0: i32, %arg1: i32, %arg2: i32, %arg3: i32) -> (i32, i32) {
    %c0_i32 = arith.constant 0 : i32
    %c0_i32_0 = arith.constant 0 : i32
    %c0_i32_1 = arith.constant 0 : i32
    return %c0_i32, %c0_i32_0 : i32, i32
  }
  func.func @transform_5(%arg0: i32, %arg1: i32, %arg2: i32, %arg3: i32) -> (i32, i32, i32) {
    %c0_i32 = arith.constant 0 : i32
    return %arg0, %arg2, %arg1 : i32, i32, i32
  }
}

module attributes {stable_mosaic.version = 11 : i64} {
  func.func @_out_proj_kernel(%arg0: i32, %arg1: memref<128x256xbf16, #tpu.memory_space<vmem>>, %arg2: memref<128x128xf32, #tpu.memory_space<vmem>>, %arg3: memref<256x128xbf16, #tpu.memory_space<vmem>>, %arg4: memref<1x128xf32, #tpu.memory_space<vmem>>, %arg5: memref<128x128xf32, #tpu.memory_space<vmem>>) attributes {dimension_semantics = [#tpu.dimension_semantics<parallel>], iteration_bounds = array<i64: 2>, scalar_prefetch = 0 : i64, scratch_operands = 0 : i64, tpu.core_type = #tpu.core_type<tc>, window_params = [{transform_indices = @transform_0, window_bounds = array<i64: 128, 256>}, {transform_indices = @transform_1, window_bounds = array<i64: 128, 128>}, {pipeline_mode = #tpu.pipeline_mode<synchronous>, transform_indices = @transform_2, window_bounds = array<i64: 256, 128>}, {pipeline_mode = #tpu.pipeline_mode<synchronous>, transform_indices = @transform_3, window_bounds = array<i64: 1, 128>}, {transform_indices = @transform_4, window_bounds = array<i64: 128, 128>}]} {
    %c0 = arith.constant 0 : index
    %c0_0 = arith.constant 0 : index
    %0 = vector.load %arg1[%c0, %c0_0] : memref<128x256xbf16, #tpu.memory_space<vmem>>, vector<128x256xbf16>
    %c0_1 = arith.constant 0 : index
    %c0_2 = arith.constant 0 : index
    %1 = vector.load %arg3[%c0_1, %c0_2] : memref<256x128xbf16, #tpu.memory_space<vmem>>, vector<256x128xbf16>
    %cst = arith.constant dense<0.000000e+00> : vector<128x128xf32>
    %2 = tpu.matmul %0, %1, %cst {dimension_numbers = #tpu.dot_dimension_numbers<[1], [0], [0], [1], [0, 0, 1, 1], [], []>} : vector<128x256xbf16>, vector<256x128xbf16>, vector<128x128xf32> -> vector<128x128xf32>
    %c0_3 = arith.constant 0 : index
    %c0_4 = arith.constant 0 : index
    %3 = vector.load %arg4[%c0_3, %c0_4] : memref<1x128xf32, #tpu.memory_space<vmem>>, vector<1x128xf32>
    %4 = vector.broadcast %3 : vector<1x128xf32> to vector<128x128xf32>
    %5 = arith.addf %2, %4 : vector<128x128xf32>
    %c0_5 = arith.constant 0 : index
    %c0_6 = arith.constant 0 : index
    %6 = vector.load %arg2[%c0_5, %c0_6] : memref<128x128xf32, #tpu.memory_space<vmem>>, vector<128x128xf32>
    %7 = arith.addf %5, %6 : vector<128x128xf32>
    %c0_7 = arith.constant 0 : index
    %c0_8 = arith.constant 0 : index
    %8 = vector.load %arg5[%c0_7, %c0_8] : memref<128x128xf32, #tpu.memory_space<vmem>>, vector<128x128xf32>
    tpu.vector_store %arg5[%c0_7, %c0_8], %7 {strides = array<i32>} : memref<128x128xf32, #tpu.memory_space<vmem>>, vector<128x128xf32>,
    return
  }
  func.func @transform_0(%arg0: i32) -> (i32, i32) {
    %c0_i32 = arith.constant 0 : i32
    %c0_i32_0 = arith.constant 0 : i32
    return %arg0, %c0_i32 : i32, i32
  }
  func.func @transform_1(%arg0: i32) -> (i32, i32) {
    %c0_i32 = arith.constant 0 : i32
    %c0_i32_0 = arith.constant 0 : i32
    return %arg0, %c0_i32 : i32, i32
  }
  func.func @transform_2(%arg0: i32) -> (i32, i32) {
    %c0_i32 = arith.constant 0 : i32
    %c0_i32_0 = arith.constant 0 : i32
    %c0_i32_1 = arith.constant 0 : i32
    return %c0_i32, %c0_i32_0 : i32, i32
  }
  func.func @transform_3(%arg0: i32) -> (i32, i32) {
    %c0_i32 = arith.constant 0 : i32
    %c0_i32_0 = arith.constant 0 : i32
    %c0_i32_1 = arith.constant 0 : i32
    return %c0_i32, %c0_i32_0 : i32, i32
  }
  func.func @transform_4(%arg0: i32) -> (i32, i32) {
    %c0_i32 = arith.constant 0 : i32
    %c0_i32_0 = arith.constant 0 : i32
    return %arg0, %c0_i32 : i32, i32
  }
}

</mosaic_0001>

<llo_original>
// kernel: mul.15
$region0: #{mul.15}
  %s0 = inlined_call_operand.vmem [shape: f32[8,16], index: 0, kind: input, shape index: {}]
  %s1 = inlined_call_operand.vmem [shape: f32[128], index: 1, kind: output, shape index: {}]
  $region1: #{mul.15} parent=0
    #allocation0 [shape = 'u8[4096]{0}', space=vmem, size = 0x1000, scoped, tag = 'scoped mem for output reshape']
    %v2 = vld [vmem:[%s0] sm:$0x1]
    %vm3 = vcmask 130048
    %4 = vst.msk [vmem:[#allocation0] sm:$0x1] %vm3, %v2
    %s5 = scalar_lea.vmem %s0, 7
    %v6 = vld [vmem:[%s5] sm:$0x1]
    %7 = vrot.lane.b32.xlu0 %v6, 112
    %v8 = vpop.permute.xlu0 %7
    %vm9 = vcmask 1048448
    %10 = vst.msk [vmem:[#allocation0] sm:$0x1] %vm9, %v8
    %s11 = scalar_lea.vmem %s0, 6
    %v12 = vld [vmem:[%s11] sm:$0x1]
    %13 = vrot.lane.b32.xlu0 %v12, 96
    %v14 = vpop.permute.xlu0 %13
    %vm15 = vcmask 917248
    %16 = vst.msk [vmem:[#allocation0] sm:$0x1] %vm15, %v14
    %s17 = scalar_lea.vmem %s0, 5
    %v18 = vld [vmem:[%s17] sm:$0x1]
    %19 = vrot.lane.b32.xlu0 %v18, 80
    %v20 = vpop.permute.xlu0 %19
    %vm21 = vcmask 786048
    %22 = vst.msk [vmem:[#allocation0] sm:$0x1] %vm21, %v20
    %s23 = scalar_lea.vmem %s0, 4
    %v24 = vld [vmem:[%s23] sm:$0x1]
    %25 = vrot.lane.b32.xlu0 %v24, 64
    %v26 = vpop.permute.xlu0 %25
    %vm27 = vcmask 654848
    %28 = vst.msk [vmem:[#allocation0] sm:$0x1] %vm27, %v26
    %s29 = scalar_lea.vmem %s0, 3
    %v30 = vld [vmem:[%s29] sm:$0x1]
    %31 = vrot.lane.b32.xlu0 %v30, 48
    %v32 = vpop.permute.xlu0 %31
    %vm33 = vcmask 523648
    %34 = vst.msk [vmem:[#allocation0] sm:$0x1] %vm33, %v32
    %s35 = scalar_lea.vmem %s0, 2
    %v36 = vld [vmem:[%s35] sm:$0x1]
    %37 = vrot.lane.b32.xlu0 %v36, 32
    %v38 = vpop.permute.xlu0 %37
    %vm39 = vcmask 392448
    %40 = vst.msk [vmem:[#allocation0] sm:$0x1] %vm39, %v38
    %s41 = scalar_lea.vmem %s0, 1
    %v42 = vld [vmem:[%s41] sm:$0x1]
    %43 = vrot.lane.b32.xlu0 %v42, 16
    %v44 = vpop.permute.xlu0 %43
    %vm45 = vcmask 261248
    %46 = vst.msk [vmem:[#allocation0] sm:$0x1] %vm45, %v44
    %s48 = ssub.s32 2, 1
    %v49 = vld [vmem:[#allocation0] sm:%s48]
    %s51 = ssub.s32 2, 1
    %52 = vst [vmem:[%s1] sm:%s51] %v49

// kernel: generator_self_attention.4
$region0: #{generator_self_attention.4}
  #allocation0 [shape = 'u32[]', space=smem, size = 0x4, offset = 0x4, fixed_abs, tag = 'smem constant byte address 0x4 - core index']
  #allocation1 [shape = 'u32[72,128]{1,0:T(1,128)}', space=vmem, size = 0x9000, scoped, tag = 'internal scratch']
  #allocation2 [shape = 'bf16[128,128]{1,0:T(8,128)(2,1)}', space=vmem, size = 0x8000, scoped, tag = 'scratch operand']
  #allocation3 [shape = 'f32[128,1]{1,0:T(8,128)}', space=vmem, size = 0x10000, scoped, tag = 'scratch operand']
  #allocation4 [shape = 'f32[128,1]{1,0:T(8,128)}', space=vmem, size = 0x10000, scoped, tag = 'scratch operand']
  #allocation5 [shape = 'f32[128,1]{1,0:T(8,128)}', space=vmem, size = 0x10000, scoped, tag = 'scratch operand']
  #allocation6 [shape = 'f32[128,128]{1,0:T(8,128)}', space=vmem, size = 0x10000, scoped, tag = 'scratch operand']
  %s0 = inlined_call_operand.vmem [shape: bf16[6,2,128,128], index: 0, kind: input, shape index: {}, may-alias: {0,1,2}]
  %s1 = inlined_call_operand.vmem [shape: bf16[6,2,128,128], index: 1, kind: input, shape index: {}, may-alias: {0,1,2}]
  %s2 = inlined_call_operand.vmem [shape: bf16[6,2,128,128], index: 2, kind: input, shape index: {}, may-alias: {0,1,2}]
  %s3 = inlined_call_operand.vmem [shape: f32[1,128], index: 3, kind: input, shape index: {}]
  %s4 = inlined_call_operand.vmem [shape: f32[1,128], index: 4, kind: input, shape index: {}]
  %s5 = inlined_call_operand.vmem [shape: bf16[2,128,256], index: 5, kind: output, shape index: {}]
  %s6 = sld [smem:[#allocation0]]
  $region98: #{generator_self_attention.4} parent=0
    _
  %s8 = ssub.s32 1, %s6
  %s9 = scalar_select 0, %s8, %s6
  $region1: #{generator_self_attention.4} parent=0
    #allocation7 [shape = 'u8[65536]{0}', space=vmem, size = 0x10000, scoped, tag = 'output window, operand 0']
    loop: start=0, step=1, limit=6
    $region2: #{generator_self_attention.4} parent=1 // loop_pre_header
      _
    $region3: #{generator_self_attention.4} parent=1 // loop_header
      %s11 = sphi 0, %s15
      %p12 = scmp.ge.s32.totalorder %s11, 6
      %s18 = sphi 0, %s44
      %s19 = sphi 0, %s40
      %s20 = sphi 0, %s36
      %s21 = sphi 0, %s32
      %s22 = sphi 0, %s18
      %s23 = sphi 0, %s19
      %s24 = sphi 0, %s20
      %s25 = sphi 0, %s21
      %s26 = sphi 0, %s22
      %s27 = sphi 0, %s23
      %s28 = sphi 0, %s24
      %s29 = sphi 0, %s25
      %s51 = sphi 0, %s53
      %s54 = sphi 0, %s51
      %s55 = sphi 0, %s54
      %s71 = sphi 0, %s55
      %s83 = sphi 0, %s85
      %s86 = sphi 0, %s83
      %s87 = sphi 0, %s86
      %s103 = sphi 0, %s87
      %s115 = sphi 0, %s117
      %s118 = sphi 0, %s115
      %s119 = sphi 0, %s118
      %s135 = sphi 0, %s119
      %s139 = sphi 0, %s139
      %s141 = sphi 0, %s139
      %s142 = sphi 0, %s141
      %s156 = sphi 0, %s142
      %s160 = sphi 0, %s160
      %s162 = sphi 0, %s160
      %s163 = sphi 0, %s162
      %s177 = sphi 0, %s163
      %s187 = sphi 0, %s189
      %s190 = sphi 0, %s187
      %s191 = sphi 0, %s190
      %s207 = sphi 0, %s191
    $region4: #{generator_self_attention.4} parent=1 // loop_header_branch
      %14 = sbr.rel (%p12) target = $region8
    $region5: #{generator_self_attention.4} parent=1 // loop_body
      %s16 = ssub.s32 %s11, 1
      %s17 = ssub.s32 %s11, 2
      %s30 = sadd.s32 1, %s21
      %p31 = scmp.ge.s32.totalorder %s30, 1
      %s32 = scalar_select %p31, 0, %s30
      %s33 = sadd.s32 1, %s20
      %s34 = scalar_select %p31, %s33, %s20
      %p35 = scmp.ge.s32.totalorder %s34, 1
      %s36 = scalar_select %p35, 0, %s34
      %s37 = sadd.s32 1, %s19
      %s38 = scalar_select %p35, %s37, %s19
      %p39 = scmp.ge.s32.totalorder %s38, 2
      %s40 = scalar_select %p39, 0, %s38
      %s41 = sadd.s32 1, %s18
      %s42 = scalar_select %p39, %s41, %s18
      %p43 = scmp.ge.s32.totalorder %s42, 2
      %s44 = scalar_select %p43, 0, %s42
      %s45 = ssub.s32 %s19, %s40
      %s46 = ssub.s32 %s18, %s44
      %s47 = sor.u32 %s45, %s46
      %s48 = ssub.s32 %s20, %s36
      %s49 = sor.u32 %s47, %s48
      %p50 = scmp.eq.s32.totalorder %s49, 0
      %s52 = sadd.s32 %s51, 1
      %s53 = scalar_select %p50, %s51, %s52
      %p56 = pneg %p50
      %p57 = scmp.eq.s32.totalorder %s11, 3
      %p58 = por %p56, %p57
      %p59 = scmp.ne.s32.totalorder %s51, %s54
      %p60 = scmp.eq.s32.totalorder %s11, 0
      %p61 = por %p59, %p60
      %p62 = scmp.ne.s32.totalorder %s51, %s54
      %p63 = scmp.eq.s32.totalorder %s16, 3
      %p64 = por %p62, %p63
      %p65 = scmp.ne.s32.totalorder %s54, %s55
      %p66 = scmp.eq.s32.totalorder %s16, 0
      %p67 = por %p65, %p66
      %p68 = scmp.ne.s32.totalorder %s54, %s55
      %p69 = scmp.eq.s32.totalorder %s17, 3
      %p70 = por %p68, %p69
      %p72 = scmp.ne.s32.totalorder %s55, %s71
      %p73 = scmp.eq.s32.totalorder %s17, 0
      %p74 = por %p72, %p73
      %s75 = sadd.s32 %s19, 2
      %s76 = sadd.s32 %s40, 2
      %s77 = ssub.s32 %s75, %s76
      %s78 = ssub.s32 %s18, %s44
      %s79 = sor.u32 %s77, %s78
      %s80 = ssub.s32 %s21, %s32
      %s81 = sor.u32 %s79, %s80
      %p82 = scmp.eq.s32.totalorder %s81, 0
      %s84 = sadd.s32 %s83, 1
      %s85 = scalar_select %p82, %s83, %s84
      %p88 = pneg %p82
      %p89 = scmp.eq.s32.totalorder %s11, 3
      %p90 = por %p88, %p89
      %p91 = scmp.ne.s32.totalorder %s83, %s86
      %p92 = scmp.eq.s32.totalorder %s11, 0
      %p93 = por %p91, %p92
      %p94 = scmp.ne.s32.totalorder %s83, %s86
      %p95 = scmp.eq.s32.totalorder %s16, 3
      %p96 = por %p94, %p95
      %p97 = scmp.ne.s32.totalorder %s86, %s87
      %p98 = scmp.eq.s32.totalorder %s16, 0
      %p99 = por %p97, %p98
      %p100 = scmp.ne.s32.totalorder %s86, %s87
      %p101 = scmp.eq.s32.totalorder %s17, 3
      %p102 = por %p100, %p101
      %p104 = scmp.ne.s32.totalorder %s87, %s103
      %p105 = scmp.eq.s32.totalorder %s17, 0
      %p106 = por %p104, %p105
      %s107 = sadd.s32 %s19, 4
      %s108 = sadd.s32 %s40, 4
      %s109 = ssub.s32 %s107, %s108
      %s110 = ssub.s32 %s18, %s44
      %s111 = sor.u32 %s109, %s110
      %s112 = ssub.s32 %s21, %s32
      %s113 = sor.u32 %s111, %s112
      %p114 = scmp.eq.s32.totalorder %s113, 0
      %s116 = sadd.s32 %s115, 1
      %s117 = scalar_select %p114, %s115, %s116
      %p120 = pneg %p114
      %p121 = scmp.eq.s32.totalorder %s11, 3
      %p122 = por %p120, %p121
      %p123 = scmp.ne.s32.totalorder %s115, %s118
      %p124 = scmp.eq.s32.totalorder %s11, 0
      %p125 = por %p123, %p124
      %p126 = scmp.ne.s32.totalorder %s115, %s118
      %p127 = scmp.eq.s32.totalorder %s16, 3
      %p128 = por %p126, %p127
      %p129 = scmp.ne.s32.totalorder %s118, %s119
      %p130 = scmp.eq.s32.totalorder %s16, 0
      %p131 = por %p129, %p130
      %p132 = scmp.ne.s32.totalorder %s118, %s119
      %p133 = scmp.eq.s32.totalorder %s17, 3
      %p134 = por %p132, %p133
      %p136 = scmp.ne.s32.totalorder %s119, %s135
      %p137 = scmp.eq.s32.totalorder %s17, 0
      %p138 = por %p136, %p137
      %s140 = sadd.s32 %s139, 1
      %p143 = scmp.eq.s32.totalorder %s11, 3
      %p144 = scmp.ne.s32.totalorder %s139, %s141
      %p145 = scmp.eq.s32.totalorder %s11, 0
      %p146 = por %p144, %p145
      %p147 = scmp.ne.s32.totalorder %s139, %s141
      %p148 = scmp.eq.s32.totalorder %s16, 3
      %p149 = por %p147, %p148
      %p150 = scmp.ne.s32.totalorder %s141, %s142
      %p151 = scmp.eq.s32.totalorder %s16, 0
      %p152 = por %p150, %p151
      %p153 = scmp.ne.s32.totalorder %s141, %s142
      %p154 = scmp.eq.s32.totalorder %s17, 3
      %p155 = por %p153, %p154
      %p157 = scmp.ne.s32.totalorder %s142, %s156
      %p158 = scmp.eq.s32.totalorder %s17, 0
      %p159 = por %p157, %p158
      %s161 = sadd.s32 %s160, 1
      %p164 = scmp.eq.s32.totalorder %s11, 3
      %p165 = scmp.ne.s32.totalorder %s160, %s162
      %p166 = scmp.eq.s32.totalorder %s11, 0
      %p167 = por %p165, %p166
      %p168 = scmp.ne.s32.totalorder %s160, %s162
      %p169 = scmp.eq.s32.totalorder %s16, 3
      %p170 = por %p168, %p169
      %p171 = scmp.ne.s32.totalorder %s162, %s163
      %p172 = scmp.eq.s32.totalorder %s16, 0
      %p173 = por %p171, %p172
      %p174 = scmp.ne.s32.totalorder %s162, %s163
      %p175 = scmp.eq.s32.totalorder %s17, 3
      %p176 = por %p174, %p175
      %p178 = scmp.ne.s32.totalorder %s163, %s177
      %p179 = scmp.eq.s32.totalorder %s17, 0
      %p180 = por %p178, %p179
      %s181 = ssub.s32 %s18, %s44
      %s182 = ssub.s32 %s20, %s36
      %s183 = sor.u32 %s181, %s182
      %s184 = ssub.s32 %s19, %s40
      %s185 = sor.u32 %s183, %s184
      %p186 = scmp.eq.s32.totalorder %s185, 0
      %s188 = sadd.s32 %s187, 1
      %s189 = scalar_select %p186, %s187, %s188
      %p192 = pneg %p186
      %p193 = scmp.eq.s32.totalorder %s11, 3
      %p194 = por %p192, %p193
      %p195 = scmp.ne.s32.totalorder %s187, %s190
      %p196 = scmp.eq.s32.totalorder %s11, 0
      %p197 = por %p195, %p196
      %p198 = scmp.ne.s32.totalorder %s187, %s190
      %p199 = scmp.eq.s32.totalorder %s16, 3
      %p200 = por %p198, %p199
      %p201 = scmp.ne.s32.totalorder %s190, %s191
      %p202 = scmp.eq.s32.totalorder %s16, 0
      %p203 = por %p201, %p202
      %p204 = scmp.ne.s32.totalorder %s190, %s191
      %p205 = scmp.eq.s32.totalorder %s17, 3
      %p206 = por %p204, %p205
      %p208 = scmp.ne.s32.totalorder %s191, %s207
      %p209 = scmp.eq.s32.totalorder %s17, 0
      %p210 = por %p208, %p209
      %p211 = scmp.le.s32.totalorder 1, %s11
      %p212 = scmp.lt.s32.totalorder %s11, 5
      %p213 = pnand %p211, %p212
      %p214 = pneg %p213
      // Predicated region
      $region9: #{generator_self_attention.4} parent=5 // pred_check
        _
      $region10: #{generator_self_attention.4} parent=5 // pred_check_branch
        %216 = sbr.rel (%p213) target = $region12
      $region11: #{generator_self_attention.4} parent=5 // pred_region
        %s217 = ssub.s32 %s11, 1
        // Predicated region
        $region13: #{generator_self_attention.4} parent=11 // pred_check
          %p218 = pneg %p152
        $region14: #{generator_self_attention.4} parent=11 // pred_check_branch
          %220 = sbr.rel (%p218) target = $region16
        $region15: #{generator_self_attention.4} parent=11 // pred_region
          _
        $region16: #{generator_self_attention.4} parent=11 // pred_fallthru
          _
        // Predicated region
        $region17: #{generator_self_attention.4} parent=11 // pred_check
          %p221 = pneg %p173
        $region18: #{generator_self_attention.4} parent=11 // pred_check_branch
          %223 = sbr.rel (%p221) target = $region20
        $region19: #{generator_self_attention.4} parent=11 // pred_region
          _
        $region20: #{generator_self_attention.4} parent=11 // pred_fallthru
          _
      $region12: #{generator_self_attention.4} parent=5 // pred_fallthru
        _
      %p224 = scmp.lt.s32.totalorder %s11, 4
      // Predicated region
      $region21: #{generator_self_attention.4} parent=5 // pred_check
        %p225 = pneg %p224
      $region22: #{generator_self_attention.4} parent=5 // pred_check_branch
        %227 = sbr.rel (%p225) target = $region24
      $region23: #{generator_self_attention.4} parent=5 // pred_region
        // Predicated region
        $region25: #{generator_self_attention.4} parent=23 // pred_check
          %p228 = pneg %p61
        $region26: #{generator_self_attention.4} parent=23 // pred_check_branch
          %230 = sbr.rel (%p228) target = $region28
        $region27: #{generator_self_attention.4} parent=23 // pred_region
          %s231 = smul.u32 16, %s20
          %p232 = scmp.lt.s32.totalorder %s19, 5
          %s233 = scalar_select %p232, %s19, 5
          %p234 = scmp.lt.s32.totalorder %s18, 1
          %s235 = scalar_select %p234, %s18, 1
          %p236 = scmp.lt.s32.totalorder %s231, 15
          %s237 = scalar_select %p236, %s231, 15
          %s238 = smul.addr %s235, 16
          %s239 = sadd.s32 %s237, %s238
          %s240 = smul.addr %s233, 32
          %s241 = sadd.s32 %s239, %s240
          %s242 = smul.addr %s241, 4
          %s243 = scalar_lea.vmem %s0, %s242
          %s244 = smul.u32 16, %s20
        $region28: #{generator_self_attention.4} parent=23 // pred_fallthru
          _
        // Predicated region
        $region29: #{generator_self_attention.4} parent=23 // pred_check
          %p245 = pneg %p93
        $region30: #{generator_self_attention.4} parent=23 // pred_check_branch
          %247 = sbr.rel (%p245) target = $region32
        $region31: #{generator_self_attention.4} parent=23 // pred_region
          %s248 = sadd.s32 %s19, 2
          %s249 = smul.u32 16, %s21
          %p250 = scmp.lt.s32.totalorder %s248, 5
          %s251 = scalar_select %p250, %s248, 5
          %p252 = scmp.lt.s32.totalorder %s18, 1
          %s253 = scalar_select %p252, %s18, 1
          %p254 = scmp.lt.s32.totalorder %s249, 15
          %s255 = scalar_select %p254, %s249, 15
          %s256 = smul.addr %s253, 16
          %s257 = sadd.s32 %s255, %s256
          %s258 = smul.addr %s251, 32
          %s259 = sadd.s32 %s257, %s258
          %s260 = smul.addr %s259, 4
          %s261 = scalar_lea.vmem %s1, %s260
          %s262 = sadd.s32 %s19, 2
          %s263 = smul.u32 16, %s21
        $region32: #{generator_self_attention.4} parent=23 // pred_fallthru
          _
        // Predicated region
        $region33: #{generator_self_attention.4} parent=23 // pred_check
          %p264 = pneg %p125
        $region34: #{generator_self_attention.4} parent=23 // pred_check_branch
          %266 = sbr.rel (%p264) target = $region36
        $region35: #{generator_self_attention.4} parent=23 // pred_region
          %s267 = sadd.s32 %s19, 4
          %s268 = smul.u32 16, %s21
          %p269 = scmp.lt.s32.totalorder %s267, 5
          %s270 = scalar_select %p269, %s267, 5
          %p271 = scmp.lt.s32.totalorder %s18, 1
          %s272 = scalar_select %p271, %s18, 1
          %p273 = scmp.lt.s32.totalorder %s268, 15
          %s274 = scalar_select %p273, %s268, 15
          %s275 = smul.addr %s272, 16
          %s276 = sadd.s32 %s274, %s275
          %s277 = smul.addr %s270, 32
          %s278 = sadd.s32 %s276, %s277
          %s279 = smul.addr %s278, 4
          %s280 = scalar_lea.vmem %s2, %s279
          %s281 = sadd.s32 %s19, 4
          %s282 = smul.u32 16, %s21
        $region36: #{generator_self_attention.4} parent=23 // pred_fallthru
          _
      $region24: #{generator_self_attention.4} parent=5 // pred_fallthru
        _
      %p283 = scmp.le.s32.totalorder 1, %s11
      %p284 = scmp.lt.s32.totalorder %s11, 5
      %p285 = pnand %p283, %p284
      %p286 = pneg %p285
      // Predicated region
      $region37: #{generator_self_attention.4} parent=5 // pred_check
        _
      $region38: #{generator_self_attention.4} parent=5 // pred_check_branch
        %288 = sbr.rel (%p285) target = $region40
      $region39: #{generator_self_attention.4} parent=5 // pred_region
        %s289 = ssub.s32 %s11, 1
        %s290 = smul.u32 16, %s24
        %p291 = scmp.lt.s32.totalorder %s23, 5
        %s292 = scalar_select %p291, %s23, 5
        %p293 = scmp.lt.s32.totalorder %s22, 1
        %s294 = scalar_select %p293, %s22, 1
        %p295 = scmp.lt.s32.totalorder %s290, 15
        %s296 = scalar_select %p295, %s290, 15
        %s297 = smul.addr %s294, 16
        %s298 = sadd.s32 %s296, %s297
        %s299 = smul.addr %s292, 32
        %s300 = sadd.s32 %s298, %s299
        %s301 = smul.addr %s300, 4
        %s302 = scalar_lea.vmem %s0, %s301
        %p303 = pneg %p67
        %p304 = pneg %p64
        %s305 = sadd.s32 %s23, 2
        %s306 = smul.u32 16, %s25
        %p307 = scmp.lt.s32.totalorder %s305, 5
        %s308 = scalar_select %p307, %s305, 5
        %p309 = scmp.lt.s32.totalorder %s22, 1
        %s310 = scalar_select %p309, %s22, 1
        %p311 = scmp.lt.s32.totalorder %s306, 15
        %s312 = scalar_select %p311, %s306, 15
        %s313 = smul.addr %s310, 16
        %s314 = sadd.s32 %s312, %s313
        %s315 = smul.addr %s308, 32
        %s316 = sadd.s32 %s314, %s315
        %s317 = smul.addr %s316, 4
        %s318 = scalar_lea.vmem %s1, %s317
        %p319 = pneg %p99
        %p320 = pneg %p96
        %s321 = sadd.s32 %s23, 4
        %s322 = smul.u32 16, %s25
        %p323 = scmp.lt.s32.totalorder %s321, 5
        %s324 = scalar_select %p323, %s321, 5
        %p325 = scmp.lt.s32.totalorder %s22, 1
        %s326 = scalar_select %p325, %s22, 1
        %p327 = scmp.lt.s32.totalorder %s322, 15
        %s328 = scalar_select %p327, %s322, 15
        %s329 = smul.addr %s326, 16
        %s330 = sadd.s32 %s328, %s329
        %s331 = smul.addr %s324, 32
        %s332 = sadd.s32 %s330, %s331
        %s333 = smul.addr %s332, 4
        %s334 = scalar_lea.vmem %s2, %s333
        %p335 = pneg %p131
        %p336 = pneg %p128
        %p337 = pneg %p152
        %p338 = pneg %p149
        %p339 = pneg %p173
        %p340 = pneg %p170
        %p341 = pneg %p203
        %p342 = pneg %p200
        %s343 = sand.u32 %s190, 1
        %s344 = sand.u32 %s190, 1
        %s345 = smul.addr %s344, 64
        %s346 = scalar_lea.vmem [#allocation7], %s345
        %s347 = smul.u32 16, %s24
        %p348 = scmp.lt.s32.totalorder %s23, 5
        %s349 = scalar_select %p348, %s23, 5
        %p350 = scmp.lt.s32.totalorder %s22, 1
        %s351 = scalar_select %p350, %s22, 1
        %p352 = scmp.lt.s32.totalorder %s347, 15
        %s353 = scalar_select %p352, %s347, 15
        %s354 = smul.addr %s351, 16
        %s355 = sadd.s32 %s353, %s354
        %s356 = smul.addr %s349, 32
        %s357 = sadd.s32 %s355, %s356
        %s358 = smul.addr %s357, 4
        %s359 = scalar_lea.vmem %s0, %s358
        %s360 = smul.u32 16, %s24
        %s361 = sadd.s32 %s23, 2
        %s362 = smul.u32 16, %s25
        %p363 = scmp.lt.s32.totalorder %s361, 5
        %s364 = scalar_select %p363, %s361, 5
        %p365 = scmp.lt.s32.totalorder %s22, 1
        %s366 = scalar_select %p365, %s22, 1
        %p367 = scmp.lt.s32.totalorder %s362, 15
        %s368 = scalar_select %p367, %s362, 15
        %s369 = smul.addr %s366, 16
        %s370 = sadd.s32 %s368, %s369
        %s371 = smul.addr %s364, 32
        %s372 = sadd.s32 %s370, %s371
        %s373 = smul.addr %s372, 4
        %s374 = scalar_lea.vmem %s1, %s373
        %s375 = sadd.s32 %s23, 2
        %s376 = smul.u32 16, %s25
        %s377 = sadd.s32 %s23, 4
        %s378 = smul.u32 16, %s25
        %p379 = scmp.lt.s32.totalorder %s377, 5
        %s380 = scalar_select %p379, %s377, 5
        %p381 = scmp.lt.s32.totalorder %s22, 1
        %s382 = scalar_select %p381, %s22, 1
        %p383 = scmp.lt.s32.totalorder %s378, 15
        %s384 = scalar_select %p383, %s378, 15
        %s385 = smul.addr %s382, 16
        %s386 = sadd.s32 %s384, %s385
        %s387 = smul.addr %s380, 32
        %s388 = sadd.s32 %s386, %s387
        %s389 = smul.addr %s388, 4
        %s390 = scalar_lea.vmem %s2, %s389
        %s391 = sadd.s32 %s23, 4
        %s392 = smul.u32 16, %s25
        %s393 = smul.u32 16, %s24
        %v394 = vld [vmem:[%s4] sm:$0x1]
        %p395 = scmp.eq.s32.totalorder %s25, 0
        // Predicated region
        $region41: #{generator_self_attention.4} parent=39 // pred_check
          %p396 = pneg %p395
        $region42: #{generator_self_attention.4} parent=39 // pred_check_branch
          %398 = sbr.rel (%p396) target = $region44
        $region43: #{generator_self_attention.4} parent=39 // pred_region
          %v399 = vld [vmem:[%s359] sm:$0xf]
          %v400 = vld [vmem:[%s359 + $0x4] sm:$0xf]
          %v401 = vld [vmem:[%s359 + $0x8] sm:$0xf]
          %v402 = vld [vmem:[%s359 + $0xc] sm:$0xf]
          %v403 = vld [vmem:[%s359 + $0x10] sm:$0xf]
          %v404 = vld [vmem:[%s359 + $0x14] sm:$0xf]
          %v405 = vld [vmem:[%s359 + $0x18] sm:$0xf]
          %v406 = vld [vmem:[%s359 + $0x1c] sm:$0xf]
          %v407 = vld [vmem:[%s359 + $0x20] sm:$0xf]
          %v408 = vld [vmem:[%s359 + $0x24] sm:$0xf]
          %v409 = vld [vmem:[%s359 + $0x28] sm:$0xf]
          %v410 = vld [vmem:[%s359 + $0x2c] sm:$0xf]
          %v411 = vld [vmem:[%s359 + $0x30] sm:$0xf]
          %v412 = vld [vmem:[%s359 + $0x34] sm:$0xf]
          %v413 = vld [vmem:[%s359 + $0x38] sm:$0xf]
          %v414 = vld [vmem:[%s359 + $0x3c] sm:$0xf]
          %v415 = vunpack.c.l.bf16 %v399
          %v416 = vunpack.c.l.bf16 %v400
          %v417 = vunpack.c.l.bf16 %v401
          %v418 = vunpack.c.l.bf16 %v402
          %v419 = vunpack.c.l.bf16 %v403
          %v420 = vunpack.c.l.bf16 %v404
          %v421 = vunpack.c.l.bf16 %v405
          %v422 = vunpack.c.l.bf16 %v406
          %v423 = vunpack.c.l.bf16 %v407
          %v424 = vunpack.c.l.bf16 %v408
          %v425 = vunpack.c.l.bf16 %v409
          %v426 = vunpack.c.l.bf16 %v410
          %v427 = vunpack.c.l.bf16 %v411
          %v428 = vunpack.c.l.bf16 %v412
          %v429 = vunpack.c.l.bf16 %v413
          %v430 = vunpack.c.l.bf16 %v414
          %v432 = vperm.slane %v394, 0
          %v434 = vmul.f32 %v415, %v432
          %v435 = vmul.f32 %v416, %v432
          %v436 = vmul.f32 %v417, %v432
          %v437 = vmul.f32 %v418, %v432
          %v438 = vmul.f32 %v419, %v432
          %v439 = vmul.f32 %v420, %v432
          %v440 = vmul.f32 %v421, %v432
          %v441 = vmul.f32 %v422, %v432
          %v442 = vmul.f32 %v423, %v432
          %v443 = vmul.f32 %v424, %v432
          %v444 = vmul.f32 %v425, %v432
          %v445 = vmul.f32 %v426, %v432
          %v446 = vmul.f32 %v427, %v432
          %v447 = vmul.f32 %v428, %v432
          %v448 = vmul.f32 %v429, %v432
          %v449 = vmul.f32 %v430, %v432
          %v450 = vmul.f32 %v434, %v434
          %v451 = vmul.f32 %v435, %v435
          %v452 = vmul.f32 %v436, %v436
          %v453 = vmul.f32 %v437, %v437
          %v454 = vmul.f32 %v438, %v438
          %v455 = vmul.f32 %v439, %v439
          %v456 = vmul.f32 %v440, %v440
          %v457 = vmul.f32 %v441, %v441
          %v458 = vmul.f32 %v442, %v442
          %v459 = vmul.f32 %v443, %v443
          %v460 = vmul.f32 %v444, %v444
          %v461 = vmul.f32 %v445, %v445
          %v462 = vmul.f32 %v446, %v446
          %v463 = vmul.f32 %v447, %v447
          %v464 = vmul.f32 %v448, %v448
          %v465 = vmul.f32 %v449, %v449
          %466 = vadd.xlane.f32.xlu0 %v450
          %v467 = vpop.xlane.xlu0 %466
          %468 = vadd.xlane.f32.xlu0 %v451
          %v469 = vpop.xlane.xlu0 %468
          %470 = vadd.xlane.f32.xlu0 %v452
          %v471 = vpop.xlane.xlu0 %470
          %472 = vadd.xlane.f32.xlu0 %v453
          %v473 = vpop.xlane.xlu0 %472
          %474 = vadd.xlane.f32.xlu0 %v454
          %v475 = vpop.xlane.xlu0 %474
          %476 = vadd.xlane.f32.xlu0 %v455
          %v477 = vpop.xlane.xlu0 %476
          %478 = vadd.xlane.f32.xlu0 %v456
          %v479 = vpop.xlane.xlu0 %478
          %480 = vadd.xlane.f32.xlu0 %v457
          %v481 = vpop.xlane.xlu0 %480
          %482 = vadd.xlane.f32.xlu0 %v458
          %v483 = vpop.xlane.xlu0 %482
          %484 = vadd.xlane.f32.xlu0 %v459
          %v485 = vpop.xlane.xlu0 %484
          %486 = vadd.xlane.f32.xlu0 %v460
          %v487 = vpop.xlane.xlu0 %486
          %488 = vadd.xlane.f32.xlu0 %v461
          %v489 = vpop.xlane.xlu0 %488
          %490 = vadd.xlane.f32.xlu0 %v462
          %v491 = vpop.xlane.xlu0 %490
          %492 = vadd.xlane.f32.xlu0 %v463
          %v493 = vpop.xlane.xlu0 %492
          %494 = vadd.xlane.f32.xlu0 %v464
          %v495 = vpop.xlane.xlu0 %494
          %496 = vadd.xlane.f32.xlu0 %v465
          %v497 = vpop.xlane.xlu0 %496
          %vm498 = vcmask 7168
          %499 = vst.msk [vmem:[#allocation3] sm:$0xff] %vm498, %v467
          %500 = vst.msk [vmem:[#allocation3 + $0x8] sm:$0xff] %vm498, %v469
          %501 = vst.msk [vmem:[#allocation3 + $0x10] sm:$0xff] %vm498, %v471
          %502 = vst.msk [vmem:[#allocation3 + $0x18] sm:$0xff] %vm498, %v473
          %503 = vst.msk [vmem:[#allocation3 + $0x20] sm:$0xff] %vm498, %v475
          %504 = vst.msk [vmem:[#allocation3 + $0x28] sm:$0xff] %vm498, %v477
          %505 = vst.msk [vmem:[#allocation3 + $0x30] sm:$0xff] %vm498, %v479
          %506 = vst.msk [vmem:[#allocation3 + $0x38] sm:$0xff] %vm498, %v481
          %507 = vst.msk [vmem:[#allocation3 + $0x40] sm:$0xff] %vm498, %v483
          %508 = vst.msk [vmem:[#allocation3 + $0x48] sm:$0xff] %vm498, %v485
          %509 = vst.msk [vmem:[#allocation3 + $0x50] sm:$0xff] %vm498, %v487
          %510 = vst.msk [vmem:[#allocation3 + $0x58] sm:$0xff] %vm498, %v489
          %511 = vst.msk [vmem:[#allocation3 + $0x60] sm:$0xff] %vm498, %v491
          %512 = vst.msk [vmem:[#allocation3 + $0x68] sm:$0xff] %vm498, %v493
          %513 = vst.msk [vmem:[#allocation3 + $0x70] sm:$0xff] %vm498, %v495
          %514 = vst.msk [vmem:[#allocation3 + $0x78] sm:$0xff] %vm498, %v497
          %v515 = vld [vmem:[%s3] sm:$0x1]
          %v517 = vperm.slane %v515, 0
          %v519 = vmul.f32 %v415, %v517
          %v520 = vmul.f32 %v416, %v517
          %v521 = vmul.f32 %v417, %v517
          %v522 = vmul.f32 %v418, %v517
          %v523 = vmul.f32 %v419, %v517
          %v524 = vmul.f32 %v420, %v517
          %v525 = vmul.f32 %v421, %v517
          %v526 = vmul.f32 %v422, %v517
          %v527 = vmul.f32 %v423, %v517
          %v528 = vmul.f32 %v424, %v517
          %v529 = vmul.f32 %v425, %v517
          %v530 = vmul.f32 %v426, %v517
          %v531 = vmul.f32 %v427, %v517
          %v532 = vmul.f32 %v428, %v517
          %v533 = vmul.f32 %v429, %v517
          %v534 = vmul.f32 %v430, %v517
          %v535 = vpack.c.bf16 %v519, %v519
          %v536 = vpack.c.bf16 %v520, %v520
          %v537 = vpack.c.bf16 %v521, %v521
          %v538 = vpack.c.bf16 %v522, %v522
          %v539 = vpack.c.bf16 %v523, %v523
          %v540 = vpack.c.bf16 %v524, %v524
          %v541 = vpack.c.bf16 %v525, %v525
          %v542 = vpack.c.bf16 %v526, %v526
          %v543 = vpack.c.bf16 %v527, %v527
          %v544 = vpack.c.bf16 %v528, %v528
          %v545 = vpack.c.bf16 %v529, %v529
          %v546 = vpack.c.bf16 %v530, %v530
          %v547 = vpack.c.bf16 %v531, %v531
          %v548 = vpack.c.bf16 %v532, %v532
          %v549 = vpack.c.bf16 %v533, %v533
          %v550 = vpack.c.bf16 %v534, %v534
          %551 = vst [vmem:[#allocation2] sm:$0xf] %v535
          %552 = vst [vmem:[#allocation2 + $0x4] sm:$0xf] %v536
          %553 = vst [vmem:[#allocation2 + $0x8] sm:$0xf] %v537
          %554 = vst [vmem:[#allocation2 + $0xc] sm:$0xf] %v538
          %555 = vst [vmem:[#allocation2 + $0x10] sm:$0xf] %v539
          %556 = vst [vmem:[#allocation2 + $0x14] sm:$0xf] %v540
          %557 = vst [vmem:[#allocation2 + $0x18] sm:$0xf] %v541
          %558 = vst [vmem:[#allocation2 + $0x1c] sm:$0xf] %v542
          %559 = vst [vmem:[#allocation2 + $0x20] sm:$0xf] %v543
          %560 = vst [vmem:[#allocation2 + $0x24] sm:$0xf] %v544
          %561 = vst [vmem:[#allocation2 + $0x28] sm:$0xf] %v545
          %562 = vst [vmem:[#allocation2 + $0x2c] sm:$0xf] %v546
          %563 = vst [vmem:[#allocation2 + $0x30] sm:$0xf] %v547
          %564 = vst [vmem:[#allocation2 + $0x34] sm:$0xf] %v548
          %565 = vst [vmem:[#allocation2 + $0x38] sm:$0xf] %v549
          %566 = vst [vmem:[#allocation2 + $0x3c] sm:$0xf] %v550
          %567 = vst.msk [vmem:[#allocation4] sm:$0xff] %vm498, -inf
          %568 = vst.msk [vmem:[#allocation4 + $0x8] sm:$0xff] %vm498, -inf
          %569 = vst.msk [vmem:[#allocation4 + $0x10] sm:$0xff] %vm498, -inf
          %570 = vst.msk [vmem:[#allocation4 + $0x18] sm:$0xff] %vm498, -inf
          %571 = vst.msk [vmem:[#allocation4 + $0x20] sm:$0xff] %vm498, -inf
          %572 = vst.msk [vmem:[#allocation4 + $0x28] sm:$0xff] %vm498, -inf
          %573 = vst.msk [vmem:[#allocation4 + $0x30] sm:$0xff] %vm498, -inf
          %574 = vst.msk [vmem:[#allocation4 + $0x38] sm:$0xff] %vm498, -inf
          %575 = vst.msk [vmem:[#allocation4 + $0x40] sm:$0xff] %vm498, -inf
          %576 = vst.msk [vmem:[#allocation4 + $0x48] sm:$0xff] %vm498, -inf
          %577 = vst.msk [vmem:[#allocation4 + $0x50] sm:$0xff] %vm498, -inf
          %578 = vst.msk [vmem:[#allocation4 + $0x58] sm:$0xff] %vm498, -inf
          %579 = vst.msk [vmem:[#allocation4 + $0x60] sm:$0xff] %vm498, -inf
          %580 = vst.msk [vmem:[#allocation4 + $0x68] sm:$0xff] %vm498, -inf
          %581 = vst.msk [vmem:[#allocation4 + $0x70] sm:$0xff] %vm498, -inf
          %582 = vst.msk [vmem:[#allocation4 + $0x78] sm:$0xff] %vm498, -inf
          %583 = vst.msk [vmem:[#allocation5] sm:$0xff] %vm498, 0.0
          %584 = vst.msk [vmem:[#allocation5 + $0x8] sm:$0xff] %vm498, 0.0
          %585 = vst.msk [vmem:[#allocation5 + $0x10] sm:$0xff] %vm498, 0.0
          %586 = vst.msk [vmem:[#allocation5 + $0x18] sm:$0xff] %vm498, 0.0
          %587 = vst.msk [vmem:[#allocation5 + $0x20] sm:$0xff] %vm498, 0.0
          %588 = vst.msk [vmem:[#allocation5 + $0x28] sm:$0xff] %vm498, 0.0
          %589 = vst.msk [vmem:[#allocation5 + $0x30] sm:$0xff] %vm498, 0.0
          %590 = vst.msk [vmem:[#allocation5 + $0x38] sm:$0xff] %vm498, 0.0
          %591 = vst.msk [vmem:[#allocation5 + $0x40] sm:$0xff] %vm498, 0.0
          %592 = vst.msk [vmem:[#allocation5 + $0x48] sm:$0xff] %vm498, 0.0
          %593 = vst.msk [vmem:[#allocation5 + $0x50] sm:$0xff] %vm498, 0.0
          %594 = vst.msk [vmem:[#allocation5 + $0x58] sm:$0xff] %vm498, 0.0
          %595 = vst.msk [vmem:[#allocation5 + $0x60] sm:$0xff] %vm498, 0.0
          %596 = vst.msk [vmem:[#allocation5 + $0x68] sm:$0xff] %vm498, 0.0
          %597 = vst.msk [vmem:[#allocation5 + $0x70] sm:$0xff] %vm498, 0.0
          %598 = vst.msk [vmem:[#allocation5 + $0x78] sm:$0xff] %vm498, 0.0
          %599 = vst [vmem:[#allocation6] sm:$0xff] 0.0
          %600 = vst [vmem:[#allocation6 + $0x8] sm:$0xff] 0.0
          %601 = vst [vmem:[#allocation6 + $0x10] sm:$0xff] 0.0
          %602 = vst [vmem:[#allocation6 + $0x18] sm:$0xff] 0.0
          %603 = vst [vmem:[#allocation6 + $0x20] sm:$0xff] 0.0
          %604 = vst [vmem:[#allocation6 + $0x28] sm:$0xff] 0.0
          %605 = vst [vmem:[#allocation6 + $0x30] sm:$0xff] 0.0
          %606 = vst [vmem:[#allocation6 + $0x38] sm:$0xff] 0.0
          %607 = vst [vmem:[#allocation6 + $0x40] sm:$0xff] 0.0
          %608 = vst [vmem:[#allocation6 + $0x48] sm:$0xff] 0.0
          %609 = vst [vmem:[#allocation6 + $0x50] sm:$0xff] 0.0
          %610 = vst [vmem:[#allocation6 + $0x58] sm:$0xff] 0.0
          %611 = vst [vmem:[#allocation6 + $0x60] sm:$0xff] 0.0
          %612 = vst [vmem:[#allocation6 + $0x68] sm:$0xff] 0.0
          %613 = vst [vmem:[#allocation6 + $0x70] sm:$0xff] 0.0
          %614 = vst [vmem:[#allocation6 + $0x78] sm:$0xff] 0.0
        $region44: #{generator_self_attention.4} parent=39 // pred_fallthru
          _
        %v615 = vld [vmem:[%s374] sm:$0xf]
        %v616 = vld [vmem:[%s374 + $0x4] sm:$0xf]
        %v617 = vld [vmem:[%s374 + $0x8] sm:$0xf]
        %v618 = vld [vmem:[%s374 + $0xc] sm:$0xf]
        %v619 = vld [vmem:[%s374 + $0x10] sm:$0xf]
        %v620 = vld [vmem:[%s374 + $0x14] sm:$0xf]
        %v621 = vld [vmem:[%s374 + $0x18] sm:$0xf]
        %v622 = vld [vmem:[%s374 + $0x1c] sm:$0xf]
        %v623 = vld [vmem:[%s374 + $0x20] sm:$0xf]
        %v624 = vld [vmem:[%s374 + $0x24] sm:$0xf]
        %v625 = vld [vmem:[%s374 + $0x28] sm:$0xf]
        %v626 = vld [vmem:[%s374 + $0x2c] sm:$0xf]
        %v627 = vld [vmem:[%s374 + $0x30] sm:$0xf]
        %v628 = vld [vmem:[%s374 + $0x34] sm:$0xf]
        %v629 = vld [vmem:[%s374 + $0x38] sm:$0xf]
        %v630 = vld [vmem:[%s374 + $0x3c] sm:$0xf]
        %v631 = vld [vmem:[%s390] sm:$0xf]
        %v632 = vld [vmem:[%s390 + $0x4] sm:$0xf]
        %v633 = vld [vmem:[%s390 + $0x8] sm:$0xf]
        %v634 = vld [vmem:[%s390 + $0xc] sm:$0xf]
        %v635 = vld [vmem:[%s390 + $0x10] sm:$0xf]
        %v636 = vld [vmem:[%s390 + $0x14] sm:$0xf]
        %v637 = vld [vmem:[%s390 + $0x18] sm:$0xf]
        %v638 = vld [vmem:[%s390 + $0x1c] sm:$0xf]
        %v639 = vld [vmem:[%s390 + $0x20] sm:$0xf]
        %v640 = vld [vmem:[%s390 + $0x24] sm:$0xf]
        %v641 = vld [vmem:[%s390 + $0x28] sm:$0xf]
        %v642 = vld [vmem:[%s390 + $0x2c] sm:$0xf]
        %v643 = vld [vmem:[%s390 + $0x30] sm:$0xf]
        %v644 = vld [vmem:[%s390 + $0x34] sm:$0xf]
        %v645 = vld [vmem:[%s390 + $0x38] sm:$0xf]
        %v646 = vld [vmem:[%s390 + $0x3c] sm:$0xf]
        %v647 = vunpack.c.l.bf16 %v615
        %v648 = vunpack.c.l.bf16 %v616
        %v649 = vunpack.c.l.bf16 %v617
        %v650 = vunpack.c.l.bf16 %v618
        %v651 = vunpack.c.l.bf16 %v619
        %v652 = vunpack.c.l.bf16 %v620
        %v653 = vunpack.c.l.bf16 %v621
        %v654 = vunpack.c.l.bf16 %v622
        %v655 = vunpack.c.l.bf16 %v623
        %v656 = vunpack.c.l.bf16 %v624
        %v657 = vunpack.c.l.bf16 %v625
        %v658 = vunpack.c.l.bf16 %v626
        %v659 = vunpack.c.l.bf16 %v627
        %v660 = vunpack.c.l.bf16 %v628
        %v661 = vunpack.c.l.bf16 %v629
        %v662 = vunpack.c.l.bf16 %v630
        %v664 = vperm.slane %v394, 0
        %v666 = vmul.f32 %v647, %v664
        %v667 = vmul.f32 %v648, %v664
        %v668 = vmul.f32 %v649, %v664
        %v669 = vmul.f32 %v650, %v664
        %v670 = vmul.f32 %v651, %v664
        %v671 = vmul.f32 %v652, %v664
        %v672 = vmul.f32 %v653, %v664
        %v673 = vmul.f32 %v654, %v664
        %v674 = vmul.f32 %v655, %v664
        %v675 = vmul.f32 %v656, %v664
        %v676 = vmul.f32 %v657, %v664
        %v677 = vmul.f32 %v658, %v664
        %v678 = vmul.f32 %v659, %v664
        %v679 = vmul.f32 %v660, %v664
        %v680 = vmul.f32 %v661, %v664
        %v681 = vmul.f32 %v662, %v664
        %v682 = vmul.f32 %v666, %v666
        %v683 = vmul.f32 %v667, %v667
        %v684 = vmul.f32 %v668, %v668
        %v685 = vmul.f32 %v669, %v669
        %v686 = vmul.f32 %v670, %v670
        %v687 = vmul.f32 %v671, %v671
        %v688 = vmul.f32 %v672, %v672
        %v689 = vmul.f32 %v673, %v673
        %v690 = vmul.f32 %v674, %v674
        %v691 = vmul.f32 %v675, %v675
        %v692 = vmul.f32 %v676, %v676
        %v693 = vmul.f32 %v677, %v677
        %v694 = vmul.f32 %v678, %v678
        %v695 = vmul.f32 %v679, %v679
        %v696 = vmul.f32 %v680, %v680
        %v697 = vmul.f32 %v681, %v681
        %698 = vadd.xlane.f32.xlu0 %v682
        %v699 = vpop.xlane.xlu0 %698
        %700 = vadd.xlane.f32.xlu0 %v683
        %v701 = vpop.xlane.xlu0 %700
        %702 = vadd.xlane.f32.xlu0 %v684
        %v703 = vpop.xlane.xlu0 %702
        %704 = vadd.xlane.f32.xlu0 %v685
        %v705 = vpop.xlane.xlu0 %704
        %706 = vadd.xlane.f32.xlu0 %v686
        %v707 = vpop.xlane.xlu0 %706
        %708 = vadd.xlane.f32.xlu0 %v687
        %v709 = vpop.xlane.xlu0 %708
        %710 = vadd.xlane.f32.xlu0 %v688
        %v711 = vpop.xlane.xlu0 %710
        %712 = vadd.xlane.f32.xlu0 %v689
        %v713 = vpop.xlane.xlu0 %712
        %714 = vadd.xlane.f32.xlu0 %v690
        %v715 = vpop.xlane.xlu0 %714
        %716 = vadd.xlane.f32.xlu0 %v691
        %v717 = vpop.xlane.xlu0 %716
        %718 = vadd.xlane.f32.xlu0 %v692
        %v719 = vpop.xlane.xlu0 %718
        %720 = vadd.xlane.f32.xlu0 %v693
        %v721 = vpop.xlane.xlu0 %720
        %722 = vadd.xlane.f32.xlu0 %v694
        %v723 = vpop.xlane.xlu0 %722
        %724 = vadd.xlane.f32.xlu0 %v695
        %v725 = vpop.xlane.xlu0 %724
        %726 = vadd.xlane.f32.xlu0 %v696
        %v727 = vpop.xlane.xlu0 %726
        %728 = vadd.xlane.f32.xlu0 %v697
        %v729 = vpop.xlane.xlu0 %728
        %v730 = vld [vmem:[#allocation2] sm:$0xf]
        %v731 = vld [vmem:[#allocation2 + $0x4] sm:$0xf]
        %v732 = vld [vmem:[#allocation2 + $0x8] sm:$0xf]
        %v733 = vld [vmem:[#allocation2 + $0xc] sm:$0xf]
        %v734 = vld [vmem:[#allocation2 + $0x10] sm:$0xf]
        %v735 = vld [vmem:[#allocation2 + $0x14] sm:$0xf]
        %v736 = vld [vmem:[#allocation2 + $0x18] sm:$0xf]
        %v737 = vld [vmem:[#allocation2 + $0x1c] sm:$0xf]
        %v738 = vld [vmem:[#allocation2 + $0x20] sm:$0xf]
        %v739 = vld [vmem:[#allocation2 + $0x24] sm:$0xf]
        %v740 = vld [vmem:[#allocation2 + $0x28] sm:$0xf]
        %v741 = vld [vmem:[#allocation2 + $0x2c] sm:$0xf]
        %v742 = vld [vmem:[#allocation2 + $0x30] sm:$0xf]
        %v743 = vld [vmem:[#allocation2 + $0x34] sm:$0xf]
        %v744 = vld [vmem:[#allocation2 + $0x38] sm:$0xf]
        %v745 = vld [vmem:[#allocation2 + $0x3c] sm:$0xf]
        %v762 = vunpack.c.l.b16 %v730
        %v763 = vunpack.c.l.b16 %v731
        %v764 = vunpack.c.l.b16 %v732
        %v765 = vunpack.c.l.b16 %v733
        %v766 = vunpack.c.l.b16 %v734
        %v767 = vunpack.c.l.b16 %v735
        %v768 = vunpack.c.l.b16 %v736
        %v769 = vunpack.c.l.b16 %v737
        %v770 = vunpack.c.l.b16 %v738
        %v771 = vunpack.c.l.b16 %v739
        %v772 = vunpack.c.l.b16 %v740
        %v773 = vunpack.c.l.b16 %v741
        %v774 = vunpack.c.l.b16 %v742
        %v775 = vunpack.c.l.b16 %v743
        %v776 = vunpack.c.l.b16 %v744
        %v777 = vunpack.c.l.b16 %v745
        %v778 = vpack.c.b16 %v763, %v762
        %v779 = vpack.c.b16 %v765, %v764
        %v780 = vpack.c.b16 %v767, %v766
        %v781 = vpack.c.b16 %v769, %v768
        %v782 = vpack.c.b16 %v771, %v770
        %v783 = vpack.c.b16 %v773, %v772
        %v784 = vpack.c.b16 %v775, %v774
        %v785 = vpack.c.b16 %v777, %v776
        %v810 = vunpack.c.l.b16 %v615
        %v811 = vunpack.c.l.b16 %v616
        %v812 = vunpack.c.l.b16 %v617
        %v813 = vunpack.c.l.b16 %v618
        %v814 = vunpack.c.l.b16 %v619
        %v815 = vunpack.c.l.b16 %v620
        %v816 = vunpack.c.l.b16 %v621
        %v817 = vunpack.c.l.b16 %v622
        %v818 = vunpack.c.l.b16 %v623
        %v819 = vunpack.c.l.b16 %v624
        %v820 = vunpack.c.l.b16 %v625
        %v821 = vunpack.c.l.b16 %v626
        %v822 = vunpack.c.l.b16 %v627
        %v823 = vunpack.c.l.b16 %v628
        %v824 = vunpack.c.l.b16 %v629
        %v825 = vunpack.c.l.b16 %v630
        %v826 = vpack.c.b16 %v811, %v810
        %v827 = vpack.c.b16 %v813, %v812
        %v828 = vpack.c.b16 %v815, %v814
        %v829 = vpack.c.b16 %v817, %v816
        %v830 = vpack.c.b16 %v819, %v818
        %v831 = vpack.c.b16 %v821, %v820
        %v832 = vpack.c.b16 %v823, %v822
        %v833 = vpack.c.b16 %v825, %v824
        %842 = vmatpush.bf16.xpose.msra.mxu0 %v833
        %843 = vmatpush.bf16.xpose.msra.mxu0 %v832
        %844 = vmatpush.bf16.xpose.msra.mxu0 %v831
        %845 = vmatpush.bf16.xpose.msra.mxu0 %v830
        %846 = vmatpush.bf16.xpose.msra.mxu0 %v829
        %847 = vmatpush.bf16.xpose.msra.mxu0 %v828
        %848 = vmatpush.bf16.xpose.msra.mxu0 %v827
        %849 = vmatpush.bf16.xpose.msra.mxu0 %v826
        %850 = vmatmul.bf16.gmra.mxu0 %v778
        %v851 = vpop.f32.mrf.mxu0
        %v852 = vadd.f32 0.0, %v851
        %v853 = vpop.f32.mrf.mxu0
        %v854 = vadd.f32 0.0, %v853
        %855 = vmatmul.bf16.gmra.mxu0 %v779
        %v856 = vpop.f32.mrf.mxu0
        %v857 = vadd.f32 0.0, %v856
        %v858 = vpop.f32.mrf.mxu0
        %v859 = vadd.f32 0.0, %v858
        %860 = vmatmul.bf16.gmra.mxu0 %v780
        %v861 = vpop.f32.mrf.mxu0
        %v862 = vadd.f32 0.0, %v861
        %v863 = vpop.f32.mrf.mxu0
        %v864 = vadd.f32 0.0, %v863
        %865 = vmatmul.bf16.gmra.mxu0 %v781
        %v866 = vpop.f32.mrf.mxu0
        %v867 = vadd.f32 0.0, %v866
        %v868 = vpop.f32.mrf.mxu0
        %v869 = vadd.f32 0.0, %v868
        %870 = vmatmul.bf16.gmra.mxu0 %v782
        %v871 = vpop.f32.mrf.mxu0
        %v872 = vadd.f32 0.0, %v871
        %v873 = vpop.f32.mrf.mxu0
        %v874 = vadd.f32 0.0, %v873
        %875 = vmatmul.bf16.gmra.mxu0 %v783
        %v876 = vpop.f32.mrf.mxu0
        %v877 = vadd.f32 0.0, %v876
        %v878 = vpop.f32.mrf.mxu0
        %v879 = vadd.f32 0.0, %v878
        %880 = vmatmul.bf16.gmra.mxu0 %v784
        %v881 = vpop.f32.mrf.mxu0
        %v882 = vadd.f32 0.0, %v881
        %v883 = vpop.f32.mrf.mxu0
        %v884 = vadd.f32 0.0, %v883
        %885 = vmatmul.bf16.gmra.mxu0 %v785
        %v886 = vpop.f32.mrf.mxu0
        %v887 = vadd.f32 0.0, %v886
        %v888 = vpop.f32.mrf.mxu0
        %v889 = vadd.f32 0.0, %v888
        %890 = vdwg.mxu0
        %891 = vxpose.xlu0.b32.start [1/16] %v699, 128
        %892 = vxpose.xlu0.b32.cont [2/16] %v701, 128
        %893 = vxpose.xlu0.b32.cont [3/16] %v703, 128
        %894 = vxpose.xlu0.b32.cont [4/16] %v705, 128
        %895 = vxpose.xlu0.b32.cont [5/16] %v707, 128
        %896 = vxpose.xlu0.b32.cont [6/16] %v709, 128
        %897 = vxpose.xlu0.b32.cont [7/16] %v711, 128
        %898 = vxpose.xlu0.b32.cont [8/16] %v713, 128
        %899 = vxpose.xlu0.b32.cont [9/16] %v715, 128
        %900 = vxpose.xlu0.b32.cont [10/16] %v717, 128
        %901 = vxpose.xlu0.b32.cont [11/16] %v719, 128
        %902 = vxpose.xlu0.b32.cont [12/16] %v721, 128
        %903 = vxpose.xlu0.b32.cont [13/16] %v723, 128
        %904 = vxpose.xlu0.b32.cont [14/16] %v725, 128
        %905 = vxpose.xlu0.b32.cont [15/16] %v727, 128
        %906 = vxpose.xlu0.b32.end [16/16] %v729, 128
        %v907 = vpop.trf.xlu0
        %v908 = vpop.trf.xlu0
        %v909 = vpop.trf.xlu0
        %v910 = vpop.trf.xlu0
        %v911 = vpop.trf.xlu0
        %v912 = vpop.trf.xlu0
        %v913 = vpop.trf.xlu0
        %v914 = vpop.trf.xlu0
        %v915 = vpop.trf.xlu0
        %v916 = vpop.trf.xlu0
        %v917 = vpop.trf.xlu0
        %v918 = vpop.trf.xlu0
        %v919 = vpop.trf.xlu0
        %v920 = vpop.trf.xlu0
        %v921 = vpop.trf.xlu0
        %v922 = vpop.trf.xlu0
        %v923 = vperm.slane %v907, 0
        %v924 = vsub.f32 %v852, %v923
        %v925 = vsub.f32 %v854, %v923
        %v926 = vsub.f32 %v857, %v923
        %v927 = vsub.f32 %v859, %v923
        %v928 = vsub.f32 %v862, %v923
        %v929 = vsub.f32 %v864, %v923
        %v930 = vsub.f32 %v867, %v923
        %v931 = vsub.f32 %v869, %v923
        %v932 = vsub.f32 %v872, %v923
        %v933 = vsub.f32 %v874, %v923
        %v934 = vsub.f32 %v877, %v923
        %v935 = vsub.f32 %v879, %v923
        %v936 = vsub.f32 %v882, %v923
        %v937 = vsub.f32 %v884, %v923
        %v938 = vsub.f32 %v887, %v923
        %v939 = vsub.f32 %v889, %v923
        %v940 = vld [vmem:[#allocation3] sm:$0xff]
        %v941 = vld [vmem:[#allocation3 + $0x8] sm:$0xff]
        %v942 = vld [vmem:[#allocation3 + $0x10] sm:$0xff]
        %v943 = vld [vmem:[#allocation3 + $0x18] sm:$0xff]
        %v944 = vld [vmem:[#allocation3 + $0x20] sm:$0xff]
        %v945 = vld [vmem:[#allocation3 + $0x28] sm:$0xff]
        %v946 = vld [vmem:[#allocation3 + $0x30] sm:$0xff]
        %v947 = vld [vmem:[#allocation3 + $0x38] sm:$0xff]
        %v948 = vld [vmem:[#allocation3 + $0x40] sm:$0xff]
        %v949 = vld [vmem:[#allocation3 + $0x48] sm:$0xff]
        %v950 = vld [vmem:[#allocation3 + $0x50] sm:$0xff]
        %v951 = vld [vmem:[#allocation3 + $0x58] sm:$0xff]
        %v952 = vld [vmem:[#allocation3 + $0x60] sm:$0xff]
        %v953 = vld [vmem:[#allocation3 + $0x68] sm:$0xff]
        %v954 = vld [vmem:[#allocation3 + $0x70] sm:$0xff]
        %v955 = vld [vmem:[#allocation3 + $0x78] sm:$0xff]
        %957 = vset.pattern.permute.xlu0 0
        %958 = vperm.xlu0 %957, %v940
        %v959 = vpop.permute.xlu0 %958
        %962 = vset.pattern.permute.xlu0 0
        %963 = vperm.xlu0 %962, %v941
        %v964 = vpop.permute.xlu0 %963
        %967 = vset.pattern.permute.xlu0 0
        %968 = vperm.xlu0 %967, %v942
        %v969 = vpop.permute.xlu0 %968
        %972 = vset.pattern.permute.xlu0 0
        %973 = vperm.xlu0 %972, %v943
        %v974 = vpop.permute.xlu0 %973
        %977 = vset.pattern.permute.xlu0 0
        %978 = vperm.xlu0 %977, %v944
        %v979 = vpop.permute.xlu0 %978
        %982 = vset.pattern.permute.xlu0 0
        %983 = vperm.xlu0 %982, %v945
        %v984 = vpop.permute.xlu0 %983
        %987 = vset.pattern.permute.xlu0 0
        %988 = vperm.xlu0 %987, %v946
        %v989 = vpop.permute.xlu0 %988
        %992 = vset.pattern.permute.xlu0 0
        %993 = vperm.xlu0 %992, %v947
        %v994 = vpop.permute.xlu0 %993
        %997 = vset.pattern.permute.xlu0 0
        %998 = vperm.xlu0 %997, %v948
        %v999 = vpop.permute.xlu0 %998
        %1002 = vset.pattern.permute.xlu0 0
        %1003 = vperm.xlu0 %1002, %v949
        %v1004 = vpop.permute.xlu0 %1003
        %1007 = vset.pattern.permute.xlu0 0
        %1008 = vperm.xlu0 %1007, %v950
        %v1009 = vpop.permute.xlu0 %1008
        %1012 = vset.pattern.permute.xlu0 0
        %1013 = vperm.xlu0 %1012, %v951
        %v1014 = vpop.permute.xlu0 %1013
        %1017 = vset.pattern.permute.xlu0 0
        %1018 = vperm.xlu0 %1017, %v952
        %v1019 = vpop.permute.xlu0 %1018
        %1022 = vset.pattern.permute.xlu0 0
        %1023 = vperm.xlu0 %1022, %v953
        %v1024 = vpop.permute.xlu0 %1023
        %1027 = vset.pattern.permute.xlu0 0
        %1028 = vperm.xlu0 %1027, %v954
        %v1029 = vpop.permute.xlu0 %1028
        %1032 = vset.pattern.permute.xlu0 0
        %1033 = vperm.xlu0 %1032, %v955
        %v1034 = vpop.permute.xlu0 %1033
        %v1036 = vsub.f32 %v924, %v959
        %v1037 = vsub.f32 %v925, %v964
        %v1038 = vsub.f32 %v926, %v969
        %v1039 = vsub.f32 %v927, %v974
        %v1040 = vsub.f32 %v928, %v979
        %v1041 = vsub.f32 %v929, %v984
        %v1042 = vsub.f32 %v930, %v989
        %v1043 = vsub.f32 %v931, %v994
        %v1044 = vsub.f32 %v932, %v999
        %v1045 = vsub.f32 %v933, %v1004
        %v1046 = vsub.f32 %v934, %v1009
        %v1047 = vsub.f32 %v935, %v1014
        %v1048 = vsub.f32 %v936, %v1019
        %v1049 = vsub.f32 %v937, %v1024
        %v1050 = vsub.f32 %v938, %v1029
        %v1051 = vsub.f32 %v939, %v1034
        %v1052 = vld [vmem:[#allocation4] sm:$0xff]
        %v1053 = vld [vmem:[#allocation4 + $0x8] sm:$0xff]
        %v1054 = vld [vmem:[#allocation4 + $0x10] sm:$0xff]
        %v1055 = vld [vmem:[#allocation4 + $0x18] sm:$0xff]
        %v1056 = vld [vmem:[#allocation4 + $0x20] sm:$0xff]
        %v1057 = vld [vmem:[#allocation4 + $0x28] sm:$0xff]
        %v1058 = vld [vmem:[#allocation4 + $0x30] sm:$0xff]
        %v1059 = vld [vmem:[#allocation4 + $0x38] sm:$0xff]
        %v1060 = vld [vmem:[#allocation4 + $0x40] sm:$0xff]
        %v1061 = vld [vmem:[#allocation4 + $0x48] sm:$0xff]
        %v1062 = vld [vmem:[#allocation4 + $0x50] sm:$0xff]
        %v1063 = vld [vmem:[#allocation4 + $0x58] sm:$0xff]
        %v1064 = vld [vmem:[#allocation4 + $0x60] sm:$0xff]
        %v1065 = vld [vmem:[#allocation4 + $0x68] sm:$0xff]
        %v1066 = vld [vmem:[#allocation4 + $0x70] sm:$0xff]
        %v1067 = vld [vmem:[#allocation4 + $0x78] sm:$0xff]
        %1068 = vmax.xlane.f32.xlu0 %v1036
        %v1069 = vpop.xlane.xlu0 %1068
        %1070 = vmax.xlane.f32.xlu0 %v1037
        %v1071 = vpop.xlane.xlu0 %1070
        %1072 = vmax.xlane.f32.xlu0 %v1038
        %v1073 = vpop.xlane.xlu0 %1072
        %1074 = vmax.xlane.f32.xlu0 %v1039
        %v1075 = vpop.xlane.xlu0 %1074
        %1076 = vmax.xlane.f32.xlu0 %v1040
        %v1077 = vpop.xlane.xlu0 %1076
        %1078 = vmax.xlane.f32.xlu0 %v1041
        %v1079 = vpop.xlane.xlu0 %1078
        %1080 = vmax.xlane.f32.xlu0 %v1042
        %v1081 = vpop.xlane.xlu0 %1080
        %1082 = vmax.xlane.f32.xlu0 %v1043
        %v1083 = vpop.xlane.xlu0 %1082
        %1084 = vmax.xlane.f32.xlu0 %v1044
        %v1085 = vpop.xlane.xlu0 %1084
        %1086 = vmax.xlane.f32.xlu0 %v1045
        %v1087 = vpop.xlane.xlu0 %1086
        %1088 = vmax.xlane.f32.xlu0 %v1046
        %v1089 = vpop.xlane.xlu0 %1088
        %1090 = vmax.xlane.f32.xlu0 %v1047
        %v1091 = vpop.xlane.xlu0 %1090
        %1092 = vmax.xlane.f32.xlu0 %v1048
        %v1093 = vpop.xlane.xlu0 %1092
        %1094 = vmax.xlane.f32.xlu0 %v1049
        %v1095 = vpop.xlane.xlu0 %1094
        %1096 = vmax.xlane.f32.xlu0 %v1050
        %v1097 = vpop.xlane.xlu0 %1096
        %1098 = vmax.xlane.f32.xlu0 %v1051
        %v1099 = vpop.xlane.xlu0 %1098
        %v1100 = vmax.f32 %v1052, %v1069
        %v1101 = vmax.f32 %v1053, %v1071
        %v1102 = vmax.f32 %v1054, %v1073
        %v1103 = vmax.f32 %v1055, %v1075
        %v1104 = vmax.f32 %v1056, %v1077
        %v1105 = vmax.f32 %v1057, %v1079
        %v1106 = vmax.f32 %v1058, %v1081
        %v1107 = vmax.f32 %v1059, %v1083
        %v1108 = vmax.f32 %v1060, %v1085
        %v1109 = vmax.f32 %v1061, %v1087
        %v1110 = vmax.f32 %v1062, %v1089
        %v1111 = vmax.f32 %v1063, %v1091
        %v1112 = vmax.f32 %v1064, %v1093
        %v1113 = vmax.f32 %v1065, %v1095
        %v1114 = vmax.f32 %v1066, %v1097
        %v1115 = vmax.f32 %v1067, %v1099
        %v1116 = vsub.f32 %v1052, %v1100
        %v1117 = vsub.f32 %v1053, %v1101
        %v1118 = vsub.f32 %v1054, %v1102
        %v1119 = vsub.f32 %v1055, %v1103
        %v1120 = vsub.f32 %v1056, %v1104
        %v1121 = vsub.f32 %v1057, %v1105
        %v1122 = vsub.f32 %v1058, %v1106
        %v1123 = vsub.f32 %v1059, %v1107
        %v1124 = vsub.f32 %v1060, %v1108
        %v1125 = vsub.f32 %v1061, %v1109
        %v1126 = vsub.f32 %v1062, %v1110
        %v1127 = vsub.f32 %v1063, %v1111
        %v1128 = vsub.f32 %v1064, %v1112
        %v1129 = vsub.f32 %v1065, %v1113
        %v1130 = vsub.f32 %v1066, %v1114
        %v1131 = vsub.f32 %v1067, %v1115
        %v1132 = vmul.f32 %v1116, 1.442695
        %v1133 = vpow.pop %v1132
        %v1134 = vmul.f32 %v1117, 1.442695
        %v1135 = vpow.pop %v1134
        %v1136 = vmul.f32 %v1118, 1.442695
        %v1137 = vpow.pop %v1136
        %v1138 = vmul.f32 %v1119, 1.442695
        %v1139 = vpow.pop %v1138
        %v1140 = vmul.f32 %v1120, 1.442695
        %v1141 = vpow.pop %v1140
        %v1142 = vmul.f32 %v1121, 1.442695
        %v1143 = vpow.pop %v1142
        %v1144 = vmul.f32 %v1122, 1.442695
        %v1145 = vpow.pop %v1144
        %v1146 = vmul.f32 %v1123, 1.442695
        %v1147 = vpow.pop %v1146
        %v1148 = vmul.f32 %v1124, 1.442695
        %v1149 = vpow.pop %v1148
        %v1150 = vmul.f32 %v1125, 1.442695
        %v1151 = vpow.pop %v1150
        %v1152 = vmul.f32 %v1126, 1.442695
        %v1153 = vpow.pop %v1152
        %v1154 = vmul.f32 %v1127, 1.442695
        %v1155 = vpow.pop %v1154
        %v1156 = vmul.f32 %v1128, 1.442695
        %v1157 = vpow.pop %v1156
        %v1158 = vmul.f32 %v1129, 1.442695
        %v1159 = vpow.pop %v1158
        %v1160 = vmul.f32 %v1130, 1.442695
        %v1161 = vpow.pop %v1160
        %v1162 = vmul.f32 %v1131, 1.442695
        %v1163 = vpow.pop %v1162
        %1165 = vset.pattern.permute.xlu0 0
        %1166 = vperm.xlu0 %1165, %v1100
        %v1167 = vpop.permute.xlu0 %1166
        %1170 = vset.pattern.permute.xlu0 0
        %1171 = vperm.xlu0 %1170, %v1101
        %v1172 = vpop.permute.xlu0 %1171
        %1175 = vset.pattern.permute.xlu0 0
        %1176 = vperm.xlu0 %1175, %v1102
        %v1177 = vpop.permute.xlu0 %1176
        %1180 = vset.pattern.permute.xlu0 0
        %1181 = vperm.xlu0 %1180, %v1103
        %v1182 = vpop.permute.xlu0 %1181
        %1185 = vset.pattern.permute.xlu0 0
        %1186 = vperm.xlu0 %1185, %v1104
        %v1187 = vpop.permute.xlu0 %1186
        %1190 = vset.pattern.permute.xlu0 0
        %1191 = vperm.xlu0 %1190, %v1105
        %v1192 = vpop.permute.xlu0 %1191
        %1195 = vset.pattern.permute.xlu0 0
        %1196 = vperm.xlu0 %1195, %v1106
        %v1197 = vpop.permute.xlu0 %1196
        %1200 = vset.pattern.permute.xlu0 0
        %1201 = vperm.xlu0 %1200, %v1107
        %v1202 = vpop.permute.xlu0 %1201
        %1205 = vset.pattern.permute.xlu0 0
        %1206 = vperm.xlu0 %1205, %v1108
        %v1207 = vpop.permute.xlu0 %1206
        %1210 = vset.pattern.permute.xlu0 0
        %1211 = vperm.xlu0 %1210, %v1109
        %v1212 = vpop.permute.xlu0 %1211
        %1215 = vset.pattern.permute.xlu0 0
        %1216 = vperm.xlu0 %1215, %v1110
        %v1217 = vpop.permute.xlu0 %1216
        %1220 = vset.pattern.permute.xlu0 0
        %1221 = vperm.xlu0 %1220, %v1111
        %v1222 = vpop.permute.xlu0 %1221
        %1225 = vset.pattern.permute.xlu0 0
        %1226 = vperm.xlu0 %1225, %v1112
        %v1227 = vpop.permute.xlu0 %1226
        %1230 = vset.pattern.permute.xlu0 0
        %1231 = vperm.xlu0 %1230, %v1113
        %v1232 = vpop.permute.xlu0 %1231
        %1235 = vset.pattern.permute.xlu0 0
        %1236 = vperm.xlu0 %1235, %v1114
        %v1237 = vpop.permute.xlu0 %1236
        %1240 = vset.pattern.permute.xlu0 0
        %1241 = vperm.xlu0 %1240, %v1115
        %v1242 = vpop.permute.xlu0 %1241
        %v1244 = vsub.f32 %v1036, %v1167
        %v1245 = vsub.f32 %v1037, %v1172
        %v1246 = vsub.f32 %v1038, %v1177
        %v1247 = vsub.f32 %v1039, %v1182
        %v1248 = vsub.f32 %v1040, %v1187
        %v1249 = vsub.f32 %v1041, %v1192
        %v1250 = vsub.f32 %v1042, %v1197
        %v1251 = vsub.f32 %v1043, %v1202
        %v1252 = vsub.f32 %v1044, %v1207
        %v1253 = vsub.f32 %v1045, %v1212
        %v1254 = vsub.f32 %v1046, %v1217
        %v1255 = vsub.f32 %v1047, %v1222
        %v1256 = vsub.f32 %v1048, %v1227
        %v1257 = vsub.f32 %v1049, %v1232
        %v1258 = vsub.f32 %v1050, %v1237
        %v1259 = vsub.f32 %v1051, %v1242
        %v1260 = vmul.f32 %v1244, 1.442695
        %v1261 = vpow.pop %v1260
        %v1262 = vmul.f32 %v1245, 1.442695
        %v1263 = vpow.pop %v1262
        %v1264 = vmul.f32 %v1246, 1.442695
        %v1265 = vpow.pop %v1264
        %v1266 = vmul.f32 %v1247, 1.442695
        %v1267 = vpow.pop %v1266
        %v1268 = vmul.f32 %v1248, 1.442695
        %v1269 = vpow.pop %v1268
        %v1270 = vmul.f32 %v1249, 1.442695
        %v1271 = vpow.pop %v1270
        %v1272 = vmul.f32 %v1250, 1.442695
        %v1273 = vpow.pop %v1272
        %v1274 = vmul.f32 %v1251, 1.442695
        %v1275 = vpow.pop %v1274
        %v1276 = vmul.f32 %v1252, 1.442695
        %v1277 = vpow.pop %v1276
        %v1278 = vmul.f32 %v1253, 1.442695
        %v1279 = vpow.pop %v1278
        %v1280 = vmul.f32 %v1254, 1.442695
        %v1281 = vpow.pop %v1280
        %v1282 = vmul.f32 %v1255, 1.442695
        %v1283 = vpow.pop %v1282
        %v1284 = vmul.f32 %v1256, 1.442695
        %v1285 = vpow.pop %v1284
        %v1286 = vmul.f32 %v1257, 1.442695
        %v1287 = vpow.pop %v1286
        %v1288 = vmul.f32 %v1258, 1.442695
        %v1289 = vpow.pop %v1288
        %v1290 = vmul.f32 %v1259, 1.442695
        %v1291 = vpow.pop %v1290
        %v1292 = vld [vmem:[#allocation5] sm:$0xff]
        %v1293 = vld [vmem:[#allocation5 + $0x8] sm:$0xff]
        %v1294 = vld [vmem:[#allocation5 + $0x10] sm:$0xff]
        %v1295 = vld [vmem:[#allocation5 + $0x18] sm:$0xff]
        %v1296 = vld [vmem:[#allocation5 + $0x20] sm:$0xff]
        %v1297 = vld [vmem:[#allocation5 + $0x28] sm:$0xff]
        %v1298 = vld [vmem:[#allocation5 + $0x30] sm:$0xff]
        %v1299 = vld [vmem:[#allocation5 + $0x38] sm:$0xff]
        %v1300 = vld [vmem:[#allocation5 + $0x40] sm:$0xff]
        %v1301 = vld [vmem:[#allocation5 + $0x48] sm:$0xff]
        %v1302 = vld [vmem:[#allocation5 + $0x50] sm:$0xff]
        %v1303 = vld [vmem:[#allocation5 + $0x58] sm:$0xff]
        %v1304 = vld [vmem:[#allocation5 + $0x60] sm:$0xff]
        %v1305 = vld [vmem:[#allocation5 + $0x68] sm:$0xff]
        %v1306 = vld [vmem:[#allocation5 + $0x70] sm:$0xff]
        %v1307 = vld [vmem:[#allocation5 + $0x78] sm:$0xff]
        %v1308 = vmul.f32 %v1133, %v1292
        %v1309 = vmul.f32 %v1135, %v1293
        %v1310 = vmul.f32 %v1137, %v1294
        %v1311 = vmul.f32 %v1139, %v1295
        %v1312 = vmul.f32 %v1141, %v1296
        %v1313 = vmul.f32 %v1143, %v1297
        %v1314 = vmul.f32 %v1145, %v1298
        %v1315 = vmul.f32 %v1147, %v1299
        %v1316 = vmul.f32 %v1149, %v1300
        %v1317 = vmul.f32 %v1151, %v1301
        %v1318 = vmul.f32 %v1153, %v1302
        %v1319 = vmul.f32 %v1155, %v1303
        %v1320 = vmul.f32 %v1157, %v1304
        %v1321 = vmul.f32 %v1159, %v1305
        %v1322 = vmul.f32 %v1161, %v1306
        %v1323 = vmul.f32 %v1163, %v1307
        %1324 = vadd.xlane.f32.xlu0 %v1261
        %v1325 = vpop.xlane.xlu0 %1324
        %1326 = vadd.xlane.f32.xlu0 %v1263
        %v1327 = vpop.xlane.xlu0 %1326
        %1328 = vadd.xlane.f32.xlu0 %v1265
        %v1329 = vpop.xlane.xlu0 %1328
        %1330 = vadd.xlane.f32.xlu0 %v1267
        %v1331 = vpop.xlane.xlu0 %1330
        %1332 = vadd.xlane.f32.xlu0 %v1269
        %v1333 = vpop.xlane.xlu0 %1332
        %1334 = vadd.xlane.f32.xlu0 %v1271
        %v1335 = vpop.xlane.xlu0 %1334
        %1336 = vadd.xlane.f32.xlu0 %v1273
        %v1337 = vpop.xlane.xlu0 %1336
        %1338 = vadd.xlane.f32.xlu0 %v1275
        %v1339 = vpop.xlane.xlu0 %1338
        %1340 = vadd.xlane.f32.xlu0 %v1277
        %v1341 = vpop.xlane.xlu0 %1340
        %1342 = vadd.xlane.f32.xlu0 %v1279
        %v1343 = vpop.xlane.xlu0 %1342
        %1344 = vadd.xlane.f32.xlu0 %v1281
        %v1345 = vpop.xlane.xlu0 %1344
        %1346 = vadd.xlane.f32.xlu0 %v1283
        %v1347 = vpop.xlane.xlu0 %1346
        %1348 = vadd.xlane.f32.xlu0 %v1285
        %v1349 = vpop.xlane.xlu0 %1348
        %1350 = vadd.xlane.f32.xlu0 %v1287
        %v1351 = vpop.xlane.xlu0 %1350
        %1352 = vadd.xlane.f32.xlu0 %v1289
        %v1353 = vpop.xlane.xlu0 %1352
        %1354 = vadd.xlane.f32.xlu0 %v1291
        %v1355 = vpop.xlane.xlu0 %1354
        %v1356 = vadd.f32 %v1308, %v1325
        %v1357 = vadd.f32 %v1309, %v1327
        %v1358 = vadd.f32 %v1310, %v1329
        %v1359 = vadd.f32 %v1311, %v1331
        %v1360 = vadd.f32 %v1312, %v1333
        %v1361 = vadd.f32 %v1313, %v1335
        %v1362 = vadd.f32 %v1314, %v1337
        %v1363 = vadd.f32 %v1315, %v1339
        %v1364 = vadd.f32 %v1316, %v1341
        %v1365 = vadd.f32 %v1317, %v1343
        %v1366 = vadd.f32 %v1318, %v1345
        %v1367 = vadd.f32 %v1319, %v1347
        %v1368 = vadd.f32 %v1320, %v1349
        %v1369 = vadd.f32 %v1321, %v1351
        %v1370 = vadd.f32 %v1322, %v1353
        %v1371 = vadd.f32 %v1323, %v1355
        %vm1372 = vcmask 7168
        %1373 = vst.msk [vmem:[#allocation5] sm:$0xff] %vm1372, %v1356
        %1374 = vst.msk [vmem:[#allocation5 + $0x8] sm:$0xff] %vm1372, %v1357
        %1375 = vst.msk [vmem:[#allocation5 + $0x10] sm:$0xff] %vm1372, %v1358
        %1376 = vst.msk [vmem:[#allocation5 + $0x18] sm:$0xff] %vm1372, %v1359
        %1377 = vst.msk [vmem:[#allocation5 + $0x20] sm:$0xff] %vm1372, %v1360
        %1378 = vst.msk [vmem:[#allocation5 + $0x28] sm:$0xff] %vm1372, %v1361
        %1379 = vst.msk [vmem:[#allocation5 + $0x30] sm:$0xff] %vm1372, %v1362
        %1380 = vst.msk [vmem:[#allocation5 + $0x38] sm:$0xff] %vm1372, %v1363
        %1381 = vst.msk [vmem:[#allocation5 + $0x40] sm:$0xff] %vm1372, %v1364
        %1382 = vst.msk [vmem:[#allocation5 + $0x48] sm:$0xff] %vm1372, %v1365
        %1383 = vst.msk [vmem:[#allocation5 + $0x50] sm:$0xff] %vm1372, %v1366
        %1384 = vst.msk [vmem:[#allocation5 + $0x58] sm:$0xff] %vm1372, %v1367
        %1385 = vst.msk [vmem:[#allocation5 + $0x60] sm:$0xff] %vm1372, %v1368
        %1386 = vst.msk [vmem:[#allocation5 + $0x68] sm:$0xff] %vm1372, %v1369
        %1387 = vst.msk [vmem:[#allocation5 + $0x70] sm:$0xff] %vm1372, %v1370
        %1388 = vst.msk [vmem:[#allocation5 + $0x78] sm:$0xff] %vm1372, %v1371
        %v1389 = vld [vmem:[#allocation6] sm:$0xff]
        %v1390 = vld [vmem:[#allocation6 + $0x8] sm:$0xff]
        %v1391 = vld [vmem:[#allocation6 + $0x10] sm:$0xff]
        %v1392 = vld [vmem:[#allocation6 + $0x18] sm:$0xff]
        %v1393 = vld [vmem:[#allocation6 + $0x20] sm:$0xff]
        %v1394 = vld [vmem:[#allocation6 + $0x28] sm:$0xff]
        %v1395 = vld [vmem:[#allocation6 + $0x30] sm:$0xff]
        %v1396 = vld [vmem:[#allocation6 + $0x38] sm:$0xff]
        %v1397 = vld [vmem:[#allocation6 + $0x40] sm:$0xff]
        %v1398 = vld [vmem:[#allocation6 + $0x48] sm:$0xff]
        %v1399 = vld [vmem:[#allocation6 + $0x50] sm:$0xff]
        %v1400 = vld [vmem:[#allocation6 + $0x58] sm:$0xff]
        %v1401 = vld [vmem:[#allocation6 + $0x60] sm:$0xff]
        %v1402 = vld [vmem:[#allocation6 + $0x68] sm:$0xff]
        %v1403 = vld [vmem:[#allocation6 + $0x70] sm:$0xff]
        %v1404 = vld [vmem:[#allocation6 + $0x78] sm:$0xff]
        %1406 = vset.pattern.permute.xlu0 0
        %1407 = vperm.xlu0 %1406, %v1133
        %v1408 = vpop.permute.xlu0 %1407
        %1411 = vset.pattern.permute.xlu0 0
        %1412 = vperm.xlu0 %1411, %v1135
        %v1413 = vpop.permute.xlu0 %1412
        %1416 = vset.pattern.permute.xlu0 0
        %1417 = vperm.xlu0 %1416, %v1137
        %v1418 = vpop.permute.xlu0 %1417
        %1421 = vset.pattern.permute.xlu0 0
        %1422 = vperm.xlu0 %1421, %v1139
        %v1423 = vpop.permute.xlu0 %1422
        %1426 = vset.pattern.permute.xlu0 0
        %1427 = vperm.xlu0 %1426, %v1141
        %v1428 = vpop.permute.xlu0 %1427
        %1431 = vset.pattern.permute.xlu0 0
        %1432 = vperm.xlu0 %1431, %v1143
        %v1433 = vpop.permute.xlu0 %1432
        %1436 = vset.pattern.permute.xlu0 0
        %1437 = vperm.xlu0 %1436, %v1145
        %v1438 = vpop.permute.xlu0 %1437
        %1441 = vset.pattern.permute.xlu0 0
        %1442 = vperm.xlu0 %1441, %v1147
        %v1443 = vpop.permute.xlu0 %1442
        %1446 = vset.pattern.permute.xlu0 0
        %1447 = vperm.xlu0 %1446, %v1149
        %v1448 = vpop.permute.xlu0 %1447
        %1451 = vset.pattern.permute.xlu0 0
        %1452 = vperm.xlu0 %1451, %v1151
        %v1453 = vpop.permute.xlu0 %1452
        %1456 = vset.pattern.permute.xlu0 0
        %1457 = vperm.xlu0 %1456, %v1153
        %v1458 = vpop.permute.xlu0 %1457
        %1461 = vset.pattern.permute.xlu0 0
        %1462 = vperm.xlu0 %1461, %v1155
        %v1463 = vpop.permute.xlu0 %1462
        %1466 = vset.pattern.permute.xlu0 0
        %1467 = vperm.xlu0 %1466, %v1157
        %v1468 = vpop.permute.xlu0 %1467
        %1471 = vset.pattern.permute.xlu0 0
        %1472 = vperm.xlu0 %1471, %v1159
        %v1473 = vpop.permute.xlu0 %1472
        %1476 = vset.pattern.permute.xlu0 0
        %1477 = vperm.xlu0 %1476, %v1161
        %v1478 = vpop.permute.xlu0 %1477
        %1481 = vset.pattern.permute.xlu0 0
        %1482 = vperm.xlu0 %1481, %v1163
        %v1483 = vpop.permute.xlu0 %1482
        %v1485 = vmul.f32 %v1408, %v1389
        %v1486 = vmul.f32 %v1413, %v1390
        %v1487 = vmul.f32 %v1418, %v1391
        %v1488 = vmul.f32 %v1423, %v1392
        %v1489 = vmul.f32 %v1428, %v1393
        %v1490 = vmul.f32 %v1433, %v1394
        %v1491 = vmul.f32 %v1438, %v1395
        %v1492 = vmul.f32 %v1443, %v1396
        %v1493 = vmul.f32 %v1448, %v1397
        %v1494 = vmul.f32 %v1453, %v1398
        %v1495 = vmul.f32 %v1458, %v1399
        %v1496 = vmul.f32 %v1463, %v1400
        %v1497 = vmul.f32 %v1468, %v1401
        %v1498 = vmul.f32 %v1473, %v1402
        %v1499 = vmul.f32 %v1478, %v1403
        %v1500 = vmul.f32 %v1483, %v1404
        %v1501 = vpack.c.bf16 %v1263, %v1261
        %v1502 = vpack.c.bf16 %v1267, %v1265
        %v1503 = vpack.c.bf16 %v1271, %v1269
        %v1504 = vpack.c.bf16 %v1275, %v1273
        %v1505 = vpack.c.bf16 %v1279, %v1277
        %v1506 = vpack.c.bf16 %v1283, %v1281
        %v1507 = vpack.c.bf16 %v1287, %v1285
        %v1508 = vpack.c.bf16 %v1291, %v1289
        %v1525 = vunpack.c.l.b16 %v631
        %v1526 = vunpack.c.l.b16 %v632
        %v1527 = vunpack.c.l.b16 %v633
        %v1528 = vunpack.c.l.b16 %v634
        %v1529 = vunpack.c.l.b16 %v635
        %v1530 = vunpack.c.l.b16 %v636
        %v1531 = vunpack.c.l.b16 %v637
        %v1532 = vunpack.c.l.b16 %v638
        %v1533 = vunpack.c.l.b16 %v639
        %v1534 = vunpack.c.l.b16 %v640
        %v1535 = vunpack.c.l.b16 %v641
        %v1536 = vunpack.c.l.b16 %v642
        %v1537 = vunpack.c.l.b16 %v643
        %v1538 = vunpack.c.l.b16 %v644
        %v1539 = vunpack.c.l.b16 %v645
        %v1540 = vunpack.c.l.b16 %v646
        %v1541 = vpack.c.b16 %v1526, %v1525
        %v1542 = vpack.c.b16 %v1528, %v1527
        %v1543 = vpack.c.b16 %v1530, %v1529
        %v1544 = vpack.c.b16 %v1532, %v1531
        %v1545 = vpack.c.b16 %v1534, %v1533
        %v1546 = vpack.c.b16 %v1536, %v1535
        %v1547 = vpack.c.b16 %v1538, %v1537
        %v1548 = vpack.c.b16 %v1540, %v1539
        %1557 = vmatpush.bf16.msra.mxu0 %v1548
        %1558 = vmatpush.bf16.msra.mxu0 %v1547
        %1559 = vmatpush.bf16.msra.mxu0 %v1546
        %1560 = vmatpush.bf16.msra.mxu0 %v1545
        %1561 = vmatpush.bf16.msra.mxu0 %v1544
        %1562 = vmatpush.bf16.msra.mxu0 %v1543
        %1563 = vmatpush.bf16.msra.mxu0 %v1542
        %1564 = vmatpush.bf16.msra.mxu0 %v1541
        %1565 = vmatmul.bf16.gmra.mxu0 %v1501
        %v1566 = vpop.f32.mrf.mxu0
        %v1567 = vadd.f32 0.0, %v1566
        %v1568 = vpop.f32.mrf.mxu0
        %v1569 = vadd.f32 0.0, %v1568
        %1570 = vmatmul.bf16.gmra.mxu0 %v1502
        %v1571 = vpop.f32.mrf.mxu0
        %v1572 = vadd.f32 0.0, %v1571
        %v1573 = vpop.f32.mrf.mxu0
        %v1574 = vadd.f32 0.0, %v1573
        %1575 = vmatmul.bf16.gmra.mxu0 %v1503
        %v1576 = vpop.f32.mrf.mxu0
        %v1577 = vadd.f32 0.0, %v1576
        %v1578 = vpop.f32.mrf.mxu0
        %v1579 = vadd.f32 0.0, %v1578
        %1580 = vmatmul.bf16.gmra.mxu0 %v1504
        %v1581 = vpop.f32.mrf.mxu0
        %v1582 = vadd.f32 0.0, %v1581
        %v1583 = vpop.f32.mrf.mxu0
        %v1584 = vadd.f32 0.0, %v1583
        %1585 = vmatmul.bf16.gmra.mxu0 %v1505
        %v1586 = vpop.f32.mrf.mxu0
        %v1587 = vadd.f32 0.0, %v1586
        %v1588 = vpop.f32.mrf.mxu0
        %v1589 = vadd.f32 0.0, %v1588
        %1590 = vmatmul.bf16.gmra.mxu0 %v1506
        %v1591 = vpop.f32.mrf.mxu0
        %v1592 = vadd.f32 0.0, %v1591
        %v1593 = vpop.f32.mrf.mxu0
        %v1594 = vadd.f32 0.0, %v1593
        %1595 = vmatmul.bf16.gmra.mxu0 %v1507
        %v1596 = vpop.f32.mrf.mxu0
        %v1597 = vadd.f32 0.0, %v1596
        %v1598 = vpop.f32.mrf.mxu0
        %v1599 = vadd.f32 0.0, %v1598
        %1600 = vmatmul.bf16.gmra.mxu0 %v1508
        %v1601 = vpop.f32.mrf.mxu0
        %v1602 = vadd.f32 0.0, %v1601
        %v1603 = vpop.f32.mrf.mxu0
        %v1604 = vadd.f32 0.0, %v1603
        %1605 = vdwg.mxu0
        %v1606 = vadd.f32 %v1485, %v1567
        %v1607 = vadd.f32 %v1486, %v1569
        %v1608 = vadd.f32 %v1487, %v1572
        %v1609 = vadd.f32 %v1488, %v1574
        %v1610 = vadd.f32 %v1489, %v1577
        %v1611 = vadd.f32 %v1490, %v1579
        %v1612 = vadd.f32 %v1491, %v1582
        %v1613 = vadd.f32 %v1492, %v1584
        %v1614 = vadd.f32 %v1493, %v1587
        %v1615 = vadd.f32 %v1494, %v1589
        %v1616 = vadd.f32 %v1495, %v1592
        %v1617 = vadd.f32 %v1496, %v1594
        %v1618 = vadd.f32 %v1497, %v1597
        %v1619 = vadd.f32 %v1498, %v1599
        %v1620 = vadd.f32 %v1499, %v1602
        %v1621 = vadd.f32 %v1500, %v1604
        %1622 = vst [vmem:[#allocation6] sm:$0xff] %v1606
        %1623 = vst [vmem:[#allocation6 + $0x8] sm:$0xff] %v1607
        %1624 = vst [vmem:[#allocation6 + $0x10] sm:$0xff] %v1608
        %1625 = vst [vmem:[#allocation6 + $0x18] sm:$0xff] %v1609
        %1626 = vst [vmem:[#allocation6 + $0x20] sm:$0xff] %v1610
        %1627 = vst [vmem:[#allocation6 + $0x28] sm:$0xff] %v1611
        %1628 = vst [vmem:[#allocation6 + $0x30] sm:$0xff] %v1612
        %1629 = vst [vmem:[#allocation6 + $0x38] sm:$0xff] %v1613
        %1630 = vst [vmem:[#allocation6 + $0x40] sm:$0xff] %v1614
        %1631 = vst [vmem:[#allocation6 + $0x48] sm:$0xff] %v1615
        %1632 = vst [vmem:[#allocation6 + $0x50] sm:$0xff] %v1616
        %1633 = vst [vmem:[#allocation6 + $0x58] sm:$0xff] %v1617
        %1634 = vst [vmem:[#allocation6 + $0x60] sm:$0xff] %v1618
        %1635 = vst [vmem:[#allocation6 + $0x68] sm:$0xff] %v1619
        %1636 = vst [vmem:[#allocation6 + $0x70] sm:$0xff] %v1620
        %1637 = vst [vmem:[#allocation6 + $0x78] sm:$0xff] %v1621
        %1638 = vst.msk [vmem:[#allocation4] sm:$0xff] %vm1372, %v1100
        %1639 = vst.msk [vmem:[#allocation4 + $0x8] sm:$0xff] %vm1372, %v1101
        %1640 = vst.msk [vmem:[#allocation4 + $0x10] sm:$0xff] %vm1372, %v1102
        %1641 = vst.msk [vmem:[#allocation4 + $0x18] sm:$0xff] %vm1372, %v1103
        %1642 = vst.msk [vmem:[#allocation4 + $0x20] sm:$0xff] %vm1372, %v1104
        %1643 = vst.msk [vmem:[#allocation4 + $0x28] sm:$0xff] %vm1372, %v1105
        %1644 = vst.msk [vmem:[#allocation4 + $0x30] sm:$0xff] %vm1372, %v1106
        %1645 = vst.msk [vmem:[#allocation4 + $0x38] sm:$0xff] %vm1372, %v1107
        %1646 = vst.msk [vmem:[#allocation4 + $0x40] sm:$0xff] %vm1372, %v1108
        %1647 = vst.msk [vmem:[#allocation4 + $0x48] sm:$0xff] %vm1372, %v1109
        %1648 = vst.msk [vmem:[#allocation4 + $0x50] sm:$0xff] %vm1372, %v1110
        %1649 = vst.msk [vmem:[#allocation4 + $0x58] sm:$0xff] %vm1372, %v1111
        %1650 = vst.msk [vmem:[#allocation4 + $0x60] sm:$0xff] %vm1372, %v1112
        %1651 = vst.msk [vmem:[#allocation4 + $0x68] sm:$0xff] %vm1372, %v1113
        %1652 = vst.msk [vmem:[#allocation4 + $0x70] sm:$0xff] %vm1372, %v1114
        %1653 = vst.msk [vmem:[#allocation4 + $0x78] sm:$0xff] %vm1372, %v1115
        // Predicated region
        $region45: #{generator_self_attention.4} parent=39 // pred_check
          %p1654 = pneg %p395
        $region46: #{generator_self_attention.4} parent=39 // pred_check_branch
          %1656 = sbr.rel (%p1654) target = $region48
        $region47: #{generator_self_attention.4} parent=39 // pred_region
          %v1657 = vld [vmem:[#allocation6] sm:$0xff]
          %v1658 = vld [vmem:[#allocation6 + $0x8] sm:$0xff]
          %v1659 = vld [vmem:[#allocation6 + $0x10] sm:$0xff]
          %v1660 = vld [vmem:[#allocation6 + $0x18] sm:$0xff]
          %v1661 = vld [vmem:[#allocation6 + $0x20] sm:$0xff]
          %v1662 = vld [vmem:[#allocation6 + $0x28] sm:$0xff]
          %v1663 = vld [vmem:[#allocation6 + $0x30] sm:$0xff]
          %v1664 = vld [vmem:[#allocation6 + $0x38] sm:$0xff]
          %v1665 = vld [vmem:[#allocation6 + $0x40] sm:$0xff]
          %v1666 = vld [vmem:[#allocation6 + $0x48] sm:$0xff]
          %v1667 = vld [vmem:[#allocation6 + $0x50] sm:$0xff]
          %v1668 = vld [vmem:[#allocation6 + $0x58] sm:$0xff]
          %v1669 = vld [vmem:[#allocation6 + $0x60] sm:$0xff]
          %v1670 = vld [vmem:[#allocation6 + $0x68] sm:$0xff]
          %v1671 = vld [vmem:[#allocation6 + $0x70] sm:$0xff]
          %v1672 = vld [vmem:[#allocation6 + $0x78] sm:$0xff]
          %v1673 = vld [vmem:[#allocation5] sm:$0xff]
          %v1674 = vld [vmem:[#allocation5 + $0x8] sm:$0xff]
          %v1675 = vld [vmem:[#allocation5 + $0x10] sm:$0xff]
          %v1676 = vld [vmem:[#allocation5 + $0x18] sm:$0xff]
          %v1677 = vld [vmem:[#allocation5 + $0x20] sm:$0xff]
          %v1678 = vld [vmem:[#allocation5 + $0x28] sm:$0xff]
          %v1679 = vld [vmem:[#allocation5 + $0x30] sm:$0xff]
          %v1680 = vld [vmem:[#allocation5 + $0x38] sm:$0xff]
          %v1681 = vld [vmem:[#allocation5 + $0x40] sm:$0xff]
          %v1682 = vld [vmem:[#allocation5 + $0x48] sm:$0xff]
          %v1683 = vld [vmem:[#allocation5 + $0x50] sm:$0xff]
          %v1684 = vld [vmem:[#allocation5 + $0x58] sm:$0xff]
          %v1685 = vld [vmem:[#allocation5 + $0x60] sm:$0xff]
          %v1686 = vld [vmem:[#allocation5 + $0x68] sm:$0xff]
          %v1687 = vld [vmem:[#allocation5 + $0x70] sm:$0xff]
          %v1688 = vld [vmem:[#allocation5 + $0x78] sm:$0xff]
          %v1689 = vrcp.pop %v1673
          %v1690 = vmul.f32 %v1673, %v1689
          %v1691 = vsub.f32 1.0, %v1690
          %v1692 = vmul.f32 %v1689, %v1691
          %v1693 = vadd.f32 %v1689, %v1692
          %vm1694 = vweird.f32 %v1673
          %vm1695 = vweird.f32 %v1689
          %vm1696 = vmor %vm1694, %vm1695
          %v1697 = vsel %vm1696, %v1689, %v1693
          %v1698 = vand.u32 2147483647, %v1673
          %vm1699 = vcmp.eq.f32.partialorder %v1698, 8.507059e+37
          %v1700 = vand.u32 %v1673, 2147483648
          %v1701 = vor.u32 1.1754944e-38, %v1700
          %v1702 = vsel %vm1699, %v1701, %v1697
          %v1703 = vrcp.pop %v1674
          %v1704 = vmul.f32 %v1674, %v1703
          %v1705 = vsub.f32 1.0, %v1704
          %v1706 = vmul.f32 %v1703, %v1705
          %v1707 = vadd.f32 %v1703, %v1706
          %vm1708 = vweird.f32 %v1674
          %vm1709 = vweird.f32 %v1703
          %vm1710 = vmor %vm1708, %vm1709
          %v1711 = vsel %vm1710, %v1703, %v1707
          %v1712 = vand.u32 2147483647, %v1674
          %vm1713 = vcmp.eq.f32.partialorder %v1712, 8.507059e+37
          %v1714 = vand.u32 %v1674, 2147483648
          %v1715 = vor.u32 1.1754944e-38, %v1714
          %v1716 = vsel %vm1713, %v1715, %v1711
          %v1717 = vrcp.pop %v1675
          %v1718 = vmul.f32 %v1675, %v1717
          %v1719 = vsub.f32 1.0, %v1718
          %v1720 = vmul.f32 %v1717, %v1719
          %v1721 = vadd.f32 %v1717, %v1720
          %vm1722 = vweird.f32 %v1675
          %vm1723 = vweird.f32 %v1717
          %vm1724 = vmor %vm1722, %vm1723
          %v1725 = vsel %vm1724, %v1717, %v1721
          %v1726 = vand.u32 2147483647, %v1675
          %vm1727 = vcmp.eq.f32.partialorder %v1726, 8.507059e+37
          %v1728 = vand.u32 %v1675, 2147483648
          %v1729 = vor.u32 1.1754944e-38, %v1728
          %v1730 = vsel %vm1727, %v1729, %v1725
          %v1731 = vrcp.pop %v1676
          %v1732 = vmul.f32 %v1676, %v1731
          %v1733 = vsub.f32 1.0, %v1732
          %v1734 = vmul.f32 %v1731, %v1733
          %v1735 = vadd.f32 %v1731, %v1734
          %vm1736 = vweird.f32 %v1676
          %vm1737 = vweird.f32 %v1731
          %vm1738 = vmor %vm1736, %vm1737
          %v1739 = vsel %vm1738, %v1731, %v1735
          %v1740 = vand.u32 2147483647, %v1676
          %vm1741 = vcmp.eq.f32.partialorder %v1740, 8.507059e+37
          %v1742 = vand.u32 %v1676, 2147483648
          %v1743 = vor.u32 1.1754944e-38, %v1742
          %v1744 = vsel %vm1741, %v1743, %v1739
          %v1745 = vrcp.pop %v1677
          %v1746 = vmul.f32 %v1677, %v1745
          %v1747 = vsub.f32 1.0, %v1746
          %v1748 = vmul.f32 %v1745, %v1747
          %v1749 = vadd.f32 %v1745, %v1748
          %vm1750 = vweird.f32 %v1677
          %vm1751 = vweird.f32 %v1745
          %vm1752 = vmor %vm1750, %vm1751
          %v1753 = vsel %vm1752, %v1745, %v1749
          %v1754 = vand.u32 2147483647, %v1677
          %vm1755 = vcmp.eq.f32.partialorder %v1754, 8.507059e+37
          %v1756 = vand.u32 %v1677, 2147483648
          %v1757 = vor.u32 1.1754944e-38, %v1756
          %v1758 = vsel %vm1755, %v1757, %v1753
          %v1759 = vrcp.pop %v1678
          %v1760 = vmul.f32 %v1678, %v1759
          %v1761 = vsub.f32 1.0, %v1760
          %v1762 = vmul.f32 %v1759, %v1761
          %v1763 = vadd.f32 %v1759, %v1762
          %vm1764 = vweird.f32 %v1678
          %vm1765 = vweird.f32 %v1759
          %vm1766 = vmor %vm1764, %vm1765
          %v1767 = vsel %vm1766, %v1759, %v1763
          %v1768 = vand.u32 2147483647, %v1678
          %vm1769 = vcmp.eq.f32.partialorder %v1768, 8.507059e+37
          %v1770 = vand.u32 %v1678, 2147483648
          %v1771 = vor.u32 1.1754944e-38, %v1770
          %v1772 = vsel %vm1769, %v1771, %v1767
          %v1773 = vrcp.pop %v1679
          %v1774 = vmul.f32 %v1679, %v1773
          %v1775 = vsub.f32 1.0, %v1774
          %v1776 = vmul.f32 %v1773, %v1775
          %v1777 = vadd.f32 %v1773, %v1776
          %vm1778 = vweird.f32 %v1679
          %vm1779 = vweird.f32 %v1773
          %vm1780 = vmor %vm1778, %vm1779
          %v1781 = vsel %vm1780, %v1773, %v1777
          %v1782 = vand.u32 2147483647, %v1679
          %vm1783 = vcmp.eq.f32.partialorder %v1782, 8.507059e+37
          %v1784 = vand.u32 %v1679, 2147483648
          %v1785 = vor.u32 1.1754944e-38, %v1784
          %v1786 = vsel %vm1783, %v1785, %v1781
          %v1787 = vrcp.pop %v1680
          %v1788 = vmul.f32 %v1680, %v1787
          %v1789 = vsub.f32 1.0, %v1788
          %v1790 = vmul.f32 %v1787, %v1789
          %v1791 = vadd.f32 %v1787, %v1790
          %vm1792 = vweird.f32 %v1680
          %vm1793 = vweird.f32 %v1787
          %vm1794 = vmor %vm1792, %vm1793
          %v1795 = vsel %vm1794, %v1787, %v1791
          %v1796 = vand.u32 2147483647, %v1680
          %vm1797 = vcmp.eq.f32.partialorder %v1796, 8.507059e+37
          %v1798 = vand.u32 %v1680, 2147483648
          %v1799 = vor.u32 1.1754944e-38, %v1798
          %v1800 = vsel %vm1797, %v1799, %v1795
          %v1801 = vrcp.pop %v1681
          %v1802 = vmul.f32 %v1681, %v1801
          %v1803 = vsub.f32 1.0, %v1802
          %v1804 = vmul.f32 %v1801, %v1803
          %v1805 = vadd.f32 %v1801, %v1804
          %vm1806 = vweird.f32 %v1681
          %vm1807 = vweird.f32 %v1801
          %vm1808 = vmor %vm1806, %vm1807
          %v1809 = vsel %vm1808, %v1801, %v1805
          %v1810 = vand.u32 2147483647, %v1681
          %vm1811 = vcmp.eq.f32.partialorder %v1810, 8.507059e+37
          %v1812 = vand.u32 %v1681, 2147483648
          %v1813 = vor.u32 1.1754944e-38, %v1812
          %v1814 = vsel %vm1811, %v1813, %v1809
          %v1815 = vrcp.pop %v1682
          %v1816 = vmul.f32 %v1682, %v1815
          %v1817 = vsub.f32 1.0, %v1816
          %v1818 = vmul.f32 %v1815, %v1817
          %v1819 = vadd.f32 %v1815, %v1818
          %vm1820 = vweird.f32 %v1682
          %vm1821 = vweird.f32 %v1815
          %vm1822 = vmor %vm1820, %vm1821
          %v1823 = vsel %vm1822, %v1815, %v1819
          %v1824 = vand.u32 2147483647, %v1682
          %vm1825 = vcmp.eq.f32.partialorder %v1824, 8.507059e+37
          %v1826 = vand.u32 %v1682, 2147483648
          %v1827 = vor.u32 1.1754944e-38, %v1826
          %v1828 = vsel %vm1825, %v1827, %v1823
          %v1829 = vrcp.pop %v1683
          %v1830 = vmul.f32 %v1683, %v1829
          %v1831 = vsub.f32 1.0, %v1830
          %v1832 = vmul.f32 %v1829, %v1831
          %v1833 = vadd.f32 %v1829, %v1832
          %vm1834 = vweird.f32 %v1683
          %vm1835 = vweird.f32 %v1829
          %vm1836 = vmor %vm1834, %vm1835
          %v1837 = vsel %vm1836, %v1829, %v1833
          %v1838 = vand.u32 2147483647, %v1683
          %vm1839 = vcmp.eq.f32.partialorder %v1838, 8.507059e+37
          %v1840 = vand.u32 %v1683, 2147483648
          %v1841 = vor.u32 1.1754944e-38, %v1840
          %v1842 = vsel %vm1839, %v1841, %v1837
          %v1843 = vrcp.pop %v1684
          %v1844 = vmul.f32 %v1684, %v1843
          %v1845 = vsub.f32 1.0, %v1844
          %v1846 = vmul.f32 %v1843, %v1845
          %v1847 = vadd.f32 %v1843, %v1846
          %vm1848 = vweird.f32 %v1684
          %vm1849 = vweird.f32 %v1843
          %vm1850 = vmor %vm1848, %vm1849
          %v1851 = vsel %vm1850, %v1843, %v1847
          %v1852 = vand.u32 2147483647, %v1684
          %vm1853 = vcmp.eq.f32.partialorder %v1852, 8.507059e+37
          %v1854 = vand.u32 %v1684, 2147483648
          %v1855 = vor.u32 1.1754944e-38, %v1854
          %v1856 = vsel %vm1853, %v1855, %v1851
          %v1857 = vrcp.pop %v1685
          %v1858 = vmul.f32 %v1685, %v1857
          %v1859 = vsub.f32 1.0, %v1858
          %v1860 = vmul.f32 %v1857, %v1859
          %v1861 = vadd.f32 %v1857, %v1860
          %vm1862 = vweird.f32 %v1685
          %vm1863 = vweird.f32 %v1857
          %vm1864 = vmor %vm1862, %vm1863
          %v1865 = vsel %vm1864, %v1857, %v1861
          %v1866 = vand.u32 2147483647, %v1685
          %vm1867 = vcmp.eq.f32.partialorder %v1866, 8.507059e+37
          %v1868 = vand.u32 %v1685, 2147483648
          %v1869 = vor.u32 1.1754944e-38, %v1868
          %v1870 = vsel %vm1867, %v1869, %v1865
          %v1871 = vrcp.pop %v1686
          %v1872 = vmul.f32 %v1686, %v1871
          %v1873 = vsub.f32 1.0, %v1872
          %v1874 = vmul.f32 %v1871, %v1873
          %v1875 = vadd.f32 %v1871, %v1874
          %vm1876 = vweird.f32 %v1686
          %vm1877 = vweird.f32 %v1871
          %vm1878 = vmor %vm1876, %vm1877
          %v1879 = vsel %vm1878, %v1871, %v1875
          %v1880 = vand.u32 2147483647, %v1686
          %vm1881 = vcmp.eq.f32.partialorder %v1880, 8.507059e+37
          %v1882 = vand.u32 %v1686, 2147483648
          %v1883 = vor.u32 1.1754944e-38, %v1882
          %v1884 = vsel %vm1881, %v1883, %v1879
          %v1885 = vrcp.pop %v1687
          %v1886 = vmul.f32 %v1687, %v1885
          %v1887 = vsub.f32 1.0, %v1886
          %v1888 = vmul.f32 %v1885, %v1887
          %v1889 = vadd.f32 %v1885, %v1888
          %vm1890 = vweird.f32 %v1687
          %vm1891 = vweird.f32 %v1885
          %vm1892 = vmor %vm1890, %vm1891
          %v1893 = vsel %vm1892, %v1885, %v1889
          %v1894 = vand.u32 2147483647, %v1687
          %vm1895 = vcmp.eq.f32.partialorder %v1894, 8.507059e+37
          %v1896 = vand.u32 %v1687, 2147483648
          %v1897 = vor.u32 1.1754944e-38, %v1896
          %v1898 = vsel %vm1895, %v1897, %v1893
          %v1899 = vrcp.pop %v1688
          %v1900 = vmul.f32 %v1688, %v1899
          %v1901 = vsub.f32 1.0, %v1900
          %v1902 = vmul.f32 %v1899, %v1901
          %v1903 = vadd.f32 %v1899, %v1902
          %vm1904 = vweird.f32 %v1688
          %vm1905 = vweird.f32 %v1899
          %vm1906 = vmor %vm1904, %vm1905
          %v1907 = vsel %vm1906, %v1899, %v1903
          %v1908 = vand.u32 2147483647, %v1688
          %vm1909 = vcmp.eq.f32.partialorder %v1908, 8.507059e+37
          %v1910 = vand.u32 %v1688, 2147483648
          %v1911 = vor.u32 1.1754944e-38, %v1910
          %v1912 = vsel %vm1909, %v1911, %v1907
          %1914 = vset.pattern.permute.xlu0 0
          %1915 = vperm.xlu0 %1914, %v1702
          %v1916 = vpop.permute.xlu0 %1915
          %1919 = vset.pattern.permute.xlu0 0
          %1920 = vperm.xlu0 %1919, %v1716
          %v1921 = vpop.permute.xlu0 %1920
          %1924 = vset.pattern.permute.xlu0 0
          %1925 = vperm.xlu0 %1924, %v1730
          %v1926 = vpop.permute.xlu0 %1925
          %1929 = vset.pattern.permute.xlu0 0
          %1930 = vperm.xlu0 %1929, %v1744
          %v1931 = vpop.permute.xlu0 %1930
          %1934 = vset.pattern.permute.xlu0 0
          %1935 = vperm.xlu0 %1934, %v1758
          %v1936 = vpop.permute.xlu0 %1935
          %1939 = vset.pattern.permute.xlu0 0
          %1940 = vperm.xlu0 %1939, %v1772
          %v1941 = vpop.permute.xlu0 %1940
          %1944 = vset.pattern.permute.xlu0 0
          %1945 = vperm.xlu0 %1944, %v1786
          %v1946 = vpop.permute.xlu0 %1945
          %1949 = vset.pattern.permute.xlu0 0
          %1950 = vperm.xlu0 %1949, %v1800
          %v1951 = vpop.permute.xlu0 %1950
          %1954 = vset.pattern.permute.xlu0 0
          %1955 = vperm.xlu0 %1954, %v1814
          %v1956 = vpop.permute.xlu0 %1955
          %1959 = vset.pattern.permute.xlu0 0
          %1960 = vperm.xlu0 %1959, %v1828
          %v1961 = vpop.permute.xlu0 %1960
          %1964 = vset.pattern.permute.xlu0 0
          %1965 = vperm.xlu0 %1964, %v1842
          %v1966 = vpop.permute.xlu0 %1965
          %1969 = vset.pattern.permute.xlu0 0
          %1970 = vperm.xlu0 %1969, %v1856
          %v1971 = vpop.permute.xlu0 %1970
          %1974 = vset.pattern.permute.xlu0 0
          %1975 = vperm.xlu0 %1974, %v1870
          %v1976 = vpop.permute.xlu0 %1975
          %1979 = vset.pattern.permute.xlu0 0
          %1980 = vperm.xlu0 %1979, %v1884
          %v1981 = vpop.permute.xlu0 %1980
          %1984 = vset.pattern.permute.xlu0 0
          %1985 = vperm.xlu0 %1984, %v1898
          %v1986 = vpop.permute.xlu0 %1985
          %1989 = vset.pattern.permute.xlu0 0
          %1990 = vperm.xlu0 %1989, %v1912
          %v1991 = vpop.permute.xlu0 %1990
          %v1993 = vmul.f32 %v1657, %v1916
          %v1994 = vmul.f32 %v1658, %v1921
          %v1995 = vmul.f32 %v1659, %v1926
          %v1996 = vmul.f32 %v1660, %v1931
          %v1997 = vmul.f32 %v1661, %v1936
          %v1998 = vmul.f32 %v1662, %v1941
          %v1999 = vmul.f32 %v1663, %v1946
          %v2000 = vmul.f32 %v1664, %v1951
          %v2001 = vmul.f32 %v1665, %v1956
          %v2002 = vmul.f32 %v1666, %v1961
          %v2003 = vmul.f32 %v1667, %v1966
          %v2004 = vmul.f32 %v1668, %v1971
          %v2005 = vmul.f32 %v1669, %v1976
          %v2006 = vmul.f32 %v1670, %v1981
          %v2007 = vmul.f32 %v1671, %v1986
          %v2008 = vmul.f32 %v1672, %v1991
          %v2009 = vpack.c.bf16 %v1993, %v1993
          %v2010 = vpack.c.bf16 %v1994, %v1994
          %v2011 = vpack.c.bf16 %v1995, %v1995
          %v2012 = vpack.c.bf16 %v1996, %v1996
          %v2013 = vpack.c.bf16 %v1997, %v1997
          %v2014 = vpack.c.bf16 %v1998, %v1998
          %v2015 = vpack.c.bf16 %v1999, %v1999
          %v2016 = vpack.c.bf16 %v2000, %v2000
          %v2017 = vpack.c.bf16 %v2001, %v2001
          %v2018 = vpack.c.bf16 %v2002, %v2002
          %v2019 = vpack.c.bf16 %v2003, %v2003
          %v2020 = vpack.c.bf16 %v2004, %v2004
          %v2021 = vpack.c.bf16 %v2005, %v2005
          %v2022 = vpack.c.bf16 %v2006, %v2006
          %v2023 = vpack.c.bf16 %v2007, %v2007
          %v2024 = vpack.c.bf16 %v2008, %v2008
          %2025 = vst [vmem:[%s346] sm:$0xf] %v2009
          %2026 = vst [vmem:[%s346 + $0x4] sm:$0xf] %v2010
          %2027 = vst [vmem:[%s346 + $0x8] sm:$0xf] %v2011
          %2028 = vst [vmem:[%s346 + $0xc] sm:$0xf] %v2012
          %2029 = vst [vmem:[%s346 + $0x10] sm:$0xf] %v2013
          %2030 = vst [vmem:[%s346 + $0x14] sm:$0xf] %v2014
          %2031 = vst [vmem:[%s346 + $0x18] sm:$0xf] %v2015
          %2032 = vst [vmem:[%s346 + $0x1c] sm:$0xf] %v2016
          %2033 = vst [vmem:[%s346 + $0x20] sm:$0xf] %v2017
          %2034 = vst [vmem:[%s346 + $0x24] sm:$0xf] %v2018
          %2035 = vst [vmem:[%s346 + $0x28] sm:$0xf] %v2019
          %2036 = vst [vmem:[%s346 + $0x2c] sm:$0xf] %v2020
          %2037 = vst [vmem:[%s346 + $0x30] sm:$0xf] %v2021
          %2038 = vst [vmem:[%s346 + $0x34] sm:$0xf] %v2022
          %2039 = vst [vmem:[%s346 + $0x38] sm:$0xf] %v2023
          %2040 = vst [vmem:[%s346 + $0x3c] sm:$0xf] %v2024
        $region48: #{generator_self_attention.4} parent=39 // pred_fallthru
          _
        %s2041 = sand.u32 %s190, 1
        %s2042 = sand.u32 %s190, 1
        %s2043 = smul.addr %s2042, 64
        %s2044 = scalar_lea.vmem [#allocation7], %s2043
        // Predicated region
        $region49: #{generator_self_attention.4} parent=39 // pred_check
          %p2045 = pneg %p200
        $region50: #{generator_self_attention.4} parent=39 // pred_check_branch
          %2047 = sbr.rel (%p2045) target = $region52
        $region51: #{generator_self_attention.4} parent=39 // pred_region
          %s2048 = smul.u32 16, %s24
          %s2049 = smul.addr %s2048, 2
          %s2050 = sadd.s32 %s23, %s2049
          %s2051 = smul.addr %s22, 32
          %s2052 = sadd.s32 %s2050, %s2051
          %s2053 = smul.addr %s2052, 4
          %s2054 = scalar_lea.vmem %s5, %s2053
          // Predicated region
          $region53: #{generator_self_attention.4} parent=51 // pred_check
            _
          $region54: #{generator_self_attention.4} parent=51 // pred_check_branch
            %2056 = sbr.rel (0) target = $region56
          $region55: #{generator_self_attention.4} parent=51 // pred_region
            // Predicated region
            $region57: #{generator_self_attention.4} parent=55 // pred_check
              _
            $region58: #{generator_self_attention.4} parent=55 // pred_check_branch
              %2058 = sbr.rel target = $region60
            $region59: #{generator_self_attention.4} parent=55 // pred_region
              // Predicated region
              $region72: #{generator_self_attention.4} parent=59 // pred_check
                _
              $region73: #{generator_self_attention.4} parent=59 // pred_check_branch
                %2104 = sbr.rel (0) target = $region75
              $region74: #{generator_self_attention.4} parent=59 // pred_region
                loop: start=0, step=1, limit=1
                $region76: #{generator_self_attention.4} parent=74 // loop_pre_header
                  _
                $region77: #{generator_self_attention.4} parent=74 // loop_header
                  %s2106 = sphi 0, %s2110
                  %p2107 = scmp.ge.s32.totalorder %s2106, 1
                  %s2111 = sphi %s2044, %s2044
                  %s2112 = sphi %s2054, %s2054
                $region78: #{generator_self_attention.4} parent=74 // loop_header_branch
                  %2109 = sbr.rel (%p2107) target = $region82
                $region79: #{generator_self_attention.4} parent=74 // loop_body
                  _
                $region80: #{generator_self_attention.4} parent=74 // loop_footer
                  %s2110 = sadd.s32 1, %s2106
                $region81: #{generator_self_attention.4} parent=74 // loop_footer_branch
                  %2105 = sbr.rel target = $region77
                $region82: #{generator_self_attention.4} parent=74 // loop_exit
                  _
                %s2114 = ssub.s32 16, 1
                loop: start=0, step=1, limit=1
                $region83: #{generator_self_attention.4} parent=74 // loop_pre_header
                  _
                $region84: #{generator_self_attention.4} parent=74 // loop_header
                  %s2116 = sphi 0, %s2120
                  %p2117 = scmp.ge.s32.totalorder %s2116, 1
                  %s2121 = sphi %s2044, %s2044
                  %s2122 = sphi %s2054, %s2054
                $region85: #{generator_self_attention.4} parent=74 // loop_header_branch
                  %2119 = sbr.rel (%p2117) target = $region89
                $region86: #{generator_self_attention.4} parent=74 // loop_body
                  %v2123 = vld [vmem:[%s2121] sm:%s2114]
                  %2124 = vst [vmem:[%s2122] sm:%s2114] %v2123
                  %v2125 = vld [vmem:[%s2121 + $0x4] sm:%s2114]
                  %2126 = vst [vmem:[%s2122 + $0x8] sm:%s2114] %v2125
                  %v2127 = vld [vmem:[%s2121 + $0x8] sm:%s2114]
                  %2128 = vst [vmem:[%s2122 + $0x10] sm:%s2114] %v2127
                  %v2129 = vld [vmem:[%s2121 + $0xc] sm:%s2114]
                  %2130 = vst [vmem:[%s2122 + $0x18] sm:%s2114] %v2129
                  %v2131 = vld [vmem:[%s2121 + $0x10] sm:%s2114]
                  %2132 = vst [vmem:[%s2122 + $0x20] sm:%s2114] %v2131
                  %v2133 = vld [vmem:[%s2121 + $0x14] sm:%s2114]
                  %2134 = vst [vmem:[%s2122 + $0x28] sm:%s2114] %v2133
                  %v2135 = vld [vmem:[%s2121 + $0x18] sm:%s2114]
                  %2136 = vst [vmem:[%s2122 + $0x30] sm:%s2114] %v2135
                  %v2137 = vld [vmem:[%s2121 + $0x1c] sm:%s2114]
                  %2138 = vst [vmem:[%s2122 + $0x38] sm:%s2114] %v2137
                  %v2139 = vld [vmem:[%s2121 + $0x20] sm:%s2114]
                  %2140 = vst [vmem:[%s2122 + $0x40] sm:%s2114] %v2139
                  %v2141 = vld [vmem:[%s2121 + $0x24] sm:%s2114]
                  %2142 = vst [vmem:[%s2122 + $0x48] sm:%s2114] %v2141
                  %v2143 = vld [vmem:[%s2121 + $0x28] sm:%s2114]
                  %2144 = vst [vmem:[%s2122 + $0x50] sm:%s2114] %v2143
                  %v2145 = vld [vmem:[%s2121 + $0x2c] sm:%s2114]
                  %2146 = vst [vmem:[%s2122 + $0x58] sm:%s2114] %v2145
                  %v2147 = vld [vmem:[%s2121 + $0x30] sm:%s2114]
                  %2148 = vst [vmem:[%s2122 + $0x60] sm:%s2114] %v2147
                  %v2149 = vld [vmem:[%s2121 + $0x34] sm:%s2114]
                  %2150 = vst [vmem:[%s2122 + $0x68] sm:%s2114] %v2149
                  %v2151 = vld [vmem:[%s2121 + $0x38] sm:%s2114]
                  %2152 = vst [vmem:[%s2122 + $0x70] sm:%s2114] %v2151
                  %v2153 = vld [vmem:[%s2121 + $0x3c] sm:%s2114]
                  %2154 = vst [vmem:[%s2122 + $0x78] sm:%s2114] %v2153
                $region87: #{generator_self_attention.4} parent=74 // loop_footer
                  %s2120 = sadd.s32 1, %s2116
                $region88: #{generator_self_attention.4} parent=74 // loop_footer_branch
                  %2115 = sbr.rel target = $region84
                $region89: #{generator_self_attention.4} parent=74 // loop_exit
                  _
              $region75: #{generator_self_attention.4} parent=59 // pred_fallthru
                _
            $region60: #{generator_self_attention.4} parent=55 // pred_fallthru
              _
            // Predicated region
            $region61: #{generator_self_attention.4} parent=55 // pred_check
              _
            $region62: #{generator_self_attention.4} parent=55 // pred_check_branch
              %2060 = sbr.rel (0) target = $region64
            $region63: #{generator_self_attention.4} parent=55 // pred_region
              %s2062 = ssub.s32 16, 1
              loop: start=0, step=1, limit=1
              $region65: #{generator_self_attention.4} parent=63 // loop_pre_header
                _
              $region66: #{generator_self_attention.4} parent=63 // loop_header
                %s2064 = sphi 0, %s2068
                %p2065 = scmp.ge.s32.totalorder %s2064, 1
                %s2069 = sphi %s2044, %s2044
                %s2070 = sphi %s2054, %s2054
              $region67: #{generator_self_attention.4} parent=63 // loop_header_branch
                %2067 = sbr.rel (%p2065) target = $region71
              $region68: #{generator_self_attention.4} parent=63 // loop_body
                %v2071 = vld [vmem:[%s2069] sm:%s2062]
                %2072 = vst [vmem:[%s2070] sm:%s2062] %v2071
                %v2073 = vld [vmem:[%s2069 + $0x4] sm:%s2062]
                %2074 = vst [vmem:[%s2070 + $0x8] sm:%s2062] %v2073
                %v2075 = vld [vmem:[%s2069 + $0x8] sm:%s2062]
                %2076 = vst [vmem:[%s2070 + $0x10] sm:%s2062] %v2075
                %v2077 = vld [vmem:[%s2069 + $0xc] sm:%s2062]
                %2078 = vst [vmem:[%s2070 + $0x18] sm:%s2062] %v2077
                %v2079 = vld [vmem:[%s2069 + $0x10] sm:%s2062]
                %2080 = vst [vmem:[%s2070 + $0x20] sm:%s2062] %v2079
                %v2081 = vld [vmem:[%s2069 + $0x14] sm:%s2062]
                %2082 = vst [vmem:[%s2070 + $0x28] sm:%s2062] %v2081
                %v2083 = vld [vmem:[%s2069 + $0x18] sm:%s2062]
                %2084 = vst [vmem:[%s2070 + $0x30] sm:%s2062] %v2083
                %v2085 = vld [vmem:[%s2069 + $0x1c] sm:%s2062]
                %2086 = vst [vmem:[%s2070 + $0x38] sm:%s2062] %v2085
                %v2087 = vld [vmem:[%s2069 + $0x20] sm:%s2062]
                %2088 = vst [vmem:[%s2070 + $0x40] sm:%s2062] %v2087
                %v2089 = vld [vmem:[%s2069 + $0x24] sm:%s2062]
                %2090 = vst [vmem:[%s2070 + $0x48] sm:%s2062] %v2089
                %v2091 = vld [vmem:[%s2069 + $0x28] sm:%s2062]
                %2092 = vst [vmem:[%s2070 + $0x50] sm:%s2062] %v2091
                %v2093 = vld [vmem:[%s2069 + $0x2c] sm:%s2062]
                %2094 = vst [vmem:[%s2070 + $0x58] sm:%s2062] %v2093
                %v2095 = vld [vmem:[%s2069 + $0x30] sm:%s2062]
                %2096 = vst [vmem:[%s2070 + $0x60] sm:%s2062] %v2095
                %v2097 = vld [vmem:[%s2069 + $0x34] sm:%s2062]
                %2098 = vst [vmem:[%s2070 + $0x68] sm:%s2062] %v2097
                %v2099 = vld [vmem:[%s2069 + $0x38] sm:%s2062]
                %2100 = vst [vmem:[%s2070 + $0x70] sm:%s2062] %v2099
                %v2101 = vld [vmem:[%s2069 + $0x3c] sm:%s2062]
                %2102 = vst [vmem:[%s2070 + $0x78] sm:%s2062] %v2101
              $region69: #{generator_self_attention.4} parent=63 // loop_footer
                %s2068 = sadd.s32 1, %s2064
              $region70: #{generator_self_attention.4} parent=63 // loop_footer_branch
                %2063 = sbr.rel target = $region66
              $region71: #{generator_self_attention.4} parent=63 // loop_exit
                _
            $region64: #{generator_self_attention.4} parent=55 // pred_fallthru
              _
          $region56: #{generator_self_attention.4} parent=51 // pred_fallthru
            _
          %2155 = vnop
        $region52: #{generator_self_attention.4} parent=39 // pred_fallthru
          _
      $region40: #{generator_self_attention.4} parent=5 // pred_fallthru
        _
      %p2156 = scmp.le.s32.totalorder 2, %s11
      // Predicated region
      $region90: #{generator_self_attention.4} parent=5 // pred_check
        %p2157 = pneg %p2156
      $region91: #{generator_self_attention.4} parent=5 // pred_check_branch
        %2159 = sbr.rel (%p2157) target = $region93
      $region92: #{generator_self_attention.4} parent=5 // pred_region
        %s2160 = ssub.s32 %s11, 2
        // Predicated region
        $region94: #{generator_self_attention.4} parent=92 // pred_check
          %p2161 = pneg %p206
        $region95: #{generator_self_attention.4} parent=92 // pred_check_branch
          %2163 = sbr.rel (%p2161) target = $region97
        $region96: #{generator_self_attention.4} parent=92 // pred_region
          %s2164 = sand.u32 %s191, 1
          %s2165 = sand.u32 %s191, 1
          %s2166 = smul.addr %s2165, 64
          %s2167 = scalar_lea.vmem [#allocation7], %s2166
        $region97: #{generator_self_attention.4} parent=92 // pred_fallthru
          _
      $region93: #{generator_self_attention.4} parent=5 // pred_fallthru
        _
    $region6: #{generator_self_attention.4} parent=1 // loop_footer
      %s15 = sadd.s32 1, %s11
    $region7: #{generator_self_attention.4} parent=1 // loop_footer_branch
      %10 = sbr.rel target = $region3
    $region8: #{generator_self_attention.4} parent=1 // loop_exit
      _

// kernel: generator_self_attention.3
$region0: #{generator_self_attention.3}
  #allocation0 [shape = 'u32[]', space=smem, size = 0x4, offset = 0x4, fixed_abs, tag = 'smem constant byte address 0x4 - core index']
  #allocation1 [shape = 'u32[72,128]{1,0:T(1,128)}', space=vmem, size = 0x9000, scoped, tag = 'internal scratch']
  %s0 = inlined_call_operand.vmem [shape: f32[256,128], index: 0, kind: input, shape index: {}]
  %s1 = inlined_call_operand.vmem [shape: f32[1,128], index: 1, kind: input, shape index: {}]
  %s2 = inlined_call_operand.vmem [shape: bf16[128,768], index: 2, kind: input, shape index: {}]
  %s3 = inlined_call_operand.vmem [shape: f32[1,768], index: 3, kind: input, shape index: {}]
  %s4 = inlined_call_operand.vmem [shape: bf16[6,256,128], index: 4, kind: output, shape index: {}]
  %s5 = sld [smem:[#allocation0]]
  $region86: #{generator_self_attention.3} parent=0
    _
  %s7 = ssub.s32 1, %s5
  %s8 = scalar_select 0, %s7, %s5
  $region1: #{generator_self_attention.3} parent=0
    #allocation2 [shape = 'u8[393216]{0}', space=vmem, size = 0x60000, scoped, tag = 'output window, operand 0']
    loop: start=0, step=1, limit=4
    $region2: #{generator_self_attention.3} parent=1 // loop_pre_header
      _
    $region3: #{generator_self_attention.3} parent=1 // loop_header
      %s10 = sphi 0, %s14
      %p11 = scmp.ge.s32.totalorder %s10, 4
      %s20 = sphi 0, %s22
      %s23 = sphi 0, %s20
      %s24 = sphi 0, %s23
      %s40 = sphi 0, %s24
      %s44 = sphi 0, %s44
      %s46 = sphi 0, %s44
      %s47 = sphi 0, %s46
      %s61 = sphi 0, %s47
      %s65 = sphi 0, %s65
      %s67 = sphi 0, %s65
      %s68 = sphi 0, %s67
      %s82 = sphi 0, %s68
      %s86 = sphi 0, %s86
      %s88 = sphi 0, %s86
      %s89 = sphi 0, %s88
      %s103 = sphi 0, %s89
      %s109 = sphi 0, %s111
      %s112 = sphi 0, %s109
      %s113 = sphi 0, %s112
      %s129 = sphi 0, %s113
    $region4: #{generator_self_attention.3} parent=1 // loop_header_branch
      %13 = sbr.rel (%p11) target = $region8
    $region5: #{generator_self_attention.3} parent=1 // loop_body
      %s15 = ssub.s32 %s10, 1
      %s16 = ssub.s32 %s10, 2
      %s17 = sadd.s32 %s10, 1
      %s18 = ssub.s32 %s10, %s17
      %p19 = scmp.eq.s32.totalorder %s18, 0
      %s21 = sadd.s32 %s20, 1
      %s22 = scalar_select %p19, %s20, %s21
      %p25 = pneg %p19
      %p26 = scmp.eq.s32.totalorder %s10, 1
      %p27 = por %p25, %p26
      %p28 = scmp.ne.s32.totalorder %s20, %s23
      %p29 = scmp.eq.s32.totalorder %s10, 0
      %p30 = por %p28, %p29
      %p31 = scmp.ne.s32.totalorder %s20, %s23
      %p32 = scmp.eq.s32.totalorder %s15, 1
      %p33 = por %p31, %p32
      %p34 = scmp.ne.s32.totalorder %s23, %s24
      %p35 = scmp.eq.s32.totalorder %s15, 0
      %p36 = por %p34, %p35
      %p37 = scmp.ne.s32.totalorder %s23, %s24
      %p38 = scmp.eq.s32.totalorder %s16, 1
      %p39 = por %p37, %p38
      %p41 = scmp.ne.s32.totalorder %s24, %s40
      %p42 = scmp.eq.s32.totalorder %s16, 0
      %p43 = por %p41, %p42
      %s45 = sadd.s32 %s44, 1
      %p48 = scmp.eq.s32.totalorder %s10, 1
      %p49 = scmp.ne.s32.totalorder %s44, %s46
      %p50 = scmp.eq.s32.totalorder %s10, 0
      %p51 = por %p49, %p50
      %p52 = scmp.ne.s32.totalorder %s44, %s46
      %p53 = scmp.eq.s32.totalorder %s15, 1
      %p54 = por %p52, %p53
      %p55 = scmp.ne.s32.totalorder %s46, %s47
      %p56 = scmp.eq.s32.totalorder %s15, 0
      %p57 = por %p55, %p56
      %p58 = scmp.ne.s32.totalorder %s46, %s47
      %p59 = scmp.eq.s32.totalorder %s16, 1
      %p60 = por %p58, %p59
      %p62 = scmp.ne.s32.totalorder %s47, %s61
      %p63 = scmp.eq.s32.totalorder %s16, 0
      %p64 = por %p62, %p63
      %s66 = sadd.s32 %s65, 1
      %p69 = scmp.eq.s32.totalorder %s10, 1
      %p70 = scmp.ne.s32.totalorder %s65, %s67
      %p71 = scmp.eq.s32.totalorder %s10, 0
      %p72 = por %p70, %p71
      %p73 = scmp.ne.s32.totalorder %s65, %s67
      %p74 = scmp.eq.s32.totalorder %s15, 1
      %p75 = por %p73, %p74
      %p76 = scmp.ne.s32.totalorder %s67, %s68
      %p77 = scmp.eq.s32.totalorder %s15, 0
      %p78 = por %p76, %p77
      %p79 = scmp.ne.s32.totalorder %s67, %s68
      %p80 = scmp.eq.s32.totalorder %s16, 1
      %p81 = por %p79, %p80
      %p83 = scmp.ne.s32.totalorder %s68, %s82
      %p84 = scmp.eq.s32.totalorder %s16, 0
      %p85 = por %p83, %p84
      %s87 = sadd.s32 %s86, 1
      %p90 = scmp.eq.s32.totalorder %s10, 1
      %p91 = scmp.ne.s32.totalorder %s86, %s88
      %p92 = scmp.eq.s32.totalorder %s10, 0
      %p93 = por %p91, %p92
      %p94 = scmp.ne.s32.totalorder %s86, %s88
      %p95 = scmp.eq.s32.totalorder %s15, 1
      %p96 = por %p94, %p95
      %p97 = scmp.ne.s32.totalorder %s88, %s89
      %p98 = scmp.eq.s32.totalorder %s15, 0
      %p99 = por %p97, %p98
      %p100 = scmp.ne.s32.totalorder %s88, %s89
      %p101 = scmp.eq.s32.totalorder %s16, 1
      %p102 = por %p100, %p101
      %p104 = scmp.ne.s32.totalorder %s89, %s103
      %p105 = scmp.eq.s32.totalorder %s16, 0
      %p106 = por %p104, %p105
      %s107 = ssub.s32 %s10, %s17
      %p108 = scmp.eq.s32.totalorder %s107, 0
      %s110 = sadd.s32 %s109, 1
      %s111 = scalar_select %p108, %s109, %s110
      %p114 = pneg %p108
      %p115 = scmp.eq.s32.totalorder %s10, 1
      %p116 = por %p114, %p115
      %p117 = scmp.ne.s32.totalorder %s109, %s112
      %p118 = scmp.eq.s32.totalorder %s10, 0
      %p119 = por %p117, %p118
      %p120 = scmp.ne.s32.totalorder %s109, %s112
      %p121 = scmp.eq.s32.totalorder %s15, 1
      %p122 = por %p120, %p121
      %p123 = scmp.ne.s32.totalorder %s112, %s113
      %p124 = scmp.eq.s32.totalorder %s15, 0
      %p125 = por %p123, %p124
      %p126 = scmp.ne.s32.totalorder %s112, %s113
      %p127 = scmp.eq.s32.totalorder %s16, 1
      %p128 = por %p126, %p127
      %p130 = scmp.ne.s32.totalorder %s113, %s129
      %p131 = scmp.eq.s32.totalorder %s16, 0
      %p132 = por %p130, %p131
      %p133 = scmp.le.s32.totalorder 1, %s10
      %p134 = scmp.lt.s32.totalorder %s10, 3
      %p135 = pnand %p133, %p134
      %p136 = pneg %p135
      // Predicated region
      $region9: #{generator_self_attention.3} parent=5 // pred_check
        _
      $region10: #{generator_self_attention.3} parent=5 // pred_check_branch
        %138 = sbr.rel (%p135) target = $region12
      $region11: #{generator_self_attention.3} parent=5 // pred_region
        %s139 = ssub.s32 %s10, 1
        // Predicated region
        $region13: #{generator_self_attention.3} parent=11 // pred_check
          %p140 = pneg %p57
        $region14: #{generator_self_attention.3} parent=11 // pred_check_branch
          %142 = sbr.rel (%p140) target = $region16
        $region15: #{generator_self_attention.3} parent=11 // pred_region
          _
        $region16: #{generator_self_attention.3} parent=11 // pred_fallthru
          _
        // Predicated region
        $region17: #{generator_self_attention.3} parent=11 // pred_check
          %p143 = pneg %p78
        $region18: #{generator_self_attention.3} parent=11 // pred_check_branch
          %145 = sbr.rel (%p143) target = $region20
        $region19: #{generator_self_attention.3} parent=11 // pred_region
          _
        $region20: #{generator_self_attention.3} parent=11 // pred_fallthru
          _
        // Predicated region
        $region21: #{generator_self_attention.3} parent=11 // pred_check
          %p146 = pneg %p99
        $region22: #{generator_self_attention.3} parent=11 // pred_check_branch
          %148 = sbr.rel (%p146) target = $region24
        $region23: #{generator_self_attention.3} parent=11 // pred_region
          _
        $region24: #{generator_self_attention.3} parent=11 // pred_fallthru
          _
      $region12: #{generator_self_attention.3} parent=5 // pred_fallthru
        _
      %p149 = scmp.lt.s32.totalorder %s10, 2
      // Predicated region
      $region25: #{generator_self_attention.3} parent=5 // pred_check
        %p150 = pneg %p149
      $region26: #{generator_self_attention.3} parent=5 // pred_check_branch
        %152 = sbr.rel (%p150) target = $region28
      $region27: #{generator_self_attention.3} parent=5 // pred_region
        // Predicated region
        $region29: #{generator_self_attention.3} parent=27 // pred_check
          %p153 = pneg %p30
        $region30: #{generator_self_attention.3} parent=27 // pred_check_branch
          %155 = sbr.rel (%p153) target = $region32
        $region31: #{generator_self_attention.3} parent=27 // pred_region
          %s156 = smul.u32 16, %s10
          %p157 = scmp.lt.s32.totalorder %s156, 31
          %s158 = scalar_select %p157, %s156, 31
          %s159 = smul.addr %s158, 8
          %s160 = scalar_lea.vmem %s0, %s159
          %s161 = smul.u32 16, %s10
        $region32: #{generator_self_attention.3} parent=27 // pred_fallthru
          _
      $region28: #{generator_self_attention.3} parent=5 // pred_fallthru
        _
      %p162 = scmp.le.s32.totalorder 1, %s10
      %p163 = scmp.lt.s32.totalorder %s10, 3
      %p164 = pnand %p162, %p163
      %p165 = pneg %p164
      // Predicated region
      $region33: #{generator_self_attention.3} parent=5 // pred_check
        _
      $region34: #{generator_self_attention.3} parent=5 // pred_check_branch
        %167 = sbr.rel (%p164) target = $region36
      $region35: #{generator_self_attention.3} parent=5 // pred_region
        %s168 = ssub.s32 %s10, 1
        %s169 = smul.u32 16, %s15
        %p170 = scmp.lt.s32.totalorder %s169, 31
        %s171 = scalar_select %p170, %s169, 31
        %s172 = smul.addr %s171, 8
        %s173 = scalar_lea.vmem %s0, %s172
        %p174 = pneg %p36
        %p175 = pneg %p33
        %p176 = pneg %p57
        %p177 = pneg %p54
        %p178 = pneg %p78
        %p179 = pneg %p75
        %p180 = pneg %p99
        %p181 = pneg %p96
        %p182 = pneg %p125
        %p183 = pneg %p122
        %s184 = sand.u32 %s112, 1
        %s185 = sand.u32 %s112, 1
        %s186 = smul.addr %s185, 384
        %s187 = scalar_lea.vmem [#allocation2], %s186
        %s188 = smul.u32 16, %s15
        %p189 = scmp.lt.s32.totalorder %s188, 31
        %s190 = scalar_select %p189, %s188, 31
        %s191 = smul.addr %s190, 8
        %s192 = scalar_lea.vmem %s0, %s191
        %s193 = smul.u32 16, %s15
        %s194 = smul.u32 16, %s15
        %v195 = vld [vmem:[%s192] sm:$0xff]
        %v196 = vld [vmem:[%s192 + $0x8] sm:$0xff]
        %v197 = vld [vmem:[%s192 + $0x10] sm:$0xff]
        %v198 = vld [vmem:[%s192 + $0x18] sm:$0xff]
        %v199 = vld [vmem:[%s192 + $0x20] sm:$0xff]
        %v200 = vld [vmem:[%s192 + $0x28] sm:$0xff]
        %v201 = vld [vmem:[%s192 + $0x30] sm:$0xff]
        %v202 = vld [vmem:[%s192 + $0x38] sm:$0xff]
        %v203 = vld [vmem:[%s192 + $0x40] sm:$0xff]
        %v204 = vld [vmem:[%s192 + $0x48] sm:$0xff]
        %v205 = vld [vmem:[%s192 + $0x50] sm:$0xff]
        %v206 = vld [vmem:[%s192 + $0x58] sm:$0xff]
        %v207 = vld [vmem:[%s192 + $0x60] sm:$0xff]
        %v208 = vld [vmem:[%s192 + $0x68] sm:$0xff]
        %v209 = vld [vmem:[%s192 + $0x70] sm:$0xff]
        %v210 = vld [vmem:[%s192 + $0x78] sm:$0xff]
        %v211 = vmul.f32 %v195, %v195
        %v212 = vmul.f32 %v196, %v196
        %v213 = vmul.f32 %v197, %v197
        %v214 = vmul.f32 %v198, %v198
        %v215 = vmul.f32 %v199, %v199
        %v216 = vmul.f32 %v200, %v200
        %v217 = vmul.f32 %v201, %v201
        %v218 = vmul.f32 %v202, %v202
        %v219 = vmul.f32 %v203, %v203
        %v220 = vmul.f32 %v204, %v204
        %v221 = vmul.f32 %v205, %v205
        %v222 = vmul.f32 %v206, %v206
        %v223 = vmul.f32 %v207, %v207
        %v224 = vmul.f32 %v208, %v208
        %v225 = vmul.f32 %v209, %v209
        %v226 = vmul.f32 %v210, %v210
        %v227 = vld [vmem:[%s1] sm:$0x1]
        %v229 = vperm.slane %v227, 0
        %v231 = vmul.f32 %v211, %v229
        %v232 = vmul.f32 %v212, %v229
        %v233 = vmul.f32 %v213, %v229
        %v234 = vmul.f32 %v214, %v229
        %v235 = vmul.f32 %v215, %v229
        %v236 = vmul.f32 %v216, %v229
        %v237 = vmul.f32 %v217, %v229
        %v238 = vmul.f32 %v218, %v229
        %v239 = vmul.f32 %v219, %v229
        %v240 = vmul.f32 %v220, %v229
        %v241 = vmul.f32 %v221, %v229
        %v242 = vmul.f32 %v222, %v229
        %v243 = vmul.f32 %v223, %v229
        %v244 = vmul.f32 %v224, %v229
        %v245 = vmul.f32 %v225, %v229
        %v246 = vmul.f32 %v226, %v229
        %247 = vadd.xlane.f32.xlu0 %v231
        %v248 = vpop.xlane.xlu0 %247
        %249 = vadd.xlane.f32.xlu0 %v232
        %v250 = vpop.xlane.xlu0 %249
        %251 = vadd.xlane.f32.xlu0 %v233
        %v252 = vpop.xlane.xlu0 %251
        %253 = vadd.xlane.f32.xlu0 %v234
        %v254 = vpop.xlane.xlu0 %253
        %255 = vadd.xlane.f32.xlu0 %v235
        %v256 = vpop.xlane.xlu0 %255
        %257 = vadd.xlane.f32.xlu0 %v236
        %v258 = vpop.xlane.xlu0 %257
        %259 = vadd.xlane.f32.xlu0 %v237
        %v260 = vpop.xlane.xlu0 %259
        %261 = vadd.xlane.f32.xlu0 %v238
        %v262 = vpop.xlane.xlu0 %261
        %263 = vadd.xlane.f32.xlu0 %v239
        %v264 = vpop.xlane.xlu0 %263
        %265 = vadd.xlane.f32.xlu0 %v240
        %v266 = vpop.xlane.xlu0 %265
        %267 = vadd.xlane.f32.xlu0 %v241
        %v268 = vpop.xlane.xlu0 %267
        %269 = vadd.xlane.f32.xlu0 %v242
        %v270 = vpop.xlane.xlu0 %269
        %271 = vadd.xlane.f32.xlu0 %v243
        %v272 = vpop.xlane.xlu0 %271
        %273 = vadd.xlane.f32.xlu0 %v244
        %v274 = vpop.xlane.xlu0 %273
        %275 = vadd.xlane.f32.xlu0 %v245
        %v276 = vpop.xlane.xlu0 %275
        %277 = vadd.xlane.f32.xlu0 %v246
        %v278 = vpop.xlane.xlu0 %277
        %v279 = vadd.f32 %v248, 1e-06
        %v280 = vadd.f32 %v250, 1e-06
        %v281 = vadd.f32 %v252, 1e-06
        %v282 = vadd.f32 %v254, 1e-06
        %v283 = vadd.f32 %v256, 1e-06
        %v284 = vadd.f32 %v258, 1e-06
        %v285 = vadd.f32 %v260, 1e-06
        %v286 = vadd.f32 %v262, 1e-06
        %v287 = vadd.f32 %v264, 1e-06
        %v288 = vadd.f32 %v266, 1e-06
        %v289 = vadd.f32 %v268, 1e-06
        %v290 = vadd.f32 %v270, 1e-06
        %v291 = vadd.f32 %v272, 1e-06
        %v292 = vadd.f32 %v274, 1e-06
        %v293 = vadd.f32 %v276, 1e-06
        %v294 = vadd.f32 %v278, 1e-06
        %v295 = vrsqrt.pop %v279
        %v296 = vmul.f32 %v295, %v279
        %v297 = vmul.f32 %v296, %v295
        %v298 = vmul.f32 0.5, %v297
        %v299 = vsub.f32 1.5, %v298
        %v300 = vmul.f32 %v295, %v299
        %vm301 = vweird.f32 %v279
        %vm302 = vweird.f32 %v295
        %vm303 = vmor %vm301, %vm302
        %v304 = vsel %vm303, %v295, %v300
        %v305 = vrsqrt.pop %v280
        %v306 = vmul.f32 %v305, %v280
        %v307 = vmul.f32 %v306, %v305
        %v308 = vmul.f32 0.5, %v307
        %v309 = vsub.f32 1.5, %v308
        %v310 = vmul.f32 %v305, %v309
        %vm311 = vweird.f32 %v280
        %vm312 = vweird.f32 %v305
        %vm313 = vmor %vm311, %vm312
        %v314 = vsel %vm313, %v305, %v310
        %v315 = vrsqrt.pop %v281
        %v316 = vmul.f32 %v315, %v281
        %v317 = vmul.f32 %v316, %v315
        %v318 = vmul.f32 0.5, %v317
        %v319 = vsub.f32 1.5, %v318
        %v320 = vmul.f32 %v315, %v319
        %vm321 = vweird.f32 %v281
        %vm322 = vweird.f32 %v315
        %vm323 = vmor %vm321, %vm322
        %v324 = vsel %vm323, %v315, %v320
        %v325 = vrsqrt.pop %v282
        %v326 = vmul.f32 %v325, %v282
        %v327 = vmul.f32 %v326, %v325
        %v328 = vmul.f32 0.5, %v327
        %v329 = vsub.f32 1.5, %v328
        %v330 = vmul.f32 %v325, %v329
        %vm331 = vweird.f32 %v282
        %vm332 = vweird.f32 %v325
        %vm333 = vmor %vm331, %vm332
        %v334 = vsel %vm333, %v325, %v330
        %v335 = vrsqrt.pop %v283
        %v336 = vmul.f32 %v335, %v283
        %v337 = vmul.f32 %v336, %v335
        %v338 = vmul.f32 0.5, %v337
        %v339 = vsub.f32 1.5, %v338
        %v340 = vmul.f32 %v335, %v339
        %vm341 = vweird.f32 %v283
        %vm342 = vweird.f32 %v335
        %vm343 = vmor %vm341, %vm342
        %v344 = vsel %vm343, %v335, %v340
        %v345 = vrsqrt.pop %v284
        %v346 = vmul.f32 %v345, %v284
        %v347 = vmul.f32 %v346, %v345
        %v348 = vmul.f32 0.5, %v347
        %v349 = vsub.f32 1.5, %v348
        %v350 = vmul.f32 %v345, %v349
        %vm351 = vweird.f32 %v284
        %vm352 = vweird.f32 %v345
        %vm353 = vmor %vm351, %vm352
        %v354 = vsel %vm353, %v345, %v350
        %v355 = vrsqrt.pop %v285
        %v356 = vmul.f32 %v355, %v285
        %v357 = vmul.f32 %v356, %v355
        %v358 = vmul.f32 0.5, %v357
        %v359 = vsub.f32 1.5, %v358
        %v360 = vmul.f32 %v355, %v359
        %vm361 = vweird.f32 %v285
        %vm362 = vweird.f32 %v355
        %vm363 = vmor %vm361, %vm362
        %v364 = vsel %vm363, %v355, %v360
        %v365 = vrsqrt.pop %v286
        %v366 = vmul.f32 %v365, %v286
        %v367 = vmul.f32 %v366, %v365
        %v368 = vmul.f32 0.5, %v367
        %v369 = vsub.f32 1.5, %v368
        %v370 = vmul.f32 %v365, %v369
        %vm371 = vweird.f32 %v286
        %vm372 = vweird.f32 %v365
        %vm373 = vmor %vm371, %vm372
        %v374 = vsel %vm373, %v365, %v370
        %v375 = vrsqrt.pop %v287
        %v376 = vmul.f32 %v375, %v287
        %v377 = vmul.f32 %v376, %v375
        %v378 = vmul.f32 0.5, %v377
        %v379 = vsub.f32 1.5, %v378
        %v380 = vmul.f32 %v375, %v379
        %vm381 = vweird.f32 %v287
        %vm382 = vweird.f32 %v375
        %vm383 = vmor %vm381, %vm382
        %v384 = vsel %vm383, %v375, %v380
        %v385 = vrsqrt.pop %v288
        %v386 = vmul.f32 %v385, %v288
        %v387 = vmul.f32 %v386, %v385
        %v388 = vmul.f32 0.5, %v387
        %v389 = vsub.f32 1.5, %v388
        %v390 = vmul.f32 %v385, %v389
        %vm391 = vweird.f32 %v288
        %vm392 = vweird.f32 %v385
        %vm393 = vmor %vm391, %vm392
        %v394 = vsel %vm393, %v385, %v390
        %v395 = vrsqrt.pop %v289
        %v396 = vmul.f32 %v395, %v289
        %v397 = vmul.f32 %v396, %v395
        %v398 = vmul.f32 0.5, %v397
        %v399 = vsub.f32 1.5, %v398
        %v400 = vmul.f32 %v395, %v399
        %vm401 = vweird.f32 %v289
        %vm402 = vweird.f32 %v395
        %vm403 = vmor %vm401, %vm402
        %v404 = vsel %vm403, %v395, %v400
        %v405 = vrsqrt.pop %v290
        %v406 = vmul.f32 %v405, %v290
        %v407 = vmul.f32 %v406, %v405
        %v408 = vmul.f32 0.5, %v407
        %v409 = vsub.f32 1.5, %v408
        %v410 = vmul.f32 %v405, %v409
        %vm411 = vweird.f32 %v290
        %vm412 = vweird.f32 %v405
        %vm413 = vmor %vm411, %vm412
        %v414 = vsel %vm413, %v405, %v410
        %v415 = vrsqrt.pop %v291
        %v416 = vmul.f32 %v415, %v291
        %v417 = vmul.f32 %v416, %v415
        %v418 = vmul.f32 0.5, %v417
        %v419 = vsub.f32 1.5, %v418
        %v420 = vmul.f32 %v415, %v419
        %vm421 = vweird.f32 %v291
        %vm422 = vweird.f32 %v415
        %vm423 = vmor %vm421, %vm422
        %v424 = vsel %vm423, %v415, %v420
        %v425 = vrsqrt.pop %v292
        %v426 = vmul.f32 %v425, %v292
        %v427 = vmul.f32 %v426, %v425
        %v428 = vmul.f32 0.5, %v427
        %v429 = vsub.f32 1.5, %v428
        %v430 = vmul.f32 %v425, %v429
        %vm431 = vweird.f32 %v292
        %vm432 = vweird.f32 %v425
        %vm433 = vmor %vm431, %vm432
        %v434 = vsel %vm433, %v425, %v430
        %v435 = vrsqrt.pop %v293
        %v436 = vmul.f32 %v435, %v293
        %v437 = vmul.f32 %v436, %v435
        %v438 = vmul.f32 0.5, %v437
        %v439 = vsub.f32 1.5, %v438
        %v440 = vmul.f32 %v435, %v439
        %vm441 = vweird.f32 %v293
        %vm442 = vweird.f32 %v435
        %vm443 = vmor %vm441, %vm442
        %v444 = vsel %vm443, %v435, %v440
        %v445 = vrsqrt.pop %v294
        %v446 = vmul.f32 %v445, %v294
        %v447 = vmul.f32 %v446, %v445
        %v448 = vmul.f32 0.5, %v447
        %v449 = vsub.f32 1.5, %v448
        %v450 = vmul.f32 %v445, %v449
        %vm451 = vweird.f32 %v294
        %vm452 = vweird.f32 %v445
        %vm453 = vmor %vm451, %vm452
        %v454 = vsel %vm453, %v445, %v450
        %v455 = vmul.f32 %v195, %v304
        %v456 = vmul.f32 %v196, %v314
        %v457 = vmul.f32 %v197, %v324
        %v458 = vmul.f32 %v198, %v334
        %v459 = vmul.f32 %v199, %v344
        %v460 = vmul.f32 %v200, %v354
        %v461 = vmul.f32 %v201, %v364
        %v462 = vmul.f32 %v202, %v374
        %v463 = vmul.f32 %v203, %v384
        %v464 = vmul.f32 %v204, %v394
        %v465 = vmul.f32 %v205, %v404
        %v466 = vmul.f32 %v206, %v414
        %v467 = vmul.f32 %v207, %v424
        %v468 = vmul.f32 %v208, %v434
        %v469 = vmul.f32 %v209, %v444
        %v470 = vmul.f32 %v210, %v454
        %v471 = vpack.c.bf16 %v456, %v455
        %v472 = vpack.c.bf16 %v458, %v457
        %v473 = vpack.c.bf16 %v460, %v459
        %v474 = vpack.c.bf16 %v462, %v461
        %v475 = vpack.c.bf16 %v464, %v463
        %v476 = vpack.c.bf16 %v466, %v465
        %v477 = vpack.c.bf16 %v468, %v467
        %v478 = vpack.c.bf16 %v470, %v469
        %v479 = vld [vmem:[%s2] sm:$0xff]
        %v480 = vld [vmem:[%s2 + $0x8] sm:$0xff]
        %v481 = vld [vmem:[%s2 + $0x10] sm:$0xff]
        %v482 = vld [vmem:[%s2 + $0x18] sm:$0xff]
        %v483 = vld [vmem:[%s2 + $0x20] sm:$0xff]
        %v484 = vld [vmem:[%s2 + $0x28] sm:$0xff]
        %v485 = vld [vmem:[%s2 + $0x30] sm:$0xff]
        %v486 = vld [vmem:[%s2 + $0x38] sm:$0xff]
        %v487 = vld [vmem:[%s2 + $0x40] sm:$0xff]
        %v488 = vld [vmem:[%s2 + $0x48] sm:$0xff]
        %v489 = vld [vmem:[%s2 + $0x50] sm:$0xff]
        %v490 = vld [vmem:[%s2 + $0x58] sm:$0xff]
        %v491 = vld [vmem:[%s2 + $0x60] sm:$0xff]
        %v492 = vld [vmem:[%s2 + $0x68] sm:$0xff]
        %v493 = vld [vmem:[%s2 + $0x70] sm:$0xff]
        %v494 = vld [vmem:[%s2 + $0x78] sm:$0xff]
        %v495 = vld [vmem:[%s2 + $0x80] sm:$0xff]
        %v496 = vld [vmem:[%s2 + $0x88] sm:$0xff]
        %v497 = vld [vmem:[%s2 + $0x90] sm:$0xff]
        %v498 = vld [vmem:[%s2 + $0x98] sm:$0xff]
        %v499 = vld [vmem:[%s2 + $0xa0] sm:$0xff]
        %v500 = vld [vmem:[%s2 + $0xa8] sm:$0xff]
        %v501 = vld [vmem:[%s2 + $0xb0] sm:$0xff]
        %v502 = vld [vmem:[%s2 + $0xb8] sm:$0xff]
        %v503 = vld [vmem:[%s2 + $0xc0] sm:$0xff]
        %v504 = vld [vmem:[%s2 + $0xc8] sm:$0xff]
        %v505 = vld [vmem:[%s2 + $0xd0] sm:$0xff]
        %v506 = vld [vmem:[%s2 + $0xd8] sm:$0xff]
        %v507 = vld [vmem:[%s2 + $0xe0] sm:$0xff]
        %v508 = vld [vmem:[%s2 + $0xe8] sm:$0xff]
        %v509 = vld [vmem:[%s2 + $0xf0] sm:$0xff]
        %v510 = vld [vmem:[%s2 + $0xf8] sm:$0xff]
        %v511 = vld [vmem:[%s2 + $0x100] sm:$0xff]
        %v512 = vld [vmem:[%s2 + $0x108] sm:$0xff]
        %v513 = vld [vmem:[%s2 + $0x110] sm:$0xff]
        %v514 = vld [vmem:[%s2 + $0x118] sm:$0xff]
        %v515 = vld [vmem:[%s2 + $0x120] sm:$0xff]
        %v516 = vld [vmem:[%s2 + $0x128] sm:$0xff]
        %v517 = vld [vmem:[%s2 + $0x130] sm:$0xff]
        %v518 = vld [vmem:[%s2 + $0x138] sm:$0xff]
        %v519 = vld [vmem:[%s2 + $0x140] sm:$0xff]
        %v520 = vld [vmem:[%s2 + $0x148] sm:$0xff]
        %v521 = vld [vmem:[%s2 + $0x150] sm:$0xff]
        %v522 = vld [vmem:[%s2 + $0x158] sm:$0xff]
        %v523 = vld [vmem:[%s2 + $0x160] sm:$0xff]
        %v524 = vld [vmem:[%s2 + $0x168] sm:$0xff]
        %v525 = vld [vmem:[%s2 + $0x170] sm:$0xff]
        %v526 = vld [vmem:[%s2 + $0x178] sm:$0xff]
        %v527 = vld [vmem:[%s3] sm:$0x3f]
        %v529 = vperm.slane %v527, 0
        %v530 = vperm.slane %v527, 1
        %v531 = vperm.slane %v527, 2
        %v532 = vperm.slane %v527, 3
        %v533 = vperm.slane %v527, 4
        %v534 = vperm.slane %v527, 5
        %v589 = vunpack.c.l.b16 %v479
        %v590 = vunpack.c.h.b16 %v479
        %v591 = vunpack.c.l.b16 %v480
        %v592 = vunpack.c.h.b16 %v480
        %v593 = vunpack.c.l.b16 %v481
        %v594 = vunpack.c.h.b16 %v481
        %v595 = vunpack.c.l.b16 %v482
        %v596 = vunpack.c.h.b16 %v482
        %v597 = vunpack.c.l.b16 %v483
        %v598 = vunpack.c.h.b16 %v483
        %v599 = vunpack.c.l.b16 %v484
        %v600 = vunpack.c.h.b16 %v484
        %v601 = vunpack.c.l.b16 %v485
        %v602 = vunpack.c.h.b16 %v485
        %v603 = vunpack.c.l.b16 %v486
        %v604 = vunpack.c.h.b16 %v486
        %v605 = vunpack.c.l.b16 %v487
        %v606 = vunpack.c.h.b16 %v487
        %v607 = vunpack.c.l.b16 %v488
        %v608 = vunpack.c.h.b16 %v488
        %v609 = vunpack.c.l.b16 %v489
        %v610 = vunpack.c.h.b16 %v489
        %v611 = vunpack.c.l.b16 %v490
        %v612 = vunpack.c.h.b16 %v490
        %v613 = vunpack.c.l.b16 %v491
        %v614 = vunpack.c.h.b16 %v491
        %v615 = vunpack.c.l.b16 %v492
        %v616 = vunpack.c.h.b16 %v492
        %v617 = vunpack.c.l.b16 %v493
        %v618 = vunpack.c.h.b16 %v493
        %v619 = vunpack.c.l.b16 %v494
        %v620 = vunpack.c.h.b16 %v494
        %v621 = vunpack.c.l.b16 %v495
        %v622 = vunpack.c.h.b16 %v495
        %v623 = vunpack.c.l.b16 %v496
        %v624 = vunpack.c.h.b16 %v496
        %v625 = vunpack.c.l.b16 %v497
        %v626 = vunpack.c.h.b16 %v497
        %v627 = vunpack.c.l.b16 %v498
        %v628 = vunpack.c.h.b16 %v498
        %v629 = vunpack.c.l.b16 %v499
        %v630 = vunpack.c.h.b16 %v499
        %v631 = vunpack.c.l.b16 %v500
        %v632 = vunpack.c.h.b16 %v500
        %v633 = vunpack.c.l.b16 %v501
        %v634 = vunpack.c.h.b16 %v501
        %v635 = vunpack.c.l.b16 %v502
        %v636 = vunpack.c.h.b16 %v502
        %v637 = vunpack.c.l.b16 %v503
        %v638 = vunpack.c.h.b16 %v503
        %v639 = vunpack.c.l.b16 %v504
        %v640 = vunpack.c.h.b16 %v504
        %v641 = vunpack.c.l.b16 %v505
        %v642 = vunpack.c.h.b16 %v505
        %v643 = vunpack.c.l.b16 %v506
        %v644 = vunpack.c.h.b16 %v506
        %v645 = vunpack.c.l.b16 %v507
        %v646 = vunpack.c.h.b16 %v507
        %v647 = vunpack.c.l.b16 %v508
        %v648 = vunpack.c.h.b16 %v508
        %v649 = vunpack.c.l.b16 %v509
        %v650 = vunpack.c.h.b16 %v509
        %v651 = vunpack.c.l.b16 %v510
        %v652 = vunpack.c.h.b16 %v510
        %v653 = vunpack.c.l.b16 %v511
        %v654 = vunpack.c.h.b16 %v511
        %v655 = vunpack.c.l.b16 %v512
        %v656 = vunpack.c.h.b16 %v512
        %v657 = vunpack.c.l.b16 %v513
        %v658 = vunpack.c.h.b16 %v513
        %v659 = vunpack.c.l.b16 %v514
        %v660 = vunpack.c.h.b16 %v514
        %v661 = vunpack.c.l.b16 %v515
        %v662 = vunpack.c.h.b16 %v515
        %v663 = vunpack.c.l.b16 %v516
        %v664 = vunpack.c.h.b16 %v516
        %v665 = vunpack.c.l.b16 %v517
        %v666 = vunpack.c.h.b16 %v517
        %v667 = vunpack.c.l.b16 %v518
        %v668 = vunpack.c.h.b16 %v518
        %v669 = vunpack.c.l.b16 %v519
        %v670 = vunpack.c.h.b16 %v519
        %v671 = vunpack.c.l.b16 %v520
        %v672 = vunpack.c.h.b16 %v520
        %v673 = vunpack.c.l.b16 %v521
        %v674 = vunpack.c.h.b16 %v521
        %v675 = vunpack.c.l.b16 %v522
        %v676 = vunpack.c.h.b16 %v522
        %v677 = vunpack.c.l.b16 %v523
        %v678 = vunpack.c.h.b16 %v523
        %v679 = vunpack.c.l.b16 %v524
        %v680 = vunpack.c.h.b16 %v524
        %v681 = vunpack.c.l.b16 %v525
        %v682 = vunpack.c.h.b16 %v525
        %v683 = vunpack.c.l.b16 %v526
        %v684 = vunpack.c.h.b16 %v526
        %v685 = vpack.c.b16 %v595, %v589
        %v686 = vpack.c.b16 %v596, %v590
        %v687 = vpack.c.b16 %v597, %v591
        %v688 = vpack.c.b16 %v598, %v592
        %v689 = vpack.c.b16 %v599, %v593
        %v690 = vpack.c.b16 %v600, %v594
        %v691 = vpack.c.b16 %v607, %v601
        %v692 = vpack.c.b16 %v608, %v602
        %v693 = vpack.c.b16 %v609, %v603
        %v694 = vpack.c.b16 %v610, %v604
        %v695 = vpack.c.b16 %v611, %v605
        %v696 = vpack.c.b16 %v612, %v606
        %v697 = vpack.c.b16 %v619, %v613
        %v698 = vpack.c.b16 %v620, %v614
        %v699 = vpack.c.b16 %v621, %v615
        %v700 = vpack.c.b16 %v622, %v616
        %v701 = vpack.c.b16 %v623, %v617
        %v702 = vpack.c.b16 %v624, %v618
        %v703 = vpack.c.b16 %v631, %v625
        %v704 = vpack.c.b16 %v632, %v626
        %v705 = vpack.c.b16 %v633, %v627
        %v706 = vpack.c.b16 %v634, %v628
        %v707 = vpack.c.b16 %v635, %v629
        %v708 = vpack.c.b16 %v636, %v630
        %v709 = vpack.c.b16 %v643, %v637
        %v710 = vpack.c.b16 %v644, %v638
        %v711 = vpack.c.b16 %v645, %v639
        %v712 = vpack.c.b16 %v646, %v640
        %v713 = vpack.c.b16 %v647, %v641
        %v714 = vpack.c.b16 %v648, %v642
        %v715 = vpack.c.b16 %v655, %v649
        %v716 = vpack.c.b16 %v656, %v650
        %v717 = vpack.c.b16 %v657, %v651
        %v718 = vpack.c.b16 %v658, %v652
        %v719 = vpack.c.b16 %v659, %v653
        %v720 = vpack.c.b16 %v660, %v654
        %v721 = vpack.c.b16 %v667, %v661
        %v722 = vpack.c.b16 %v668, %v662
        %v723 = vpack.c.b16 %v669, %v663
        %v724 = vpack.c.b16 %v670, %v664
        %v725 = vpack.c.b16 %v671, %v665
        %v726 = vpack.c.b16 %v672, %v666
        %v727 = vpack.c.b16 %v679, %v673
        %v728 = vpack.c.b16 %v680, %v674
        %v729 = vpack.c.b16 %v681, %v675
        %v730 = vpack.c.b16 %v682, %v676
        %v731 = vpack.c.b16 %v683, %v677
        %v732 = vpack.c.b16 %v684, %v678
        %781 = vmatpush.bf16.msra.mxu0 %v727
        %782 = vmatpush.bf16.msra.mxu0 %v721
        %783 = vmatpush.bf16.msra.mxu0 %v715
        %784 = vmatpush.bf16.msra.mxu0 %v709
        %785 = vmatpush.bf16.msra.mxu0 %v703
        %786 = vmatpush.bf16.msra.mxu0 %v697
        %787 = vmatpush.bf16.msra.mxu0 %v691
        %788 = vmatpush.bf16.msra.mxu0 %v685
        %789 = vmatmul.bf16.gmra.mxu0 %v471
        %v790 = vpop.f32.mrf.mxu0
        %v791 = vadd.f32 %v529, %v790
        %v792 = vpop.f32.mrf.mxu0
        %v793 = vadd.f32 %v529, %v792
        %794 = vmatmul.bf16.gmra.mxu0 %v472
        %v795 = vpop.f32.mrf.mxu0
        %v796 = vadd.f32 %v529, %v795
        %v797 = vpop.f32.mrf.mxu0
        %v798 = vadd.f32 %v529, %v797
        %799 = vmatmul.bf16.gmra.mxu0 %v473
        %v800 = vpop.f32.mrf.mxu0
        %v801 = vadd.f32 %v529, %v800
        %v802 = vpop.f32.mrf.mxu0
        %v803 = vadd.f32 %v529, %v802
        %804 = vmatmul.bf16.gmra.mxu0 %v474
        %v805 = vpop.f32.mrf.mxu0
        %v806 = vadd.f32 %v529, %v805
        %v807 = vpop.f32.mrf.mxu0
        %v808 = vadd.f32 %v529, %v807
        %809 = vmatmul.bf16.gmra.mxu0 %v475
        %v810 = vpop.f32.mrf.mxu0
        %v811 = vadd.f32 %v529, %v810
        %v812 = vpop.f32.mrf.mxu0
        %v813 = vadd.f32 %v529, %v812
        %814 = vmatmul.bf16.gmra.mxu0 %v476
        %v815 = vpop.f32.mrf.mxu0
        %v816 = vadd.f32 %v529, %v815
        %v817 = vpop.f32.mrf.mxu0
        %v818 = vadd.f32 %v529, %v817
        %819 = vmatmul.bf16.gmra.mxu0 %v477
        %v820 = vpop.f32.mrf.mxu0
        %v821 = vadd.f32 %v529, %v820
        %v822 = vpop.f32.mrf.mxu0
        %v823 = vadd.f32 %v529, %v822
        %824 = vmatmul.bf16.gmra.mxu0 %v478
        %v825 = vpop.f32.mrf.mxu0
        %v826 = vadd.f32 %v529, %v825
        %v827 = vpop.f32.mrf.mxu0
        %v828 = vadd.f32 %v529, %v827
        %829 = vdwg.mxu0
        %830 = vmatpush.bf16.msra.mxu0 %v728
        %831 = vmatpush.bf16.msra.mxu0 %v722
        %832 = vmatpush.bf16.msra.mxu0 %v716
        %833 = vmatpush.bf16.msra.mxu0 %v710
        %834 = vmatpush.bf16.msra.mxu0 %v704
        %835 = vmatpush.bf16.msra.mxu0 %v698
        %836 = vmatpush.bf16.msra.mxu0 %v692
        %837 = vmatpush.bf16.msra.mxu0 %v686
        %838 = vmatmul.bf16.gmra.mxu0 %v471
        %v839 = vpop.f32.mrf.mxu0
        %v840 = vadd.f32 %v530, %v839
        %v841 = vpop.f32.mrf.mxu0
        %v842 = vadd.f32 %v530, %v841
        %843 = vmatmul.bf16.gmra.mxu0 %v472
        %v844 = vpop.f32.mrf.mxu0
        %v845 = vadd.f32 %v530, %v844
        %v846 = vpop.f32.mrf.mxu0
        %v847 = vadd.f32 %v530, %v846
        %848 = vmatmul.bf16.gmra.mxu0 %v473
        %v849 = vpop.f32.mrf.mxu0
        %v850 = vadd.f32 %v530, %v849
        %v851 = vpop.f32.mrf.mxu0
        %v852 = vadd.f32 %v530, %v851
        %853 = vmatmul.bf16.gmra.mxu0 %v474
        %v854 = vpop.f32.mrf.mxu0
        %v855 = vadd.f32 %v530, %v854
        %v856 = vpop.f32.mrf.mxu0
        %v857 = vadd.f32 %v530, %v856
        %858 = vmatmul.bf16.gmra.mxu0 %v475
        %v859 = vpop.f32.mrf.mxu0
        %v860 = vadd.f32 %v530, %v859
        %v861 = vpop.f32.mrf.mxu0
        %v862 = vadd.f32 %v530, %v861
        %863 = vmatmul.bf16.gmra.mxu0 %v476
        %v864 = vpop.f32.mrf.mxu0
        %v865 = vadd.f32 %v530, %v864
        %v866 = vpop.f32.mrf.mxu0
        %v867 = vadd.f32 %v530, %v866
        %868 = vmatmul.bf16.gmra.mxu0 %v477
        %v869 = vpop.f32.mrf.mxu0
        %v870 = vadd.f32 %v530, %v869
        %v871 = vpop.f32.mrf.mxu0
        %v872 = vadd.f32 %v530, %v871
        %873 = vmatmul.bf16.gmra.mxu0 %v478
        %v874 = vpop.f32.mrf.mxu0
        %v875 = vadd.f32 %v530, %v874
        %v876 = vpop.f32.mrf.mxu0
        %v877 = vadd.f32 %v530, %v876
        %878 = vdwg.mxu0
        %879 = vmatpush.bf16.msra.mxu0 %v729
        %880 = vmatpush.bf16.msra.mxu0 %v723
        %881 = vmatpush.bf16.msra.mxu0 %v717
        %882 = vmatpush.bf16.msra.mxu0 %v711
        %883 = vmatpush.bf16.msra.mxu0 %v705
        %884 = vmatpush.bf16.msra.mxu0 %v699
        %885 = vmatpush.bf16.msra.mxu0 %v693
        %886 = vmatpush.bf16.msra.mxu0 %v687
        %887 = vmatmul.bf16.gmra.mxu0 %v471
        %v888 = vpop.f32.mrf.mxu0
        %v889 = vadd.f32 %v531, %v888
        %v890 = vpop.f32.mrf.mxu0
        %v891 = vadd.f32 %v531, %v890
        %892 = vmatmul.bf16.gmra.mxu0 %v472
        %v893 = vpop.f32.mrf.mxu0
        %v894 = vadd.f32 %v531, %v893
        %v895 = vpop.f32.mrf.mxu0
        %v896 = vadd.f32 %v531, %v895
        %897 = vmatmul.bf16.gmra.mxu0 %v473
        %v898 = vpop.f32.mrf.mxu0
        %v899 = vadd.f32 %v531, %v898
        %v900 = vpop.f32.mrf.mxu0
        %v901 = vadd.f32 %v531, %v900
        %902 = vmatmul.bf16.gmra.mxu0 %v474
        %v903 = vpop.f32.mrf.mxu0
        %v904 = vadd.f32 %v531, %v903
        %v905 = vpop.f32.mrf.mxu0
        %v906 = vadd.f32 %v531, %v905
        %907 = vmatmul.bf16.gmra.mxu0 %v475
        %v908 = vpop.f32.mrf.mxu0
        %v909 = vadd.f32 %v531, %v908
        %v910 = vpop.f32.mrf.mxu0
        %v911 = vadd.f32 %v531, %v910
        %912 = vmatmul.bf16.gmra.mxu0 %v476
        %v913 = vpop.f32.mrf.mxu0
        %v914 = vadd.f32 %v531, %v913
        %v915 = vpop.f32.mrf.mxu0
        %v916 = vadd.f32 %v531, %v915
        %917 = vmatmul.bf16.gmra.mxu0 %v477
        %v918 = vpop.f32.mrf.mxu0
        %v919 = vadd.f32 %v531, %v918
        %v920 = vpop.f32.mrf.mxu0
        %v921 = vadd.f32 %v531, %v920
        %922 = vmatmul.bf16.gmra.mxu0 %v478
        %v923 = vpop.f32.mrf.mxu0
        %v924 = vadd.f32 %v531, %v923
        %v925 = vpop.f32.mrf.mxu0
        %v926 = vadd.f32 %v531, %v925
        %927 = vdwg.mxu0
        %928 = vmatpush.bf16.msra.mxu0 %v730
        %929 = vmatpush.bf16.msra.mxu0 %v724
        %930 = vmatpush.bf16.msra.mxu0 %v718
        %931 = vmatpush.bf16.msra.mxu0 %v712
        %932 = vmatpush.bf16.msra.mxu0 %v706
        %933 = vmatpush.bf16.msra.mxu0 %v700
        %934 = vmatpush.bf16.msra.mxu0 %v694
        %935 = vmatpush.bf16.msra.mxu0 %v688
        %936 = vmatmul.bf16.gmra.mxu0 %v471
        %v937 = vpop.f32.mrf.mxu0
        %v938 = vadd.f32 %v532, %v937
        %v939 = vpop.f32.mrf.mxu0
        %v940 = vadd.f32 %v532, %v939
        %941 = vmatmul.bf16.gmra.mxu0 %v472
        %v942 = vpop.f32.mrf.mxu0
        %v943 = vadd.f32 %v532, %v942
        %v944 = vpop.f32.mrf.mxu0
        %v945 = vadd.f32 %v532, %v944
        %946 = vmatmul.bf16.gmra.mxu0 %v473
        %v947 = vpop.f32.mrf.mxu0
        %v948 = vadd.f32 %v532, %v947
        %v949 = vpop.f32.mrf.mxu0
        %v950 = vadd.f32 %v532, %v949
        %951 = vmatmul.bf16.gmra.mxu0 %v474
        %v952 = vpop.f32.mrf.mxu0
        %v953 = vadd.f32 %v532, %v952
        %v954 = vpop.f32.mrf.mxu0
        %v955 = vadd.f32 %v532, %v954
        %956 = vmatmul.bf16.gmra.mxu0 %v475
        %v957 = vpop.f32.mrf.mxu0
        %v958 = vadd.f32 %v532, %v957
        %v959 = vpop.f32.mrf.mxu0
        %v960 = vadd.f32 %v532, %v959
        %961 = vmatmul.bf16.gmra.mxu0 %v476
        %v962 = vpop.f32.mrf.mxu0
        %v963 = vadd.f32 %v532, %v962
        %v964 = vpop.f32.mrf.mxu0
        %v965 = vadd.f32 %v532, %v964
        %966 = vmatmul.bf16.gmra.mxu0 %v477
        %v967 = vpop.f32.mrf.mxu0
        %v968 = vadd.f32 %v532, %v967
        %v969 = vpop.f32.mrf.mxu0
        %v970 = vadd.f32 %v532, %v969
        %971 = vmatmul.bf16.gmra.mxu0 %v478
        %v972 = vpop.f32.mrf.mxu0
        %v973 = vadd.f32 %v532, %v972
        %v974 = vpop.f32.mrf.mxu0
        %v975 = vadd.f32 %v532, %v974
        %976 = vdwg.mxu0
        %977 = vmatpush.bf16.msra.mxu0 %v731
        %978 = vmatpush.bf16.msra.mxu0 %v725
        %979 = vmatpush.bf16.msra.mxu0 %v719
        %980 = vmatpush.bf16.msra.mxu0 %v713
        %981 = vmatpush.bf16.msra.mxu0 %v707
        %982 = vmatpush.bf16.msra.mxu0 %v701
        %983 = vmatpush.bf16.msra.mxu0 %v695
        %984 = vmatpush.bf16.msra.mxu0 %v689
        %985 = vmatmul.bf16.gmra.mxu0 %v471
        %v986 = vpop.f32.mrf.mxu0
        %v987 = vadd.f32 %v533, %v986
        %v988 = vpop.f32.mrf.mxu0
        %v989 = vadd.f32 %v533, %v988
        %990 = vmatmul.bf16.gmra.mxu0 %v472
        %v991 = vpop.f32.mrf.mxu0
        %v992 = vadd.f32 %v533, %v991
        %v993 = vpop.f32.mrf.mxu0
        %v994 = vadd.f32 %v533, %v993
        %995 = vmatmul.bf16.gmra.mxu0 %v473
        %v996 = vpop.f32.mrf.mxu0
        %v997 = vadd.f32 %v533, %v996
        %v998 = vpop.f32.mrf.mxu0
        %v999 = vadd.f32 %v533, %v998
        %1000 = vmatmul.bf16.gmra.mxu0 %v474
        %v1001 = vpop.f32.mrf.mxu0
        %v1002 = vadd.f32 %v533, %v1001
        %v1003 = vpop.f32.mrf.mxu0
        %v1004 = vadd.f32 %v533, %v1003
        %1005 = vmatmul.bf16.gmra.mxu0 %v475
        %v1006 = vpop.f32.mrf.mxu0
        %v1007 = vadd.f32 %v533, %v1006
        %v1008 = vpop.f32.mrf.mxu0
        %v1009 = vadd.f32 %v533, %v1008
        %1010 = vmatmul.bf16.gmra.mxu0 %v476
        %v1011 = vpop.f32.mrf.mxu0
        %v1012 = vadd.f32 %v533, %v1011
        %v1013 = vpop.f32.mrf.mxu0
        %v1014 = vadd.f32 %v533, %v1013
        %1015 = vmatmul.bf16.gmra.mxu0 %v477
        %v1016 = vpop.f32.mrf.mxu0
        %v1017 = vadd.f32 %v533, %v1016
        %v1018 = vpop.f32.mrf.mxu0
        %v1019 = vadd.f32 %v533, %v1018
        %1020 = vmatmul.bf16.gmra.mxu0 %v478
        %v1021 = vpop.f32.mrf.mxu0
        %v1022 = vadd.f32 %v533, %v1021
        %v1023 = vpop.f32.mrf.mxu0
        %v1024 = vadd.f32 %v533, %v1023
        %1025 = vdwg.mxu0
        %1026 = vmatpush.bf16.msra.mxu0 %v732
        %1027 = vmatpush.bf16.msra.mxu0 %v726
        %1028 = vmatpush.bf16.msra.mxu0 %v720
        %1029 = vmatpush.bf16.msra.mxu0 %v714
        %1030 = vmatpush.bf16.msra.mxu0 %v708
        %1031 = vmatpush.bf16.msra.mxu0 %v702
        %1032 = vmatpush.bf16.msra.mxu0 %v696
        %1033 = vmatpush.bf16.msra.mxu0 %v690
        %1034 = vmatmul.bf16.gmra.mxu0 %v471
        %v1035 = vpop.f32.mrf.mxu0
        %v1036 = vadd.f32 %v534, %v1035
        %v1037 = vpop.f32.mrf.mxu0
        %v1038 = vadd.f32 %v534, %v1037
        %1039 = vmatmul.bf16.gmra.mxu0 %v472
        %v1040 = vpop.f32.mrf.mxu0
        %v1041 = vadd.f32 %v534, %v1040
        %v1042 = vpop.f32.mrf.mxu0
        %v1043 = vadd.f32 %v534, %v1042
        %1044 = vmatmul.bf16.gmra.mxu0 %v473
        %v1045 = vpop.f32.mrf.mxu0
        %v1046 = vadd.f32 %v534, %v1045
        %v1047 = vpop.f32.mrf.mxu0
        %v1048 = vadd.f32 %v534, %v1047
        %1049 = vmatmul.bf16.gmra.mxu0 %v474
        %v1050 = vpop.f32.mrf.mxu0
        %v1051 = vadd.f32 %v534, %v1050
        %v1052 = vpop.f32.mrf.mxu0
        %v1053 = vadd.f32 %v534, %v1052
        %1054 = vmatmul.bf16.gmra.mxu0 %v475
        %v1055 = vpop.f32.mrf.mxu0
        %v1056 = vadd.f32 %v534, %v1055
        %v1057 = vpop.f32.mrf.mxu0
        %v1058 = vadd.f32 %v534, %v1057
        %1059 = vmatmul.bf16.gmra.mxu0 %v476
        %v1060 = vpop.f32.mrf.mxu0
        %v1061 = vadd.f32 %v534, %v1060
        %v1062 = vpop.f32.mrf.mxu0
        %v1063 = vadd.f32 %v534, %v1062
        %1064 = vmatmul.bf16.gmra.mxu0 %v477
        %v1065 = vpop.f32.mrf.mxu0
        %v1066 = vadd.f32 %v534, %v1065
        %v1067 = vpop.f32.mrf.mxu0
        %v1068 = vadd.f32 %v534, %v1067
        %1069 = vmatmul.bf16.gmra.mxu0 %v478
        %v1070 = vpop.f32.mrf.mxu0
        %v1071 = vadd.f32 %v534, %v1070
        %v1072 = vpop.f32.mrf.mxu0
        %v1073 = vadd.f32 %v534, %v1072
        %1074 = vdwg.mxu0
        %v1075 = vpack.c.bf16 %v791, %v791
        %v1076 = vpack.c.bf16 %v793, %v793
        %v1077 = vpack.c.bf16 %v796, %v796
        %v1078 = vpack.c.bf16 %v798, %v798
        %v1079 = vpack.c.bf16 %v801, %v801
        %v1080 = vpack.c.bf16 %v803, %v803
        %v1081 = vpack.c.bf16 %v806, %v806
        %v1082 = vpack.c.bf16 %v808, %v808
        %v1083 = vpack.c.bf16 %v811, %v811
        %v1084 = vpack.c.bf16 %v813, %v813
        %v1085 = vpack.c.bf16 %v816, %v816
        %v1086 = vpack.c.bf16 %v818, %v818
        %v1087 = vpack.c.bf16 %v821, %v821
        %v1088 = vpack.c.bf16 %v823, %v823
        %v1089 = vpack.c.bf16 %v826, %v826
        %v1090 = vpack.c.bf16 %v828, %v828
        %1091 = vst [vmem:[%s187] sm:$0xf] %v1075
        %1092 = vst [vmem:[%s187 + $0x4] sm:$0xf] %v1076
        %1093 = vst [vmem:[%s187 + $0x8] sm:$0xf] %v1077
        %1094 = vst [vmem:[%s187 + $0xc] sm:$0xf] %v1078
        %1095 = vst [vmem:[%s187 + $0x10] sm:$0xf] %v1079
        %1096 = vst [vmem:[%s187 + $0x14] sm:$0xf] %v1080
        %1097 = vst [vmem:[%s187 + $0x18] sm:$0xf] %v1081
        %1098 = vst [vmem:[%s187 + $0x1c] sm:$0xf] %v1082
        %1099 = vst [vmem:[%s187 + $0x20] sm:$0xf] %v1083
        %1100 = vst [vmem:[%s187 + $0x24] sm:$0xf] %v1084
        %1101 = vst [vmem:[%s187 + $0x28] sm:$0xf] %v1085
        %1102 = vst [vmem:[%s187 + $0x2c] sm:$0xf] %v1086
        %1103 = vst [vmem:[%s187 + $0x30] sm:$0xf] %v1087
        %1104 = vst [vmem:[%s187 + $0x34] sm:$0xf] %v1088
        %1105 = vst [vmem:[%s187 + $0x38] sm:$0xf] %v1089
        %1106 = vst [vmem:[%s187 + $0x3c] sm:$0xf] %v1090
        %v1107 = vpack.c.bf16 %v840, %v840
        %v1108 = vpack.c.bf16 %v842, %v842
        %v1109 = vpack.c.bf16 %v845, %v845
        %v1110 = vpack.c.bf16 %v847, %v847
        %v1111 = vpack.c.bf16 %v850, %v850
        %v1112 = vpack.c.bf16 %v852, %v852
        %v1113 = vpack.c.bf16 %v855, %v855
        %v1114 = vpack.c.bf16 %v857, %v857
        %v1115 = vpack.c.bf16 %v860, %v860
        %v1116 = vpack.c.bf16 %v862, %v862
        %v1117 = vpack.c.bf16 %v865, %v865
        %v1118 = vpack.c.bf16 %v867, %v867
        %v1119 = vpack.c.bf16 %v870, %v870
        %v1120 = vpack.c.bf16 %v872, %v872
        %v1121 = vpack.c.bf16 %v875, %v875
        %v1122 = vpack.c.bf16 %v877, %v877
        %s1123 = scalar_lea.vmem %s187, 64 [#allocation2]
        %1124 = vst [vmem:[%s1123] sm:$0xf] %v1107
        %1125 = vst [vmem:[%s1123 + $0x4] sm:$0xf] %v1108
        %1126 = vst [vmem:[%s1123 + $0x8] sm:$0xf] %v1109
        %1127 = vst [vmem:[%s1123 + $0xc] sm:$0xf] %v1110
        %1128 = vst [vmem:[%s1123 + $0x10] sm:$0xf] %v1111
        %1129 = vst [vmem:[%s1123 + $0x14] sm:$0xf] %v1112
        %1130 = vst [vmem:[%s1123 + $0x18] sm:$0xf] %v1113
        %1131 = vst [vmem:[%s1123 + $0x1c] sm:$0xf] %v1114
        %1132 = vst [vmem:[%s1123 + $0x20] sm:$0xf] %v1115
        %1133 = vst [vmem:[%s1123 + $0x24] sm:$0xf] %v1116
        %1134 = vst [vmem:[%s1123 + $0x28] sm:$0xf] %v1117
        %1135 = vst [vmem:[%s1123 + $0x2c] sm:$0xf] %v1118
        %1136 = vst [vmem:[%s1123 + $0x30] sm:$0xf] %v1119
        %1137 = vst [vmem:[%s1123 + $0x34] sm:$0xf] %v1120
        %1138 = vst [vmem:[%s1123 + $0x38] sm:$0xf] %v1121
        %1139 = vst [vmem:[%s1123 + $0x3c] sm:$0xf] %v1122
        %v1140 = vpack.c.bf16 %v889, %v889
        %v1141 = vpack.c.bf16 %v891, %v891
        %v1142 = vpack.c.bf16 %v894, %v894
        %v1143 = vpack.c.bf16 %v896, %v896
        %v1144 = vpack.c.bf16 %v899, %v899
        %v1145 = vpack.c.bf16 %v901, %v901
        %v1146 = vpack.c.bf16 %v904, %v904
        %v1147 = vpack.c.bf16 %v906, %v906
        %v1148 = vpack.c.bf16 %v909, %v909
        %v1149 = vpack.c.bf16 %v911, %v911
        %v1150 = vpack.c.bf16 %v914, %v914
        %v1151 = vpack.c.bf16 %v916, %v916
        %v1152 = vpack.c.bf16 %v919, %v919
        %v1153 = vpack.c.bf16 %v921, %v921
        %v1154 = vpack.c.bf16 %v924, %v924
        %v1155 = vpack.c.bf16 %v926, %v926
        %s1156 = scalar_lea.vmem %s187, 128 [#allocation2]
        %1157 = vst [vmem:[%s1156] sm:$0xf] %v1140
        %1158 = vst [vmem:[%s1156 + $0x4] sm:$0xf] %v1141
        %1159 = vst [vmem:[%s1156 + $0x8] sm:$0xf] %v1142
        %1160 = vst [vmem:[%s1156 + $0xc] sm:$0xf] %v1143
        %1161 = vst [vmem:[%s1156 + $0x10] sm:$0xf] %v1144
        %1162 = vst [vmem:[%s1156 + $0x14] sm:$0xf] %v1145
        %1163 = vst [vmem:[%s1156 + $0x18] sm:$0xf] %v1146
        %1164 = vst [vmem:[%s1156 + $0x1c] sm:$0xf] %v1147
        %1165 = vst [vmem:[%s1156 + $0x20] sm:$0xf] %v1148
        %1166 = vst [vmem:[%s1156 + $0x24] sm:$0xf] %v1149
        %1167 = vst [vmem:[%s1156 + $0x28] sm:$0xf] %v1150
        %1168 = vst [vmem:[%s1156 + $0x2c] sm:$0xf] %v1151
        %1169 = vst [vmem:[%s1156 + $0x30] sm:$0xf] %v1152
        %1170 = vst [vmem:[%s1156 + $0x34] sm:$0xf] %v1153
        %1171 = vst [vmem:[%s1156 + $0x38] sm:$0xf] %v1154
        %1172 = vst [vmem:[%s1156 + $0x3c] sm:$0xf] %v1155
        %v1173 = vpack.c.bf16 %v938, %v938
        %v1174 = vpack.c.bf16 %v940, %v940
        %v1175 = vpack.c.bf16 %v943, %v943
        %v1176 = vpack.c.bf16 %v945, %v945
        %v1177 = vpack.c.bf16 %v948, %v948
        %v1178 = vpack.c.bf16 %v950, %v950
        %v1179 = vpack.c.bf16 %v953, %v953
        %v1180 = vpack.c.bf16 %v955, %v955
        %v1181 = vpack.c.bf16 %v958, %v958
        %v1182 = vpack.c.bf16 %v960, %v960
        %v1183 = vpack.c.bf16 %v963, %v963
        %v1184 = vpack.c.bf16 %v965, %v965
        %v1185 = vpack.c.bf16 %v968, %v968
        %v1186 = vpack.c.bf16 %v970, %v970
        %v1187 = vpack.c.bf16 %v973, %v973
        %v1188 = vpack.c.bf16 %v975, %v975
        %s1189 = scalar_lea.vmem %s187, 192 [#allocation2]
        %1190 = vst [vmem:[%s1189] sm:$0xf] %v1173
        %1191 = vst [vmem:[%s1189 + $0x4] sm:$0xf] %v1174
        %1192 = vst [vmem:[%s1189 + $0x8] sm:$0xf] %v1175
        %1193 = vst [vmem:[%s1189 + $0xc] sm:$0xf] %v1176
        %1194 = vst [vmem:[%s1189 + $0x10] sm:$0xf] %v1177
        %1195 = vst [vmem:[%s1189 + $0x14] sm:$0xf] %v1178
        %1196 = vst [vmem:[%s1189 + $0x18] sm:$0xf] %v1179
        %1197 = vst [vmem:[%s1189 + $0x1c] sm:$0xf] %v1180
        %1198 = vst [vmem:[%s1189 + $0x20] sm:$0xf] %v1181
        %1199 = vst [vmem:[%s1189 + $0x24] sm:$0xf] %v1182
        %1200 = vst [vmem:[%s1189 + $0x28] sm:$0xf] %v1183
        %1201 = vst [vmem:[%s1189 + $0x2c] sm:$0xf] %v1184
        %1202 = vst [vmem:[%s1189 + $0x30] sm:$0xf] %v1185
        %1203 = vst [vmem:[%s1189 + $0x34] sm:$0xf] %v1186
        %1204 = vst [vmem:[%s1189 + $0x38] sm:$0xf] %v1187
        %1205 = vst [vmem:[%s1189 + $0x3c] sm:$0xf] %v1188
        %v1206 = vpack.c.bf16 %v987, %v987
        %v1207 = vpack.c.bf16 %v989, %v989
        %v1208 = vpack.c.bf16 %v992, %v992
        %v1209 = vpack.c.bf16 %v994, %v994
        %v1210 = vpack.c.bf16 %v997, %v997
        %v1211 = vpack.c.bf16 %v999, %v999
        %v1212 = vpack.c.bf16 %v1002, %v1002
        %v1213 = vpack.c.bf16 %v1004, %v1004
        %v1214 = vpack.c.bf16 %v1007, %v1007
        %v1215 = vpack.c.bf16 %v1009, %v1009
        %v1216 = vpack.c.bf16 %v1012, %v1012
        %v1217 = vpack.c.bf16 %v1014, %v1014
        %v1218 = vpack.c.bf16 %v1017, %v1017
        %v1219 = vpack.c.bf16 %v1019, %v1019
        %v1220 = vpack.c.bf16 %v1022, %v1022
        %v1221 = vpack.c.bf16 %v1024, %v1024
        %s1222 = scalar_lea.vmem %s187, 256 [#allocation2]
        %1223 = vst [vmem:[%s1222] sm:$0xf] %v1206
        %1224 = vst [vmem:[%s1222 + $0x4] sm:$0xf] %v1207
        %1225 = vst [vmem:[%s1222 + $0x8] sm:$0xf] %v1208
        %1226 = vst [vmem:[%s1222 + $0xc] sm:$0xf] %v1209
        %1227 = vst [vmem:[%s1222 + $0x10] sm:$0xf] %v1210
        %1228 = vst [vmem:[%s1222 + $0x14] sm:$0xf] %v1211
        %1229 = vst [vmem:[%s1222 + $0x18] sm:$0xf] %v1212
        %1230 = vst [vmem:[%s1222 + $0x1c] sm:$0xf] %v1213
        %1231 = vst [vmem:[%s1222 + $0x20] sm:$0xf] %v1214
        %1232 = vst [vmem:[%s1222 + $0x24] sm:$0xf] %v1215
        %1233 = vst [vmem:[%s1222 + $0x28] sm:$0xf] %v1216
        %1234 = vst [vmem:[%s1222 + $0x2c] sm:$0xf] %v1217
        %1235 = vst [vmem:[%s1222 + $0x30] sm:$0xf] %v1218
        %1236 = vst [vmem:[%s1222 + $0x34] sm:$0xf] %v1219
        %1237 = vst [vmem:[%s1222 + $0x38] sm:$0xf] %v1220
        %1238 = vst [vmem:[%s1222 + $0x3c] sm:$0xf] %v1221
        %v1239 = vpack.c.bf16 %v1036, %v1036
        %v1240 = vpack.c.bf16 %v1038, %v1038
        %v1241 = vpack.c.bf16 %v1041, %v1041
        %v1242 = vpack.c.bf16 %v1043, %v1043
        %v1243 = vpack.c.bf16 %v1046, %v1046
        %v1244 = vpack.c.bf16 %v1048, %v1048
        %v1245 = vpack.c.bf16 %v1051, %v1051
        %v1246 = vpack.c.bf16 %v1053, %v1053
        %v1247 = vpack.c.bf16 %v1056, %v1056
        %v1248 = vpack.c.bf16 %v1058, %v1058
        %v1249 = vpack.c.bf16 %v1061, %v1061
        %v1250 = vpack.c.bf16 %v1063, %v1063
        %v1251 = vpack.c.bf16 %v1066, %v1066
        %v1252 = vpack.c.bf16 %v1068, %v1068
        %v1253 = vpack.c.bf16 %v1071, %v1071
        %v1254 = vpack.c.bf16 %v1073, %v1073
        %s1255 = scalar_lea.vmem %s187, 320 [#allocation2]
        %1256 = vst [vmem:[%s1255] sm:$0xf] %v1239
        %1257 = vst [vmem:[%s1255 + $0x4] sm:$0xf] %v1240
        %1258 = vst [vmem:[%s1255 + $0x8] sm:$0xf] %v1241
        %1259 = vst [vmem:[%s1255 + $0xc] sm:$0xf] %v1242
        %1260 = vst [vmem:[%s1255 + $0x10] sm:$0xf] %v1243
        %1261 = vst [vmem:[%s1255 + $0x14] sm:$0xf] %v1244
        %1262 = vst [vmem:[%s1255 + $0x18] sm:$0xf] %v1245
        %1263 = vst [vmem:[%s1255 + $0x1c] sm:$0xf] %v1246
        %1264 = vst [vmem:[%s1255 + $0x20] sm:$0xf] %v1247
        %1265 = vst [vmem:[%s1255 + $0x24] sm:$0xf] %v1248
        %1266 = vst [vmem:[%s1255 + $0x28] sm:$0xf] %v1249
        %1267 = vst [vmem:[%s1255 + $0x2c] sm:$0xf] %v1250
        %1268 = vst [vmem:[%s1255 + $0x30] sm:$0xf] %v1251
        %1269 = vst [vmem:[%s1255 + $0x34] sm:$0xf] %v1252
        %1270 = vst [vmem:[%s1255 + $0x38] sm:$0xf] %v1253
        %1271 = vst [vmem:[%s1255 + $0x3c] sm:$0xf] %v1254
        %s1272 = sand.u32 %s112, 1
        %s1273 = sand.u32 %s112, 1
        %s1274 = smul.addr %s1273, 384
        %s1275 = scalar_lea.vmem [#allocation2], %s1274
        // Predicated region
        $region37: #{generator_self_attention.3} parent=35 // pred_check
          %p1276 = pneg %p122
        $region38: #{generator_self_attention.3} parent=35 // pred_check_branch
          %1278 = sbr.rel (%p1276) target = $region40
        $region39: #{generator_self_attention.3} parent=35 // pred_region
          %s1279 = smul.u32 16, %s15
          %s1280 = smul.addr %s1279, 4
          %s1281 = scalar_lea.vmem %s4, %s1280
          // Predicated region
          $region41: #{generator_self_attention.3} parent=39 // pred_check
            _
          $region42: #{generator_self_attention.3} parent=39 // pred_check_branch
            %1283 = sbr.rel (0) target = $region44
          $region43: #{generator_self_attention.3} parent=39 // pred_region
            // Predicated region
            $region45: #{generator_self_attention.3} parent=43 // pred_check
              _
            $region46: #{generator_self_attention.3} parent=43 // pred_check_branch
              %1285 = sbr.rel target = $region48
            $region47: #{generator_self_attention.3} parent=43 // pred_region
              // Predicated region
              $region60: #{generator_self_attention.3} parent=47 // pred_check
                _
              $region61: #{generator_self_attention.3} parent=47 // pred_check_branch
                %1491 = sbr.rel (0) target = $region63
              $region62: #{generator_self_attention.3} parent=47 // pred_region
                loop: start=0, step=1, limit=1
                $region64: #{generator_self_attention.3} parent=62 // loop_pre_header
                  _
                $region65: #{generator_self_attention.3} parent=62 // loop_header
                  %s1493 = sphi 0, %s1497
                  %p1494 = scmp.ge.s32.totalorder %s1493, 1
                  %s1498 = sphi %s1275, %s1275
                  %s1499 = sphi %s1281, %s1281
                $region66: #{generator_self_attention.3} parent=62 // loop_header_branch
                  %1496 = sbr.rel (%p1494) target = $region70
                $region67: #{generator_self_attention.3} parent=62 // loop_body
                  _
                $region68: #{generator_self_attention.3} parent=62 // loop_footer
                  %s1497 = sadd.s32 1, %s1493
                $region69: #{generator_self_attention.3} parent=62 // loop_footer_branch
                  %1492 = sbr.rel target = $region65
                $region70: #{generator_self_attention.3} parent=62 // loop_exit
                  _
                %s1501 = ssub.s32 16, 1
                loop: start=0, step=1, limit=1
                $region71: #{generator_self_attention.3} parent=62 // loop_pre_header
                  _
                $region72: #{generator_self_attention.3} parent=62 // loop_header
                  %s1503 = sphi 0, %s1507
                  %p1504 = scmp.ge.s32.totalorder %s1503, 1
                  %s1508 = sphi %s1275, %s1275
                  %s1509 = sphi %s1281, %s1281
                $region73: #{generator_self_attention.3} parent=62 // loop_header_branch
                  %1506 = sbr.rel (%p1504) target = $region77
                $region74: #{generator_self_attention.3} parent=62 // loop_body
                  %v1510 = vld [vmem:[%s1508] sm:%s1501]
                  %1511 = vst [vmem:[%s1509] sm:%s1501] %v1510
                  %v1512 = vld [vmem:[%s1508 + $0x4] sm:%s1501]
                  %1513 = vst [vmem:[%s1509 + $0x4] sm:%s1501] %v1512
                  %v1514 = vld [vmem:[%s1508 + $0x8] sm:%s1501]
                  %1515 = vst [vmem:[%s1509 + $0x8] sm:%s1501] %v1514
                  %v1516 = vld [vmem:[%s1508 + $0xc] sm:%s1501]
                  %1517 = vst [vmem:[%s1509 + $0xc] sm:%s1501] %v1516
                  %v1518 = vld [vmem:[%s1508 + $0x10] sm:%s1501]
                  %1519 = vst [vmem:[%s1509 + $0x10] sm:%s1501] %v1518
                  %v1520 = vld [vmem:[%s1508 + $0x14] sm:%s1501]
                  %1521 = vst [vmem:[%s1509 + $0x14] sm:%s1501] %v1520
                  %v1522 = vld [vmem:[%s1508 + $0x18] sm:%s1501]
                  %1523 = vst [vmem:[%s1509 + $0x18] sm:%s1501] %v1522
                  %v1524 = vld [vmem:[%s1508 + $0x1c] sm:%s1501]
                  %1525 = vst [vmem:[%s1509 + $0x1c] sm:%s1501] %v1524
                  %v1526 = vld [vmem:[%s1508 + $0x20] sm:%s1501]
                  %1527 = vst [vmem:[%s1509 + $0x20] sm:%s1501] %v1526
                  %v1528 = vld [vmem:[%s1508 + $0x24] sm:%s1501]
                  %1529 = vst [vmem:[%s1509 + $0x24] sm:%s1501] %v1528
                  %v1530 = vld [vmem:[%s1508 + $0x28] sm:%s1501]
                  %1531 = vst [vmem:[%s1509 + $0x28] sm:%s1501] %v1530
                  %v1532 = vld [vmem:[%s1508 + $0x2c] sm:%s1501]
                  %1533 = vst [vmem:[%s1509 + $0x2c] sm:%s1501] %v1532
                  %v1534 = vld [vmem:[%s1508 + $0x30] sm:%s1501]
                  %1535 = vst [vmem:[%s1509 + $0x30] sm:%s1501] %v1534
                  %v1536 = vld [vmem:[%s1508 + $0x34] sm:%s1501]
                  %1537 = vst [vmem:[%s1509 + $0x34] sm:%s1501] %v1536
                  %v1538 = vld [vmem:[%s1508 + $0x38] sm:%s1501]
                  %1539 = vst [vmem:[%s1509 + $0x38] sm:%s1501] %v1538
                  %v1540 = vld [vmem:[%s1508 + $0x3c] sm:%s1501]
                  %1541 = vst [vmem:[%s1509 + $0x3c] sm:%s1501] %v1540
                  %v1542 = vld [vmem:[%s1508 + $0x40] sm:%s1501]
                  %1543 = vst [vmem:[%s1509 + $0x80] sm:%s1501] %v1542
                  %v1544 = vld [vmem:[%s1508 + $0x44] sm:%s1501]
                  %1545 = vst [vmem:[%s1509 + $0x84] sm:%s1501] %v1544
                  %v1546 = vld [vmem:[%s1508 + $0x48] sm:%s1501]
                  %1547 = vst [vmem:[%s1509 + $0x88] sm:%s1501] %v1546
                  %v1548 = vld [vmem:[%s1508 + $0x4c] sm:%s1501]
                  %1549 = vst [vmem:[%s1509 + $0x8c] sm:%s1501] %v1548
                  %v1550 = vld [vmem:[%s1508 + $0x50] sm:%s1501]
                  %1551 = vst [vmem:[%s1509 + $0x90] sm:%s1501] %v1550
                  %v1552 = vld [vmem:[%s1508 + $0x54] sm:%s1501]
                  %1553 = vst [vmem:[%s1509 + $0x94] sm:%s1501] %v1552
                  %v1554 = vld [vmem:[%s1508 + $0x58] sm:%s1501]
                  %1555 = vst [vmem:[%s1509 + $0x98] sm:%s1501] %v1554
                  %v1556 = vld [vmem:[%s1508 + $0x5c] sm:%s1501]
                  %1557 = vst [vmem:[%s1509 + $0x9c] sm:%s1501] %v1556
                  %v1558 = vld [vmem:[%s1508 + $0x60] sm:%s1501]
                  %1559 = vst [vmem:[%s1509 + $0xa0] sm:%s1501] %v1558
                  %v1560 = vld [vmem:[%s1508 + $0x64] sm:%s1501]
                  %1561 = vst [vmem:[%s1509 + $0xa4] sm:%s1501] %v1560
                  %v1562 = vld [vmem:[%s1508 + $0x68] sm:%s1501]
                  %1563 = vst [vmem:[%s1509 + $0xa8] sm:%s1501] %v1562
                  %v1564 = vld [vmem:[%s1508 + $0x6c] sm:%s1501]
                  %1565 = vst [vmem:[%s1509 + $0xac] sm:%s1501] %v1564
                  %v1566 = vld [vmem:[%s1508 + $0x70] sm:%s1501]
                  %1567 = vst [vmem:[%s1509 + $0xb0] sm:%s1501] %v1566
                  %v1568 = vld [vmem:[%s1508 + $0x74] sm:%s1501]
                  %1569 = vst [vmem:[%s1509 + $0xb4] sm:%s1501] %v1568
                  %v1570 = vld [vmem:[%s1508 + $0x78] sm:%s1501]
                  %1571 = vst [vmem:[%s1509 + $0xb8] sm:%s1501] %v1570
                  %v1572 = vld [vmem:[%s1508 + $0x7c] sm:%s1501]
                  %1573 = vst [vmem:[%s1509 + $0xbc] sm:%s1501] %v1572
                  %v1574 = vld [vmem:[%s1508 + $0x80] sm:%s1501]
                  %1575 = vst [vmem:[%s1509 + $0x100] sm:%s1501] %v1574
                  %v1576 = vld [vmem:[%s1508 + $0x84] sm:%s1501]
                  %1577 = vst [vmem:[%s1509 + $0x104] sm:%s1501] %v1576
                  %v1578 = vld [vmem:[%s1508 + $0x88] sm:%s1501]
                  %1579 = vst [vmem:[%s1509 + $0x108] sm:%s1501] %v1578
                  %v1580 = vld [vmem:[%s1508 + $0x8c] sm:%s1501]
                  %1581 = vst [vmem:[%s1509 + $0x10c] sm:%s1501] %v1580
                  %v1582 = vld [vmem:[%s1508 + $0x90] sm:%s1501]
                  %1583 = vst [vmem:[%s1509 + $0x110] sm:%s1501] %v1582
                  %v1584 = vld [vmem:[%s1508 + $0x94] sm:%s1501]
                  %1585 = vst [vmem:[%s1509 + $0x114] sm:%s1501] %v1584
                  %v1586 = vld [vmem:[%s1508 + $0x98] sm:%s1501]
                  %1587 = vst [vmem:[%s1509 + $0x118] sm:%s1501] %v1586
                  %v1588 = vld [vmem:[%s1508 + $0x9c] sm:%s1501]
                  %1589 = vst [vmem:[%s1509 + $0x11c] sm:%s1501] %v1588
                  %v1590 = vld [vmem:[%s1508 + $0xa0] sm:%s1501]
                  %1591 = vst [vmem:[%s1509 + $0x120] sm:%s1501] %v1590
                  %v1592 = vld [vmem:[%s1508 + $0xa4] sm:%s1501]
                  %1593 = vst [vmem:[%s1509 + $0x124] sm:%s1501] %v1592
                  %v1594 = vld [vmem:[%s1508 + $0xa8] sm:%s1501]
                  %1595 = vst [vmem:[%s1509 + $0x128] sm:%s1501] %v1594
                  %v1596 = vld [vmem:[%s1508 + $0xac] sm:%s1501]
                  %1597 = vst [vmem:[%s1509 + $0x12c] sm:%s1501] %v1596
                  %v1598 = vld [vmem:[%s1508 + $0xb0] sm:%s1501]
                  %1599 = vst [vmem:[%s1509 + $0x130] sm:%s1501] %v1598
                  %v1600 = vld [vmem:[%s1508 + $0xb4] sm:%s1501]
                  %1601 = vst [vmem:[%s1509 + $0x134] sm:%s1501] %v1600
                  %v1602 = vld [vmem:[%s1508 + $0xb8] sm:%s1501]
                  %1603 = vst [vmem:[%s1509 + $0x138] sm:%s1501] %v1602
                  %v1604 = vld [vmem:[%s1508 + $0xbc] sm:%s1501]
                  %1605 = vst [vmem:[%s1509 + $0x13c] sm:%s1501] %v1604
                  %v1606 = vld [vmem:[%s1508 + $0xc0] sm:%s1501]
                  %1607 = vst [vmem:[%s1509 + $0x180] sm:%s1501] %v1606
                  %v1608 = vld [vmem:[%s1508 + $0xc4] sm:%s1501]
                  %1609 = vst [vmem:[%s1509 + $0x184] sm:%s1501] %v1608
                  %v1610 = vld [vmem:[%s1508 + $0xc8] sm:%s1501]
                  %1611 = vst [vmem:[%s1509 + $0x188] sm:%s1501] %v1610
                  %v1612 = vld [vmem:[%s1508 + $0xcc] sm:%s1501]
                  %1613 = vst [vmem:[%s1509 + $0x18c] sm:%s1501] %v1612
                  %v1614 = vld [vmem:[%s1508 + $0xd0] sm:%s1501]
                  %1615 = vst [vmem:[%s1509 + $0x190] sm:%s1501] %v1614
                  %v1616 = vld [vmem:[%s1508 + $0xd4] sm:%s1501]
                  %1617 = vst [vmem:[%s1509 + $0x194] sm:%s1501] %v1616
                  %v1618 = vld [vmem:[%s1508 + $0xd8] sm:%s1501]
                  %1619 = vst [vmem:[%s1509 + $0x198] sm:%s1501] %v1618
                  %v1620 = vld [vmem:[%s1508 + $0xdc] sm:%s1501]
                  %1621 = vst [vmem:[%s1509 + $0x19c] sm:%s1501] %v1620
                  %v1622 = vld [vmem:[%s1508 + $0xe0] sm:%s1501]
                  %1623 = vst [vmem:[%s1509 + $0x1a0] sm:%s1501] %v1622
                  %v1624 = vld [vmem:[%s1508 + $0xe4] sm:%s1501]
                  %1625 = vst [vmem:[%s1509 + $0x1a4] sm:%s1501] %v1624
                  %v1626 = vld [vmem:[%s1508 + $0xe8] sm:%s1501]
                  %1627 = vst [vmem:[%s1509 + $0x1a8] sm:%s1501] %v1626
                  %v1628 = vld [vmem:[%s1508 + $0xec] sm:%s1501]
                  %1629 = vst [vmem:[%s1509 + $0x1ac] sm:%s1501] %v1628
                  %v1630 = vld [vmem:[%s1508 + $0xf0] sm:%s1501]
                  %1631 = vst [vmem:[%s1509 + $0x1b0] sm:%s1501] %v1630
                  %v1632 = vld [vmem:[%s1508 + $0xf4] sm:%s1501]
                  %1633 = vst [vmem:[%s1509 + $0x1b4] sm:%s1501] %v1632
                  %v1634 = vld [vmem:[%s1508 + $0xf8] sm:%s1501]
                  %1635 = vst [vmem:[%s1509 + $0x1b8] sm:%s1501] %v1634
                  %v1636 = vld [vmem:[%s1508 + $0xfc] sm:%s1501]
                  %1637 = vst [vmem:[%s1509 + $0x1bc] sm:%s1501] %v1636
                  %v1638 = vld [vmem:[%s1508 + $0x100] sm:%s1501]
                  %1639 = vst [vmem:[%s1509 + $0x200] sm:%s1501] %v1638
                  %v1640 = vld [vmem:[%s1508 + $0x104] sm:%s1501]
                  %1641 = vst [vmem:[%s1509 + $0x204] sm:%s1501] %v1640
                  %v1642 = vld [vmem:[%s1508 + $0x108] sm:%s1501]
                  %1643 = vst [vmem:[%s1509 + $0x208] sm:%s1501] %v1642
                  %v1644 = vld [vmem:[%s1508 + $0x10c] sm:%s1501]
                  %1645 = vst [vmem:[%s1509 + $0x20c] sm:%s1501] %v1644
                  %v1646 = vld [vmem:[%s1508 + $0x110] sm:%s1501]
                  %1647 = vst [vmem:[%s1509 + $0x210] sm:%s1501] %v1646
                  %v1648 = vld [vmem:[%s1508 + $0x114] sm:%s1501]
                  %1649 = vst [vmem:[%s1509 + $0x214] sm:%s1501] %v1648
                  %v1650 = vld [vmem:[%s1508 + $0x118] sm:%s1501]
                  %1651 = vst [vmem:[%s1509 + $0x218] sm:%s1501] %v1650
                  %v1652 = vld [vmem:[%s1508 + $0x11c] sm:%s1501]
                  %1653 = vst [vmem:[%s1509 + $0x21c] sm:%s1501] %v1652
                  %v1654 = vld [vmem:[%s1508 + $0x120] sm:%s1501]
                  %1655 = vst [vmem:[%s1509 + $0x220] sm:%s1501] %v1654
                  %v1656 = vld [vmem:[%s1508 + $0x124] sm:%s1501]
                  %1657 = vst [vmem:[%s1509 + $0x224] sm:%s1501] %v1656
                  %v1658 = vld [vmem:[%s1508 + $0x128] sm:%s1501]
                  %1659 = vst [vmem:[%s1509 + $0x228] sm:%s1501] %v1658
                  %v1660 = vld [vmem:[%s1508 + $0x12c] sm:%s1501]
                  %1661 = vst [vmem:[%s1509 + $0x22c] sm:%s1501] %v1660
                  %v1662 = vld [vmem:[%s1508 + $0x130] sm:%s1501]
                  %1663 = vst [vmem:[%s1509 + $0x230] sm:%s1501] %v1662
                  %v1664 = vld [vmem:[%s1508 + $0x134] sm:%s1501]
                  %1665 = vst [vmem:[%s1509 + $0x234] sm:%s1501] %v1664
                  %v1666 = vld [vmem:[%s1508 + $0x138] sm:%s1501]
                  %1667 = vst [vmem:[%s1509 + $0x238] sm:%s1501] %v1666
                  %v1668 = vld [vmem:[%s1508 + $0x13c] sm:%s1501]
                  %1669 = vst [vmem:[%s1509 + $0x23c] sm:%s1501] %v1668
                  %v1670 = vld [vmem:[%s1508 + $0x140] sm:%s1501]
                  %1671 = vst [vmem:[%s1509 + $0x280] sm:%s1501] %v1670
                  %v1672 = vld [vmem:[%s1508 + $0x144] sm:%s1501]
                  %1673 = vst [vmem:[%s1509 + $0x284] sm:%s1501] %v1672
                  %v1674 = vld [vmem:[%s1508 + $0x148] sm:%s1501]
                  %1675 = vst [vmem:[%s1509 + $0x288] sm:%s1501] %v1674
                  %v1676 = vld [vmem:[%s1508 + $0x14c] sm:%s1501]
                  %1677 = vst [vmem:[%s1509 + $0x28c] sm:%s1501] %v1676
                  %v1678 = vld [vmem:[%s1508 + $0x150] sm:%s1501]
                  %1679 = vst [vmem:[%s1509 + $0x290] sm:%s1501] %v1678
                  %v1680 = vld [vmem:[%s1508 + $0x154] sm:%s1501]
                  %1681 = vst [vmem:[%s1509 + $0x294] sm:%s1501] %v1680
                  %v1682 = vld [vmem:[%s1508 + $0x158] sm:%s1501]
                  %1683 = vst [vmem:[%s1509 + $0x298] sm:%s1501] %v1682
                  %v1684 = vld [vmem:[%s1508 + $0x15c] sm:%s1501]
                  %1685 = vst [vmem:[%s1509 + $0x29c] sm:%s1501] %v1684
                  %v1686 = vld [vmem:[%s1508 + $0x160] sm:%s1501]
                  %1687 = vst [vmem:[%s1509 + $0x2a0] sm:%s1501] %v1686
                  %v1688 = vld [vmem:[%s1508 + $0x164] sm:%s1501]
                  %1689 = vst [vmem:[%s1509 + $0x2a4] sm:%s1501] %v1688
                  %v1690 = vld [vmem:[%s1508 + $0x168] sm:%s1501]
                  %1691 = vst [vmem:[%s1509 + $0x2a8] sm:%s1501] %v1690
                  %v1692 = vld [vmem:[%s1508 + $0x16c] sm:%s1501]
                  %1693 = vst [vmem:[%s1509 + $0x2ac] sm:%s1501] %v1692
                  %v1694 = vld [vmem:[%s1508 + $0x170] sm:%s1501]
                  %1695 = vst [vmem:[%s1509 + $0x2b0] sm:%s1501] %v1694
                  %v1696 = vld [vmem:[%s1508 + $0x174] sm:%s1501]
                  %1697 = vst [vmem:[%s1509 + $0x2b4] sm:%s1501] %v1696
                  %v1698 = vld [vmem:[%s1508 + $0x178] sm:%s1501]
                  %1699 = vst [vmem:[%s1509 + $0x2b8] sm:%s1501] %v1698
                  %v1700 = vld [vmem:[%s1508 + $0x17c] sm:%s1501]
                  %1701 = vst [vmem:[%s1509 + $0x2bc] sm:%s1501] %v1700
                $region75: #{generator_self_attention.3} parent=62 // loop_footer
                  %s1507 = sadd.s32 1, %s1503
                $region76: #{generator_self_attention.3} parent=62 // loop_footer_branch
                  %1502 = sbr.rel target = $region72
                $region77: #{generator_self_attention.3} parent=62 // loop_exit
                  _
              $region63: #{generator_self_attention.3} parent=47 // pred_fallthru
                _
            $region48: #{generator_self_attention.3} parent=43 // pred_fallthru
              _
            // Predicated region
            $region49: #{generator_self_attention.3} parent=43 // pred_check
              _
            $region50: #{generator_self_attention.3} parent=43 // pred_check_branch
              %1287 = sbr.rel (0) target = $region52
            $region51: #{generator_self_attention.3} parent=43 // pred_region
              %s1289 = ssub.s32 16, 1
              loop: start=0, step=1, limit=1
              $region53: #{generator_self_attention.3} parent=51 // loop_pre_header
                _
              $region54: #{generator_self_attention.3} parent=51 // loop_header
                %s1291 = sphi 0, %s1295
                %p1292 = scmp.ge.s32.totalorder %s1291, 1
                %s1296 = sphi %s1275, %s1275
                %s1297 = sphi %s1281, %s1281
              $region55: #{generator_self_attention.3} parent=51 // loop_header_branch
                %1294 = sbr.rel (%p1292) target = $region59
              $region56: #{generator_self_attention.3} parent=51 // loop_body
                %v1298 = vld [vmem:[%s1296] sm:%s1289]
                %1299 = vst [vmem:[%s1297] sm:%s1289] %v1298
                %v1300 = vld [vmem:[%s1296 + $0x4] sm:%s1289]
                %1301 = vst [vmem:[%s1297 + $0x4] sm:%s1289] %v1300
                %v1302 = vld [vmem:[%s1296 + $0x8] sm:%s1289]
                %1303 = vst [vmem:[%s1297 + $0x8] sm:%s1289] %v1302
                %v1304 = vld [vmem:[%s1296 + $0xc] sm:%s1289]
                %1305 = vst [vmem:[%s1297 + $0xc] sm:%s1289] %v1304
                %v1306 = vld [vmem:[%s1296 + $0x10] sm:%s1289]
                %1307 = vst [vmem:[%s1297 + $0x10] sm:%s1289] %v1306
                %v1308 = vld [vmem:[%s1296 + $0x14] sm:%s1289]
                %1309 = vst [vmem:[%s1297 + $0x14] sm:%s1289] %v1308
                %v1310 = vld [vmem:[%s1296 + $0x18] sm:%s1289]
                %1311 = vst [vmem:[%s1297 + $0x18] sm:%s1289] %v1310
                %v1312 = vld [vmem:[%s1296 + $0x1c] sm:%s1289]
                %1313 = vst [vmem:[%s1297 + $0x1c] sm:%s1289] %v1312
                %v1314 = vld [vmem:[%s1296 + $0x20] sm:%s1289]
                %1315 = vst [vmem:[%s1297 + $0x20] sm:%s1289] %v1314
                %v1316 = vld [vmem:[%s1296 + $0x24] sm:%s1289]
                %1317 = vst [vmem:[%s1297 + $0x24] sm:%s1289] %v1316
                %v1318 = vld [vmem:[%s1296 + $0x28] sm:%s1289]
                %1319 = vst [vmem:[%s1297 + $0x28] sm:%s1289] %v1318
                %v1320 = vld [vmem:[%s1296 + $0x2c] sm:%s1289]
                %1321 = vst [vmem:[%s1297 + $0x2c] sm:%s1289] %v1320
                %v1322 = vld [vmem:[%s1296 + $0x30] sm:%s1289]
                %1323 = vst [vmem:[%s1297 + $0x30] sm:%s1289] %v1322
                %v1324 = vld [vmem:[%s1296 + $0x34] sm:%s1289]
                %1325 = vst [vmem:[%s1297 + $0x34] sm:%s1289] %v1324
                %v1326 = vld [vmem:[%s1296 + $0x38] sm:%s1289]
                %1327 = vst [vmem:[%s1297 + $0x38] sm:%s1289] %v1326
                %v1328 = vld [vmem:[%s1296 + $0x3c] sm:%s1289]
                %1329 = vst [vmem:[%s1297 + $0x3c] sm:%s1289] %v1328
                %v1330 = vld [vmem:[%s1296 + $0x40] sm:%s1289]
                %1331 = vst [vmem:[%s1297 + $0x80] sm:%s1289] %v1330
                %v1332 = vld [vmem:[%s1296 + $0x44] sm:%s1289]
                %1333 = vst [vmem:[%s1297 + $0x84] sm:%s1289] %v1332
                %v1334 = vld [vmem:[%s1296 + $0x48] sm:%s1289]
                %1335 = vst [vmem:[%s1297 + $0x88] sm:%s1289] %v1334
                %v1336 = vld [vmem:[%s1296 + $0x4c] sm:%s1289]
                %1337 = vst [vmem:[%s1297 + $0x8c] sm:%s1289] %v1336
                %v1338 = vld [vmem:[%s1296 + $0x50] sm:%s1289]
                %1339 = vst [vmem:[%s1297 + $0x90] sm:%s1289] %v1338
                %v1340 = vld [vmem:[%s1296 + $0x54] sm:%s1289]
                %1341 = vst [vmem:[%s1297 + $0x94] sm:%s1289] %v1340
                %v1342 = vld [vmem:[%s1296 + $0x58] sm:%s1289]
                %1343 = vst [vmem:[%s1297 + $0x98] sm:%s1289] %v1342
                %v1344 = vld [vmem:[%s1296 + $0x5c] sm:%s1289]
                %1345 = vst [vmem:[%s1297 + $0x9c] sm:%s1289] %v1344
                %v1346 = vld [vmem:[%s1296 + $0x60] sm:%s1289]
                %1347 = vst [vmem:[%s1297 + $0xa0] sm:%s1289] %v1346
                %v1348 = vld [vmem:[%s1296 + $0x64] sm:%s1289]
                %1349 = vst [vmem:[%s1297 + $0xa4] sm:%s1289] %v1348
                %v1350 = vld [vmem:[%s1296 + $0x68] sm:%s1289]
                %1351 = vst [vmem:[%s1297 + $0xa8] sm:%s1289] %v1350
                %v1352 = vld [vmem:[%s1296 + $0x6c] sm:%s1289]
                %1353 = vst [vmem:[%s1297 + $0xac] sm:%s1289] %v1352
                %v1354 = vld [vmem:[%s1296 + $0x70] sm:%s1289]
                %1355 = vst [vmem:[%s1297 + $0xb0] sm:%s1289] %v1354
                %v1356 = vld [vmem:[%s1296 + $0x74] sm:%s1289]
                %1357 = vst [vmem:[%s1297 + $0xb4] sm:%s1289] %v1356
                %v1358 = vld [vmem:[%s1296 + $0x78] sm:%s1289]
                %1359 = vst [vmem:[%s1297 + $0xb8] sm:%s1289] %v1358
                %v1360 = vld [vmem:[%s1296 + $0x7c] sm:%s1289]
                %1361 = vst [vmem:[%s1297 + $0xbc] sm:%s1289] %v1360
                %v1362 = vld [vmem:[%s1296 + $0x80] sm:%s1289]
                %1363 = vst [vmem:[%s1297 + $0x100] sm:%s1289] %v1362
                %v1364 = vld [vmem:[%s1296 + $0x84] sm:%s1289]
                %1365 = vst [vmem:[%s1297 + $0x104] sm:%s1289] %v1364
                %v1366 = vld [vmem:[%s1296 + $0x88] sm:%s1289]
                %1367 = vst [vmem:[%s1297 + $0x108] sm:%s1289] %v1366
                %v1368 = vld [vmem:[%s1296 + $0x8c] sm:%s1289]
                %1369 = vst [vmem:[%s1297 + $0x10c] sm:%s1289] %v1368
                %v1370 = vld [vmem:[%s1296 + $0x90] sm:%s1289]
                %1371 = vst [vmem:[%s1297 + $0x110] sm:%s1289] %v1370
                %v1372 = vld [vmem:[%s1296 + $0x94] sm:%s1289]
                %1373 = vst [vmem:[%s1297 + $0x114] sm:%s1289] %v1372
                %v1374 = vld [vmem:[%s1296 + $0x98] sm:%s1289]
                %1375 = vst [vmem:[%s1297 + $0x118] sm:%s1289] %v1374
                %v1376 = vld [vmem:[%s1296 + $0x9c] sm:%s1289]
                %1377 = vst [vmem:[%s1297 + $0x11c] sm:%s1289] %v1376
                %v1378 = vld [vmem:[%s1296 + $0xa0] sm:%s1289]
                %1379 = vst [vmem:[%s1297 + $0x120] sm:%s1289] %v1378
                %v1380 = vld [vmem:[%s1296 + $0xa4] sm:%s1289]
                %1381 = vst [vmem:[%s1297 + $0x124] sm:%s1289] %v1380
                %v1382 = vld [vmem:[%s1296 + $0xa8] sm:%s1289]
                %1383 = vst [vmem:[%s1297 + $0x128] sm:%s1289] %v1382
                %v1384 = vld [vmem:[%s1296 + $0xac] sm:%s1289]
                %1385 = vst [vmem:[%s1297 + $0x12c] sm:%s1289] %v1384
                %v1386 = vld [vmem:[%s1296 + $0xb0] sm:%s1289]
                %1387 = vst [vmem:[%s1297 + $0x130] sm:%s1289] %v1386
                %v1388 = vld [vmem:[%s1296 + $0xb4] sm:%s1289]
                %1389 = vst [vmem:[%s1297 + $0x134] sm:%s1289] %v1388
                %v1390 = vld [vmem:[%s1296 + $0xb8] sm:%s1289]
                %1391 = vst [vmem:[%s1297 + $0x138] sm:%s1289] %v1390
                %v1392 = vld [vmem:[%s1296 + $0xbc] sm:%s1289]
                %1393 = vst [vmem:[%s1297 + $0x13c] sm:%s1289] %v1392
                %v1394 = vld [vmem:[%s1296 + $0xc0] sm:%s1289]
                %1395 = vst [vmem:[%s1297 + $0x180] sm:%s1289] %v1394
                %v1396 = vld [vmem:[%s1296 + $0xc4] sm:%s1289]
                %1397 = vst [vmem:[%s1297 + $0x184] sm:%s1289] %v1396
                %v1398 = vld [vmem:[%s1296 + $0xc8] sm:%s1289]
                %1399 = vst [vmem:[%s1297 + $0x188] sm:%s1289] %v1398
                %v1400 = vld [vmem:[%s1296 + $0xcc] sm:%s1289]
                %1401 = vst [vmem:[%s1297 + $0x18c] sm:%s1289] %v1400
                %v1402 = vld [vmem:[%s1296 + $0xd0] sm:%s1289]
                %1403 = vst [vmem:[%s1297 + $0x190] sm:%s1289] %v1402
                %v1404 = vld [vmem:[%s1296 + $0xd4] sm:%s1289]
                %1405 = vst [vmem:[%s1297 + $0x194] sm:%s1289] %v1404
                %v1406 = vld [vmem:[%s1296 + $0xd8] sm:%s1289]
                %1407 = vst [vmem:[%s1297 + $0x198] sm:%s1289] %v1406
                %v1408 = vld [vmem:[%s1296 + $0xdc] sm:%s1289]
                %1409 = vst [vmem:[%s1297 + $0x19c] sm:%s1289] %v1408
                %v1410 = vld [vmem:[%s1296 + $0xe0] sm:%s1289]
                %1411 = vst [vmem:[%s1297 + $0x1a0] sm:%s1289] %v1410
                %v1412 = vld [vmem:[%s1296 + $0xe4] sm:%s1289]
                %1413 = vst [vmem:[%s1297 + $0x1a4] sm:%s1289] %v1412
                %v1414 = vld [vmem:[%s1296 + $0xe8] sm:%s1289]
                %1415 = vst [vmem:[%s1297 + $0x1a8] sm:%s1289] %v1414
                %v1416 = vld [vmem:[%s1296 + $0xec] sm:%s1289]
                %1417 = vst [vmem:[%s1297 + $0x1ac] sm:%s1289] %v1416
                %v1418 = vld [vmem:[%s1296 + $0xf0] sm:%s1289]
                %1419 = vst [vmem:[%s1297 + $0x1b0] sm:%s1289] %v1418
                %v1420 = vld [vmem:[%s1296 + $0xf4] sm:%s1289]
                %1421 = vst [vmem:[%s1297 + $0x1b4] sm:%s1289] %v1420
                %v1422 = vld [vmem:[%s1296 + $0xf8] sm:%s1289]
                %1423 = vst [vmem:[%s1297 + $0x1b8] sm:%s1289] %v1422
                %v1424 = vld [vmem:[%s1296 + $0xfc] sm:%s1289]
                %1425 = vst [vmem:[%s1297 + $0x1bc] sm:%s1289] %v1424
                %v1426 = vld [vmem:[%s1296 + $0x100] sm:%s1289]
                %1427 = vst [vmem:[%s1297 + $0x200] sm:%s1289] %v1426
                %v1428 = vld [vmem:[%s1296 + $0x104] sm:%s1289]
                %1429 = vst [vmem:[%s1297 + $0x204] sm:%s1289] %v1428
                %v1430 = vld [vmem:[%s1296 + $0x108] sm:%s1289]
                %1431 = vst [vmem:[%s1297 + $0x208] sm:%s1289] %v1430
                %v1432 = vld [vmem:[%s1296 + $0x10c] sm:%s1289]
                %1433 = vst [vmem:[%s1297 + $0x20c] sm:%s1289] %v1432
                %v1434 = vld [vmem:[%s1296 + $0x110] sm:%s1289]
                %1435 = vst [vmem:[%s1297 + $0x210] sm:%s1289] %v1434
                %v1436 = vld [vmem:[%s1296 + $0x114] sm:%s1289]
                %1437 = vst [vmem:[%s1297 + $0x214] sm:%s1289] %v1436
                %v1438 = vld [vmem:[%s1296 + $0x118] sm:%s1289]
                %1439 = vst [vmem:[%s1297 + $0x218] sm:%s1289] %v1438
                %v1440 = vld [vmem:[%s1296 + $0x11c] sm:%s1289]
                %1441 = vst [vmem:[%s1297 + $0x21c] sm:%s1289] %v1440
                %v1442 = vld [vmem:[%s1296 + $0x120] sm:%s1289]
                %1443 = vst [vmem:[%s1297 + $0x220] sm:%s1289] %v1442
                %v1444 = vld [vmem:[%s1296 + $0x124] sm:%s1289]
                %1445 = vst [vmem:[%s1297 + $0x224] sm:%s1289] %v1444
                %v1446 = vld [vmem:[%s1296 + $0x128] sm:%s1289]
                %1447 = vst [vmem:[%s1297 + $0x228] sm:%s1289] %v1446
                %v1448 = vld [vmem:[%s1296 + $0x12c] sm:%s1289]
                %1449 = vst [vmem:[%s1297 + $0x22c] sm:%s1289] %v1448
                %v1450 = vld [vmem:[%s1296 + $0x130] sm:%s1289]
                %1451 = vst [vmem:[%s1297 + $0x230] sm:%s1289] %v1450
                %v1452 = vld [vmem:[%s1296 + $0x134] sm:%s1289]
                %1453 = vst [vmem:[%s1297 + $0x234] sm:%s1289] %v1452
                %v1454 = vld [vmem:[%s1296 + $0x138] sm:%s1289]
                %1455 = vst [vmem:[%s1297 + $0x238] sm:%s1289] %v1454
                %v1456 = vld [vmem:[%s1296 + $0x13c] sm:%s1289]
                %1457 = vst [vmem:[%s1297 + $0x23c] sm:%s1289] %v1456
                %v1458 = vld [vmem:[%s1296 + $0x140] sm:%s1289]
                %1459 = vst [vmem:[%s1297 + $0x280] sm:%s1289] %v1458
                %v1460 = vld [vmem:[%s1296 + $0x144] sm:%s1289]
                %1461 = vst [vmem:[%s1297 + $0x284] sm:%s1289] %v1460
                %v1462 = vld [vmem:[%s1296 + $0x148] sm:%s1289]
                %1463 = vst [vmem:[%s1297 + $0x288] sm:%s1289] %v1462
                %v1464 = vld [vmem:[%s1296 + $0x14c] sm:%s1289]
                %1465 = vst [vmem:[%s1297 + $0x28c] sm:%s1289] %v1464
                %v1466 = vld [vmem:[%s1296 + $0x150] sm:%s1289]
                %1467 = vst [vmem:[%s1297 + $0x290] sm:%s1289] %v1466
                %v1468 = vld [vmem:[%s1296 + $0x154] sm:%s1289]
                %1469 = vst [vmem:[%s1297 + $0x294] sm:%s1289] %v1468
                %v1470 = vld [vmem:[%s1296 + $0x158] sm:%s1289]
                %1471 = vst [vmem:[%s1297 + $0x298] sm:%s1289] %v1470
                %v1472 = vld [vmem:[%s1296 + $0x15c] sm:%s1289]
                %1473 = vst [vmem:[%s1297 + $0x29c] sm:%s1289] %v1472
                %v1474 = vld [vmem:[%s1296 + $0x160] sm:%s1289]
                %1475 = vst [vmem:[%s1297 + $0x2a0] sm:%s1289] %v1474
                %v1476 = vld [vmem:[%s1296 + $0x164] sm:%s1289]
                %1477 = vst [vmem:[%s1297 + $0x2a4] sm:%s1289] %v1476
                %v1478 = vld [vmem:[%s1296 + $0x168] sm:%s1289]
                %1479 = vst [vmem:[%s1297 + $0x2a8] sm:%s1289] %v1478
                %v1480 = vld [vmem:[%s1296 + $0x16c] sm:%s1289]
                %1481 = vst [vmem:[%s1297 + $0x2ac] sm:%s1289] %v1480
                %v1482 = vld [vmem:[%s1296 + $0x170] sm:%s1289]
                %1483 = vst [vmem:[%s1297 + $0x2b0] sm:%s1289] %v1482
                %v1484 = vld [vmem:[%s1296 + $0x174] sm:%s1289]
                %1485 = vst [vmem:[%s1297 + $0x2b4] sm:%s1289] %v1484
                %v1486 = vld [vmem:[%s1296 + $0x178] sm:%s1289]
                %1487 = vst [vmem:[%s1297 + $0x2b8] sm:%s1289] %v1486
                %v1488 = vld [vmem:[%s1296 + $0x17c] sm:%s1289]
                %1489 = vst [vmem:[%s1297 + $0x2bc] sm:%s1289] %v1488
              $region57: #{generator_self_attention.3} parent=51 // loop_footer
                %s1295 = sadd.s32 1, %s1291
              $region58: #{generator_self_attention.3} parent=51 // loop_footer_branch
                %1290 = sbr.rel target = $region54
              $region59: #{generator_self_attention.3} parent=51 // loop_exit
                _
            $region52: #{generator_self_attention.3} parent=43 // pred_fallthru
              _
          $region44: #{generator_self_attention.3} parent=39 // pred_fallthru
            _
          %1702 = vnop
        $region40: #{generator_self_attention.3} parent=35 // pred_fallthru
          _
      $region36: #{generator_self_attention.3} parent=5 // pred_fallthru
        _
      %p1703 = scmp.le.s32.totalorder 2, %s10
      // Predicated region
      $region78: #{generator_self_attention.3} parent=5 // pred_check
        %p1704 = pneg %p1703
      $region79: #{generator_self_attention.3} parent=5 // pred_check_branch
        %1706 = sbr.rel (%p1704) target = $region81
      $region80: #{generator_self_attention.3} parent=5 // pred_region
        %s1707 = ssub.s32 %s10, 2
        // Predicated region
        $region82: #{generator_self_attention.3} parent=80 // pred_check
          %p1708 = pneg %p128
        $region83: #{generator_self_attention.3} parent=80 // pred_check_branch
          %1710 = sbr.rel (%p1708) target = $region85
        $region84: #{generator_self_attention.3} parent=80 // pred_region
          %s1711 = sand.u32 %s113, 1
          %s1712 = sand.u32 %s113, 1
          %s1713 = smul.addr %s1712, 384
          %s1714 = scalar_lea.vmem [#allocation2], %s1713
        $region85: #{generator_self_attention.3} parent=80 // pred_fallthru
          _
      $region81: #{generator_self_attention.3} parent=5 // pred_fallthru
        _
    $region6: #{generator_self_attention.3} parent=1 // loop_footer
      %s14 = sadd.s32 1, %s10
    $region7: #{generator_self_attention.3} parent=1 // loop_footer_branch
      %9 = sbr.rel target = $region3
    $region8: #{generator_self_attention.3} parent=1 // loop_exit
      _

// kernel: generator_self_attention.5
$region0: #{generator_self_attention.5}
  #allocation0 [shape = 'u32[]', space=smem, size = 0x4, offset = 0x4, fixed_abs, tag = 'smem constant byte address 0x4 - core index']
  #allocation1 [shape = 'u32[72,128]{1,0:T(1,128)}', space=vmem, size = 0x9000, scoped, tag = 'internal scratch']
  %s0 = inlined_call_operand.vmem [shape: bf16[256,256], index: 0, kind: input, shape index: {}]
  %s1 = inlined_call_operand.vmem [shape: f32[256,128], index: 1, kind: input, shape index: {}]
  %s2 = inlined_call_operand.vmem [shape: bf16[256,128], index: 2, kind: input, shape index: {}]
  %s3 = inlined_call_operand.vmem [shape: f32[1,128], index: 3, kind: input, shape index: {}]
  %s4 = inlined_call_operand.vmem [shape: f32[256,128], index: 4, kind: output, shape index: {}]
  %s5 = sld [smem:[#allocation0]]
  $region49: #{generator_self_attention.5} parent=0
    _
  %s7 = ssub.s32 1, %s5
  %s8 = scalar_select 0, %s7, %s5
  loop: start=0, step=1, limit=4
  $region2: #{generator_self_attention.5} parent=0 // loop_pre_header
    _
  $region3: #{generator_self_attention.5} parent=0 // loop_header
    %s10 = sphi 0, %s14
    %p11 = scmp.ge.s32.totalorder %s10, 4
    %s20 = sphi 0, %s22
    %s23 = sphi 0, %s20
    %s24 = sphi 0, %s23
    %s40 = sphi 0, %s24
    %s46 = sphi 0, %s48
    %s49 = sphi 0, %s46
    %s50 = sphi 0, %s49
    %s66 = sphi 0, %s50
    %s70 = sphi 0, %s70
    %s72 = sphi 0, %s70
    %s73 = sphi 0, %s72
    %s87 = sphi 0, %s73
    %s91 = sphi 0, %s91
    %s93 = sphi 0, %s91
    %s94 = sphi 0, %s93
    %s108 = sphi 0, %s94
    %s114 = sphi 0, %s116
    %s117 = sphi 0, %s114
    %s118 = sphi 0, %s117
    %s134 = sphi 0, %s118
  $region4: #{generator_self_attention.5} parent=0 // loop_header_branch
    %13 = sbr.rel (%p11) target = $region8
  $region5: #{generator_self_attention.5} parent=0 // loop_body
    %s15 = ssub.s32 %s10, 1
    %s16 = ssub.s32 %s10, 2
    %s17 = sadd.s32 %s10, 1
    %s18 = ssub.s32 %s10, %s17
    %p19 = scmp.eq.s32.totalorder %s18, 0
    %s21 = sadd.s32 %s20, 1
    %s22 = scalar_select %p19, %s20, %s21
    %p25 = pneg %p19
    %p26 = scmp.eq.s32.totalorder %s10, 1
    %p27 = por %p25, %p26
    %p28 = scmp.ne.s32.totalorder %s20, %s23
    %p29 = scmp.eq.s32.totalorder %s10, 0
    %p30 = por %p28, %p29
    %p31 = scmp.ne.s32.totalorder %s20, %s23
    %p32 = scmp.eq.s32.totalorder %s15, 1
    %p33 = por %p31, %p32
    %p34 = scmp.ne.s32.totalorder %s23, %s24
    %p35 = scmp.eq.s32.totalorder %s15, 0
    %p36 = por %p34, %p35
    %p37 = scmp.ne.s32.totalorder %s23, %s24
    %p38 = scmp.eq.s32.totalorder %s16, 1
    %p39 = por %p37, %p38
    %p41 = scmp.ne.s32.totalorder %s24, %s40
    %p42 = scmp.eq.s32.totalorder %s16, 0
    %p43 = por %p41, %p42
    %s44 = ssub.s32 %s10, %s17
    %p45 = scmp.eq.s32.totalorder %s44, 0
    %s47 = sadd.s32 %s46, 1
    %s48 = scalar_select %p45, %s46, %s47
    %p51 = pneg %p45
    %p52 = scmp.eq.s32.totalorder %s10, 1
    %p53 = por %p51, %p52
    %p54 = scmp.ne.s32.totalorder %s46, %s49
    %p55 = scmp.eq.s32.totalorder %s10, 0
    %p56 = por %p54, %p55
    %p57 = scmp.ne.s32.totalorder %s46, %s49
    %p58 = scmp.eq.s32.totalorder %s15, 1
    %p59 = por %p57, %p58
    %p60 = scmp.ne.s32.totalorder %s49, %s50
    %p61 = scmp.eq.s32.totalorder %s15, 0
    %p62 = por %p60, %p61
    %p63 = scmp.ne.s32.totalorder %s49, %s50
    %p64 = scmp.eq.s32.totalorder %s16, 1
    %p65 = por %p63, %p64
    %p67 = scmp.ne.s32.totalorder %s50, %s66
    %p68 = scmp.eq.s32.totalorder %s16, 0
    %p69 = por %p67, %p68
    %s71 = sadd.s32 %s70, 1
    %p74 = scmp.eq.s32.totalorder %s10, 1
    %p75 = scmp.ne.s32.totalorder %s70, %s72
    %p76 = scmp.eq.s32.totalorder %s10, 0
    %p77 = por %p75, %p76
    %p78 = scmp.ne.s32.totalorder %s70, %s72
    %p79 = scmp.eq.s32.totalorder %s15, 1
    %p80 = por %p78, %p79
    %p81 = scmp.ne.s32.totalorder %s72, %s73
    %p82 = scmp.eq.s32.totalorder %s15, 0
    %p83 = por %p81, %p82
    %p84 = scmp.ne.s32.totalorder %s72, %s73
    %p85 = scmp.eq.s32.totalorder %s16, 1
    %p86 = por %p84, %p85
    %p88 = scmp.ne.s32.totalorder %s73, %s87
    %p89 = scmp.eq.s32.totalorder %s16, 0
    %p90 = por %p88, %p89
    %s92 = sadd.s32 %s91, 1
    %p95 = scmp.eq.s32.totalorder %s10, 1
    %p96 = scmp.ne.s32.totalorder %s91, %s93
    %p97 = scmp.eq.s32.totalorder %s10, 0
    %p98 = por %p96, %p97
    %p99 = scmp.ne.s32.totalorder %s91, %s93
    %p100 = scmp.eq.s32.totalorder %s15, 1
    %p101 = por %p99, %p100
    %p102 = scmp.ne.s32.totalorder %s93, %s94
    %p103 = scmp.eq.s32.totalorder %s15, 0
    %p104 = por %p102, %p103
    %p105 = scmp.ne.s32.totalorder %s93, %s94
    %p106 = scmp.eq.s32.totalorder %s16, 1
    %p107 = por %p105, %p106
    %p109 = scmp.ne.s32.totalorder %s94, %s108
    %p110 = scmp.eq.s32.totalorder %s16, 0
    %p111 = por %p109, %p110
    %s112 = ssub.s32 %s10, %s17
    %p113 = scmp.eq.s32.totalorder %s112, 0
    %s115 = sadd.s32 %s114, 1
    %s116 = scalar_select %p113, %s114, %s115
    %p119 = pneg %p113
    %p120 = scmp.eq.s32.totalorder %s10, 1
    %p121 = por %p119, %p120
    %p122 = scmp.ne.s32.totalorder %s114, %s117
    %p123 = scmp.eq.s32.totalorder %s10, 0
    %p124 = por %p122, %p123
    %p125 = scmp.ne.s32.totalorder %s114, %s117
    %p126 = scmp.eq.s32.totalorder %s15, 1
    %p127 = por %p125, %p126
    %p128 = scmp.ne.s32.totalorder %s117, %s118
    %p129 = scmp.eq.s32.totalorder %s15, 0
    %p130 = por %p128, %p129
    %p131 = scmp.ne.s32.totalorder %s117, %s118
    %p132 = scmp.eq.s32.totalorder %s16, 1
    %p133 = por %p131, %p132
    %p135 = scmp.ne.s32.totalorder %s118, %s134
    %p136 = scmp.eq.s32.totalorder %s16, 0
    %p137 = por %p135, %p136
    %p138 = scmp.le.s32.totalorder 1, %s10
    %p139 = scmp.lt.s32.totalorder %s10, 3
    %p140 = pnand %p138, %p139
    %p141 = pneg %p140
    // Predicated region
    $region9: #{generator_self_attention.5} parent=5 // pred_check
      _
    $region10: #{generator_self_attention.5} parent=5 // pred_check_branch
      %143 = sbr.rel (%p140) target = $region12
    $region11: #{generator_self_attention.5} parent=5 // pred_region
      %s144 = ssub.s32 %s10, 1
      // Predicated region
      $region13: #{generator_self_attention.5} parent=11 // pred_check
        %p145 = pneg %p83
      $region14: #{generator_self_attention.5} parent=11 // pred_check_branch
        %147 = sbr.rel (%p145) target = $region16
      $region15: #{generator_self_attention.5} parent=11 // pred_region
        _
      $region16: #{generator_self_attention.5} parent=11 // pred_fallthru
        _
      // Predicated region
      $region17: #{generator_self_attention.5} parent=11 // pred_check
        %p148 = pneg %p104
      $region18: #{generator_self_attention.5} parent=11 // pred_check_branch
        %150 = sbr.rel (%p148) target = $region20
      $region19: #{generator_self_attention.5} parent=11 // pred_region
        _
      $region20: #{generator_self_attention.5} parent=11 // pred_fallthru
        _
    $region12: #{generator_self_attention.5} parent=5 // pred_fallthru
      _
    %p151 = scmp.lt.s32.totalorder %s10, 2
    // Predicated region
    $region21: #{generator_self_attention.5} parent=5 // pred_check
      %p152 = pneg %p151
    $region22: #{generator_self_attention.5} parent=5 // pred_check_branch
      %154 = sbr.rel (%p152) target = $region24
    $region23: #{generator_self_attention.5} parent=5 // pred_region
      // Predicated region
      $region25: #{generator_self_attention.5} parent=23 // pred_check
        %p155 = pneg %p30
      $region26: #{generator_self_attention.5} parent=23 // pred_check_branch
        %157 = sbr.rel (%p155) target = $region28
      $region27: #{generator_self_attention.5} parent=23 // pred_region
        %s158 = smul.u32 16, %s10
        %p159 = scmp.lt.s32.totalorder %s158, 31
        %s160 = scalar_select %p159, %s158, 31
        %s161 = smul.addr %s160, 2
        %s162 = smul.addr %s161, 4
        %s163 = scalar_lea.vmem %s0, %s162
        %s164 = smul.u32 16, %s10
      $region28: #{generator_self_attention.5} parent=23 // pred_fallthru
        _
      // Predicated region
      $region29: #{generator_self_attention.5} parent=23 // pred_check
        %p165 = pneg %p56
      $region30: #{generator_self_attention.5} parent=23 // pred_check_branch
        %167 = sbr.rel (%p165) target = $region32
      $region31: #{generator_self_attention.5} parent=23 // pred_region
        %s168 = smul.u32 16, %s10
        %p169 = scmp.lt.s32.totalorder %s168, 31
        %s170 = scalar_select %p169, %s168, 31
        %s171 = smul.addr %s170, 8
        %s172 = scalar_lea.vmem %s1, %s171
        %s173 = smul.u32 16, %s10
      $region32: #{generator_self_attention.5} parent=23 // pred_fallthru
        _
    $region24: #{generator_self_attention.5} parent=5 // pred_fallthru
      _
    %p174 = scmp.le.s32.totalorder 1, %s10
    %p175 = scmp.lt.s32.totalorder %s10, 3
    %p176 = pnand %p174, %p175
    %p177 = pneg %p176
    // Predicated region
    $region33: #{generator_self_attention.5} parent=5 // pred_check
      _
    $region34: #{generator_self_attention.5} parent=5 // pred_check_branch
      %179 = sbr.rel (%p176) target = $region36
    $region35: #{generator_self_attention.5} parent=5 // pred_region
      %s180 = ssub.s32 %s10, 1
      %s181 = smul.u32 16, %s15
      %p182 = scmp.lt.s32.totalorder %s181, 31
      %s183 = scalar_select %p182, %s181, 31
      %s184 = smul.addr %s183, 2
      %s185 = smul.addr %s184, 4
      %s186 = scalar_lea.vmem %s0, %s185
      %p187 = pneg %p36
      %p188 = pneg %p33
      %s189 = smul.u32 16, %s15
      %p190 = scmp.lt.s32.totalorder %s189, 31
      %s191 = scalar_select %p190, %s189, 31
      %s192 = smul.addr %s191, 8
      %s193 = scalar_lea.vmem %s1, %s192
      %p194 = pneg %p62
      %p195 = pneg %p59
      %p196 = pneg %p83
      %p197 = pneg %p80
      %p198 = pneg %p104
      %p199 = pneg %p101
      %p200 = pneg %p130
      %p201 = pneg %p127
      %s202 = smul.u32 16, %s15
      %p203 = scmp.lt.s32.totalorder %s202, 31
      %s204 = scalar_select %p203, %s202, 31
      %s205 = smul.addr %s204, 8
      %s206 = scalar_lea.vmem %s4, %s205
      %s207 = smul.u32 16, %s15
      %p208 = scmp.lt.s32.totalorder %s207, 31
      %s209 = scalar_select %p208, %s207, 31
      %s210 = smul.addr %s209, 2
      %s211 = smul.addr %s210, 4
      %s212 = scalar_lea.vmem %s0, %s211
      %s213 = smul.u32 16, %s15
      %s214 = smul.u32 16, %s15
      %p215 = scmp.lt.s32.totalorder %s214, 31
      %s216 = scalar_select %p215, %s214, 31
      %s217 = smul.addr %s216, 8
      %s218 = scalar_lea.vmem %s1, %s217
      %s219 = smul.u32 16, %s15
      %s220 = smul.u32 16, %s15
      %p221 = scmp.lt.s32.totalorder %s220, 31
      %s222 = scalar_select %p221, %s220, 31
      %s223 = smul.addr %s222, 8
      %s224 = scalar_lea.vmem %s4, %s223
      %s225 = smul.u32 16, %s15
      %v226 = vld [vmem:[%s212] sm:$0xff]
      %v227 = vld [vmem:[%s212 + $0x8] sm:$0xff]
      %v228 = vld [vmem:[%s212 + $0x10] sm:$0xff]
      %v229 = vld [vmem:[%s212 + $0x18] sm:$0xff]
      %v230 = vld [vmem:[%s212 + $0x20] sm:$0xff]
      %v231 = vld [vmem:[%s212 + $0x28] sm:$0xff]
      %v232 = vld [vmem:[%s212 + $0x30] sm:$0xff]
      %v233 = vld [vmem:[%s212 + $0x38] sm:$0xff]
      %v234 = vld [vmem:[%s212 + $0x40] sm:$0xff]
      %v235 = vld [vmem:[%s212 + $0x48] sm:$0xff]
      %v236 = vld [vmem:[%s212 + $0x50] sm:$0xff]
      %v237 = vld [vmem:[%s212 + $0x58] sm:$0xff]
      %v238 = vld [vmem:[%s212 + $0x60] sm:$0xff]
      %v239 = vld [vmem:[%s212 + $0x68] sm:$0xff]
      %v240 = vld [vmem:[%s212 + $0x70] sm:$0xff]
      %v241 = vld [vmem:[%s212 + $0x78] sm:$0xff]
      %v242 = vld [vmem:[%s2] sm:$0xf]
      %v243 = vld [vmem:[%s2 + $0x4] sm:$0xf]
      %v244 = vld [vmem:[%s2 + $0x8] sm:$0xf]
      %v245 = vld [vmem:[%s2 + $0xc] sm:$0xf]
      %v246 = vld [vmem:[%s2 + $0x10] sm:$0xf]
      %v247 = vld [vmem:[%s2 + $0x14] sm:$0xf]
      %v248 = vld [vmem:[%s2 + $0x18] sm:$0xf]
      %v249 = vld [vmem:[%s2 + $0x1c] sm:$0xf]
      %v250 = vld [vmem:[%s2 + $0x20] sm:$0xf]
      %v251 = vld [vmem:[%s2 + $0x24] sm:$0xf]
      %v252 = vld [vmem:[%s2 + $0x28] sm:$0xf]
      %v253 = vld [vmem:[%s2 + $0x2c] sm:$0xf]
      %v254 = vld [vmem:[%s2 + $0x30] sm:$0xf]
      %v255 = vld [vmem:[%s2 + $0x34] sm:$0xf]
      %v256 = vld [vmem:[%s2 + $0x38] sm:$0xf]
      %v257 = vld [vmem:[%s2 + $0x3c] sm:$0xf]
      %v258 = vld [vmem:[%s2 + $0x40] sm:$0xf]
      %v259 = vld [vmem:[%s2 + $0x44] sm:$0xf]
      %v260 = vld [vmem:[%s2 + $0x48] sm:$0xf]
      %v261 = vld [vmem:[%s2 + $0x4c] sm:$0xf]
      %v262 = vld [vmem:[%s2 + $0x50] sm:$0xf]
      %v263 = vld [vmem:[%s2 + $0x54] sm:$0xf]
      %v264 = vld [vmem:[%s2 + $0x58] sm:$0xf]
      %v265 = vld [vmem:[%s2 + $0x5c] sm:$0xf]
      %v266 = vld [vmem:[%s2 + $0x60] sm:$0xf]
      %v267 = vld [vmem:[%s2 + $0x64] sm:$0xf]
      %v268 = vld [vmem:[%s2 + $0x68] sm:$0xf]
      %v269 = vld [vmem:[%s2 + $0x6c] sm:$0xf]
      %v270 = vld [vmem:[%s2 + $0x70] sm:$0xf]
      %v271 = vld [vmem:[%s2 + $0x74] sm:$0xf]
      %v272 = vld [vmem:[%s2 + $0x78] sm:$0xf]
      %v273 = vld [vmem:[%s2 + $0x7c] sm:$0xf]
      %v274 = vld [vmem:[%s3] sm:$0x1]
      %v276 = vperm.slane %v274, 0
      %v294 = vunpack.c.l.b16 %v226
      %v295 = vunpack.c.h.b16 %v226
      %v296 = vunpack.c.l.b16 %v227
      %v297 = vunpack.c.h.b16 %v227
      %v298 = vunpack.c.l.b16 %v228
      %v299 = vunpack.c.h.b16 %v228
      %v300 = vunpack.c.l.b16 %v229
      %v301 = vunpack.c.h.b16 %v229
      %v302 = vunpack.c.l.b16 %v230
      %v303 = vunpack.c.h.b16 %v230
      %v304 = vunpack.c.l.b16 %v231
      %v305 = vunpack.c.h.b16 %v231
      %v306 = vunpack.c.l.b16 %v232
      %v307 = vunpack.c.h.b16 %v232
      %v308 = vunpack.c.l.b16 %v233
      %v309 = vunpack.c.h.b16 %v233
      %v310 = vunpack.c.l.b16 %v234
      %v311 = vunpack.c.h.b16 %v234
      %v312 = vunpack.c.l.b16 %v235
      %v313 = vunpack.c.h.b16 %v235
      %v314 = vunpack.c.l.b16 %v236
      %v315 = vunpack.c.h.b16 %v236
      %v316 = vunpack.c.l.b16 %v237
      %v317 = vunpack.c.h.b16 %v237
      %v318 = vunpack.c.l.b16 %v238
      %v319 = vunpack.c.h.b16 %v238
      %v320 = vunpack.c.l.b16 %v239
      %v321 = vunpack.c.h.b16 %v239
      %v322 = vunpack.c.l.b16 %v240
      %v323 = vunpack.c.h.b16 %v240
      %v324 = vunpack.c.l.b16 %v241
      %v325 = vunpack.c.h.b16 %v241
      %v326 = vpack.c.b16 %v296, %v294
      %v327 = vpack.c.b16 %v297, %v295
      %v328 = vpack.c.b16 %v300, %v298
      %v329 = vpack.c.b16 %v301, %v299
      %v330 = vpack.c.b16 %v304, %v302
      %v331 = vpack.c.b16 %v305, %v303
      %v332 = vpack.c.b16 %v308, %v306
      %v333 = vpack.c.b16 %v309, %v307
      %v334 = vpack.c.b16 %v312, %v310
      %v335 = vpack.c.b16 %v313, %v311
      %v336 = vpack.c.b16 %v316, %v314
      %v337 = vpack.c.b16 %v317, %v315
      %v338 = vpack.c.b16 %v320, %v318
      %v339 = vpack.c.b16 %v321, %v319
      %v340 = vpack.c.b16 %v324, %v322
      %v341 = vpack.c.b16 %v325, %v323
      %v390 = vunpack.c.l.b16 %v242
      %v391 = vunpack.c.l.b16 %v243
      %v392 = vunpack.c.l.b16 %v244
      %v393 = vunpack.c.l.b16 %v245
      %v394 = vunpack.c.l.b16 %v246
      %v395 = vunpack.c.l.b16 %v247
      %v396 = vunpack.c.l.b16 %v248
      %v397 = vunpack.c.l.b16 %v249
      %v398 = vunpack.c.l.b16 %v250
      %v399 = vunpack.c.l.b16 %v251
      %v400 = vunpack.c.l.b16 %v252
      %v401 = vunpack.c.l.b16 %v253
      %v402 = vunpack.c.l.b16 %v254
      %v403 = vunpack.c.l.b16 %v255
      %v404 = vunpack.c.l.b16 %v256
      %v405 = vunpack.c.l.b16 %v257
      %v406 = vunpack.c.l.b16 %v258
      %v407 = vunpack.c.l.b16 %v259
      %v408 = vunpack.c.l.b16 %v260
      %v409 = vunpack.c.l.b16 %v261
      %v410 = vunpack.c.l.b16 %v262
      %v411 = vunpack.c.l.b16 %v263
      %v412 = vunpack.c.l.b16 %v264
      %v413 = vunpack.c.l.b16 %v265
      %v414 = vunpack.c.l.b16 %v266
      %v415 = vunpack.c.l.b16 %v267
      %v416 = vunpack.c.l.b16 %v268
      %v417 = vunpack.c.l.b16 %v269
      %v418 = vunpack.c.l.b16 %v270
      %v419 = vunpack.c.l.b16 %v271
      %v420 = vunpack.c.l.b16 %v272
      %v421 = vunpack.c.l.b16 %v273
      %v422 = vpack.c.b16 %v391, %v390
      %v423 = vpack.c.b16 %v393, %v392
      %v424 = vpack.c.b16 %v395, %v394
      %v425 = vpack.c.b16 %v397, %v396
      %v426 = vpack.c.b16 %v399, %v398
      %v427 = vpack.c.b16 %v401, %v400
      %v428 = vpack.c.b16 %v403, %v402
      %v429 = vpack.c.b16 %v405, %v404
      %v430 = vpack.c.b16 %v407, %v406
      %v431 = vpack.c.b16 %v409, %v408
      %v432 = vpack.c.b16 %v411, %v410
      %v433 = vpack.c.b16 %v413, %v412
      %v434 = vpack.c.b16 %v415, %v414
      %v435 = vpack.c.b16 %v417, %v416
      %v436 = vpack.c.b16 %v419, %v418
      %v437 = vpack.c.b16 %v421, %v420
      %454 = vmatpush.bf16.msra.mxu0 %v429
      %455 = vmatpush.bf16.msra.mxu0 %v428
      %456 = vmatpush.bf16.msra.mxu0 %v427
      %457 = vmatpush.bf16.msra.mxu0 %v426
      %458 = vmatpush.bf16.msra.mxu0 %v425
      %459 = vmatpush.bf16.msra.mxu0 %v424
      %460 = vmatpush.bf16.msra.mxu0 %v423
      %461 = vmatpush.bf16.msra.mxu0 %v422
      %462 = vmatmul.bf16.gmra.mxu0 %v326
      %v463 = vpop.f32.mrf.mxu0
      %v464 = vadd.f32 %v276, %v463
      %v465 = vpop.f32.mrf.mxu0
      %v466 = vadd.f32 %v276, %v465
      %467 = vmatmul.bf16.gmra.mxu0 %v328
      %v468 = vpop.f32.mrf.mxu0
      %v469 = vadd.f32 %v276, %v468
      %v470 = vpop.f32.mrf.mxu0
      %v471 = vadd.f32 %v276, %v470
      %472 = vmatmul.bf16.gmra.mxu0 %v330
      %v473 = vpop.f32.mrf.mxu0
      %v474 = vadd.f32 %v276, %v473
      %v475 = vpop.f32.mrf.mxu0
      %v476 = vadd.f32 %v276, %v475
      %477 = vmatmul.bf16.gmra.mxu0 %v332
      %v478 = vpop.f32.mrf.mxu0
      %v479 = vadd.f32 %v276, %v478
      %v480 = vpop.f32.mrf.mxu0
      %v481 = vadd.f32 %v276, %v480
      %482 = vmatmul.bf16.gmra.mxu0 %v334
      %v483 = vpop.f32.mrf.mxu0
      %v484 = vadd.f32 %v276, %v483
      %v485 = vpop.f32.mrf.mxu0
      %v486 = vadd.f32 %v276, %v485
      %487 = vmatmul.bf16.gmra.mxu0 %v336
      %v488 = vpop.f32.mrf.mxu0
      %v489 = vadd.f32 %v276, %v488
      %v490 = vpop.f32.mrf.mxu0
      %v491 = vadd.f32 %v276, %v490
      %492 = vmatmul.bf16.gmra.mxu0 %v338
      %v493 = vpop.f32.mrf.mxu0
      %v494 = vadd.f32 %v276, %v493
      %v495 = vpop.f32.mrf.mxu0
      %v496 = vadd.f32 %v276, %v495
      %497 = vmatmul.bf16.gmra.mxu0 %v340
      %v498 = vpop.f32.mrf.mxu0
      %v499 = vadd.f32 %v276, %v498
      %v500 = vpop.f32.mrf.mxu0
      %v501 = vadd.f32 %v276, %v500
      %502 = vdwg.mxu0
      %503 = vmatpush.bf16.msra.mxu0 %v437
      %504 = vmatpush.bf16.msra.mxu0 %v436
      %505 = vmatpush.bf16.msra.mxu0 %v435
      %506 = vmatpush.bf16.msra.mxu0 %v434
      %507 = vmatpush.bf16.msra.mxu0 %v433
      %508 = vmatpush.bf16.msra.mxu0 %v432
      %509 = vmatpush.bf16.msra.mxu0 %v431
      %510 = vmatpush.bf16.msra.mxu0 %v430
      %511 = vmatmul.bf16.gmra.mxu0 %v327
      %v512 = vpop.f32.mrf.mxu0
      %v513 = vadd.f32 %v464, %v512
      %v514 = vpop.f32.mrf.mxu0
      %v515 = vadd.f32 %v466, %v514
      %516 = vmatmul.bf16.gmra.mxu0 %v329
      %v517 = vpop.f32.mrf.mxu0
      %v518 = vadd.f32 %v469, %v517
      %v519 = vpop.f32.mrf.mxu0
      %v520 = vadd.f32 %v471, %v519
      %521 = vmatmul.bf16.gmra.mxu0 %v331
      %v522 = vpop.f32.mrf.mxu0
      %v523 = vadd.f32 %v474, %v522
      %v524 = vpop.f32.mrf.mxu0
      %v525 = vadd.f32 %v476, %v524
      %526 = vmatmul.bf16.gmra.mxu0 %v333
      %v527 = vpop.f32.mrf.mxu0
      %v528 = vadd.f32 %v479, %v527
      %v529 = vpop.f32.mrf.mxu0
      %v530 = vadd.f32 %v481, %v529
      %531 = vmatmul.bf16.gmra.mxu0 %v335
      %v532 = vpop.f32.mrf.mxu0
      %v533 = vadd.f32 %v484, %v532
      %v534 = vpop.f32.mrf.mxu0
      %v535 = vadd.f32 %v486, %v534
      %536 = vmatmul.bf16.gmra.mxu0 %v337
      %v537 = vpop.f32.mrf.mxu0
      %v538 = vadd.f32 %v489, %v537
      %v539 = vpop.f32.mrf.mxu0
      %v540 = vadd.f32 %v491, %v539
      %541 = vmatmul.bf16.gmra.mxu0 %v339
      %v542 = vpop.f32.mrf.mxu0
      %v543 = vadd.f32 %v494, %v542
      %v544 = vpop.f32.mrf.mxu0
      %v545 = vadd.f32 %v496, %v544
      %546 = vmatmul.bf16.gmra.mxu0 %v341
      %v547 = vpop.f32.mrf.mxu0
      %v548 = vadd.f32 %v499, %v547
      %v549 = vpop.f32.mrf.mxu0
      %v550 = vadd.f32 %v501, %v549
      %551 = vdwg.mxu0
      %v552 = vld [vmem:[%s218] sm:$0xff]
      %v553 = vld [vmem:[%s218 + $0x8] sm:$0xff]
      %v554 = vld [vmem:[%s218 + $0x10] sm:$0xff]
      %v555 = vld [vmem:[%s218 + $0x18] sm:$0xff]
      %v556 = vld [vmem:[%s218 + $0x20] sm:$0xff]
      %v557 = vld [vmem:[%s218 + $0x28] sm:$0xff]
      %v558 = vld [vmem:[%s218 + $0x30] sm:$0xff]
      %v559 = vld [vmem:[%s218 + $0x38] sm:$0xff]
      %v560 = vld [vmem:[%s218 + $0x40] sm:$0xff]
      %v561 = vld [vmem:[%s218 + $0x48] sm:$0xff]
      %v562 = vld [vmem:[%s218 + $0x50] sm:$0xff]
      %v563 = vld [vmem:[%s218 + $0x58] sm:$0xff]
      %v564 = vld [vmem:[%s218 + $0x60] sm:$0xff]
      %v565 = vld [vmem:[%s218 + $0x68] sm:$0xff]
      %v566 = vld [vmem:[%s218 + $0x70] sm:$0xff]
      %v567 = vld [vmem:[%s218 + $0x78] sm:$0xff]
      %v568 = vadd.f32 %v513, %v552
      %v569 = vadd.f32 %v515, %v553
      %v570 = vadd.f32 %v518, %v554
      %v571 = vadd.f32 %v520, %v555
      %v572 = vadd.f32 %v523, %v556
      %v573 = vadd.f32 %v525, %v557
      %v574 = vadd.f32 %v528, %v558
      %v575 = vadd.f32 %v530, %v559
      %v576 = vadd.f32 %v533, %v560
      %v577 = vadd.f32 %v535, %v561
      %v578 = vadd.f32 %v538, %v562
      %v579 = vadd.f32 %v540, %v563
      %v580 = vadd.f32 %v543, %v564
      %v581 = vadd.f32 %v545, %v565
      %v582 = vadd.f32 %v548, %v566
      %v583 = vadd.f32 %v550, %v567
      %584 = vst [vmem:[%s224] sm:$0xff] %v568
      %585 = vst [vmem:[%s224 + $0x8] sm:$0xff] %v569
      %586 = vst [vmem:[%s224 + $0x10] sm:$0xff] %v570
      %587 = vst [vmem:[%s224 + $0x18] sm:$0xff] %v571
      %588 = vst [vmem:[%s224 + $0x20] sm:$0xff] %v572
      %589 = vst [vmem:[%s224 + $0x28] sm:$0xff] %v573
      %590 = vst [vmem:[%s224 + $0x30] sm:$0xff] %v574
      %591 = vst [vmem:[%s224 + $0x38] sm:$0xff] %v575
      %592 = vst [vmem:[%s224 + $0x40] sm:$0xff] %v576
      %593 = vst [vmem:[%s224 + $0x48] sm:$0xff] %v577
      %594 = vst [vmem:[%s224 + $0x50] sm:$0xff] %v578
      %595 = vst [vmem:[%s224 + $0x58] sm:$0xff] %v579
      %596 = vst [vmem:[%s224 + $0x60] sm:$0xff] %v580
      %597 = vst [vmem:[%s224 + $0x68] sm:$0xff] %v581
      %598 = vst [vmem:[%s224 + $0x70] sm:$0xff] %v582
      %599 = vst [vmem:[%s224 + $0x78] sm:$0xff] %v583
      %s600 = smul.u32 16, %s15
      %p601 = scmp.lt.s32.totalorder %s600, 31
      %s602 = scalar_select %p601, %s600, 31
      %s603 = smul.addr %s602, 8
      %s604 = scalar_lea.vmem %s4, %s603
      // Predicated region
      $region37: #{generator_self_attention.5} parent=35 // pred_check
        %p605 = pneg %p127
      $region38: #{generator_self_attention.5} parent=35 // pred_check_branch
        %607 = sbr.rel (%p605) target = $region40
      $region39: #{generator_self_attention.5} parent=35 // pred_region
        %s608 = smul.u32 16, %s15
      $region40: #{generator_self_attention.5} parent=35 // pred_fallthru
        _
    $region36: #{generator_self_attention.5} parent=5 // pred_fallthru
      _
    %p609 = scmp.le.s32.totalorder 2, %s10
    // Predicated region
    $region41: #{generator_self_attention.5} parent=5 // pred_check
      %p610 = pneg %p609
    $region42: #{generator_self_attention.5} parent=5 // pred_check_branch
      %612 = sbr.rel (%p610) target = $region44
    $region43: #{generator_self_attention.5} parent=5 // pred_region
      %s613 = ssub.s32 %s10, 2
      // Predicated region
      $region45: #{generator_self_attention.5} parent=43 // pred_check
        %p614 = pneg %p133
      $region46: #{generator_self_attention.5} parent=43 // pred_check_branch
        %616 = sbr.rel (%p614) target = $region48
      $region47: #{generator_self_attention.5} parent=43 // pred_region
        %s617 = smul.u32 16, %s16
        %p618 = scmp.lt.s32.totalorder %s617, 31
        %s619 = scalar_select %p618, %s617, 31
        %s620 = smul.addr %s619, 8
        %s621 = scalar_lea.vmem %s4, %s620
      $region48: #{generator_self_attention.5} parent=43 // pred_fallthru
        _
    $region44: #{generator_self_attention.5} parent=5 // pred_fallthru
      _
  $region6: #{generator_self_attention.5} parent=0 // loop_footer
    %s14 = sadd.s32 1, %s10
  $region7: #{generator_self_attention.5} parent=0 // loop_footer_branch
    %9 = sbr.rel target = $region3
  $region8: #{generator_self_attention.5} parent=0 // loop_exit
    _

</llo_original>
